<compile_context>
chip_gen: v7x
topology: tpu7x:2x2x1
jax: 0.10.0
libtpu: 0.0.40
codegen_flags: <defaults>
</compile_context>

<pallas_src>
import functools

import jax
import jax.numpy as jnp
import numpy as np
from jax import lax
from jax.experimental import pallas as pl
from jax.experimental.pallas import tpu as pltpu


def _convlstm_kernel(x_ref, wpl_ref, wci_ref, wcf_ref, wco_ref, b_ref,
                     out_ref, h_scr, c_scr,
                     *, Tc, Bb, Cin, OC, shifts, activation):
    """One (batch block, time chunk): Tc ConvLSTM steps on packed slabs.

    x_ref   : (1, Tc*Cin*Bb, HW)   input frames, row = tt*Cin*Bb + ci*Bb + b
    wpl_ref : (K*K, Cin+OC, 4*OC*Bb, HW) masked weight planes (VMEM)
    wci/wcf/wco_ref : (OC*Bb, HW)  peephole weights, packed rows oc*Bb + b
    b_ref   : (4*OC*Bb, HW)        conv bias, pre-broadcast to packed rows
    out_ref : (1, Tc*OC*Bb, HW)    hidden state per step, packed rows
    h_scr/c_scr : (OC*Bb, HW)      recurrent carry across time chunks (VMEM)
    """
    R = OC * Bb                 # packed rows of h / c / one gate
    C_all = Cin + OC            # conv input channels (cat([X, H]))

    if activation == "tanh":
        act = jnp.tanh
    else:                       # "relu"
        act = lambda v: jnp.maximum(v, 0.0)

    # Zero the carried state at the first time chunk of each batch block.
    @pl.when(pl.program_id(1) == 0)
    def _():
        h_scr[...] = jnp.zeros_like(h_scr)
        c_scr[...] = jnp.zeros_like(c_scr)

    def step(tt, carry):
        h, c = carry                                        # (R, HW) each
        x_t = x_ref[0, pl.ds(tt * (Cin * Bb), Cin * Bb), :]  # (Cin*Bb, HW)

        # Gate pre-activations, packed over (gate*OC, batch) rows.
        acc = b_ref[...]                                    # (4*R, HW)

        # cat([X_t, H_{t-1}]) conv: one rolled window per input channel,
        # one full-vreg FMA per tap against the packed accumulator.
        for ci in range(C_all):
            if ci < Cin:
                win = x_t if Cin == 1 else x_t[ci * Bb:(ci + 1) * Bb, :]
            else:
                hc = ci - Cin
                win = h if OC == 1 else h[hc * Bb:(hc + 1) * Bb, :]
            # Broadcast the (Bb, HW) window across the 4*OC gate row-blocks.
            tiled = jnp.concatenate([win] * (4 * OC), axis=0)   # (4*R, HW)
            for kk, shift in enumerate(shifts):
                w_kk = wpl_ref[kk, ci]                      # (4*R, HW) from VMEM
                if shift == 0:
                    acc = acc + w_kk * tiled
                else:
                    acc = acc + w_kk * pltpu.roll(tiled, shift, 1)

        a_i = acc[0 * R:1 * R, :]
        a_f = acc[1 * R:2 * R, :]
        a_g = acc[2 * R:3 * R, :]
        a_o = acc[3 * R:4 * R, :]

        i_g = jax.nn.sigmoid(a_i + wci_ref[...] * c)
        f_g = jax.nn.sigmoid(a_f + wcf_ref[...] * c)
        c_n = f_g * c + i_g * act(a_g)
        o_g = jax.nn.sigmoid(a_o + wco_ref[...] * c_n)
        h_n = o_g * act(c_n)

        # Sublane/lane-dense store straight from the packed slab.
        out_ref[0, pl.ds(tt * R, R), :] = h_n.astype(out_ref.dtype)
        return (h_n, c_n)

    loop_unroll = True if Tc <= 8 else 2
    h_T, c_T = lax.fori_loop(0, Tc, step, (h_scr[...], c_scr[...]),
                             unroll=loop_unroll)
    h_scr[...] = h_T
    c_scr[...] = c_T


def convlstm_forward(x, w_conv, b_conv, w_ci, w_cf, w_co, *,
                     activation="tanh", padding=1,
                     batch_block=None, time_chunk=None):
    """x: (B, Cin, T, H, W) float32 -> (B, OC, T, H, W) float32."""
    B, Cin, T, Hh, Ww = x.shape
    OC4, C_all, K, K2 = w_conv.shape
    OC = OC4 // 4
    assert K == K2 and C_all == Cin + OC
    assert 2 * padding == K - 1, "output frame size must equal input frame size"
    HW = Hh * Ww
    f32 = jnp.float32

    # Batch block: only split across v7x's two TensorCores (batch_block=B//2)
    # if 4*OC*Bb stays >= 8 so the packed accumulator keeps full sublanes.
    Bb = B if batch_block is None else batch_block
    assert B % Bb == 0
    # Time chunk: bounds the VMEM working set independent of T.
    Tc = T if time_chunk is None else time_chunk
    assert T % Tc == 0
    if Tc != T and ((Tc * Cin * Bb) % 8 != 0 or (Tc * OC * Bb) % 8 != 0):
        Tc = T      # keep block rows 8-sublane aligned

    x = x.astype(f32)
    w_conv = w_conv.astype(f32)
    b_conv = b_conv.astype(f32)

    R = OC * Bb
    R4 = 4 * OC * Bb
    nB = B // Bb

    # ---- packed, lane-dense input: (B//Bb, T*Cin*Bb, HW), row = t,ci,b ----
    xk = x.reshape(nB, Bb, Cin, T, HW)
    xk = jnp.transpose(xk, (0, 3, 2, 1, 4)).reshape(nB, T * Cin * Bb, HW)

    # ---- tap shifts + zero-pad validity masks on the flattened lanes ------
    P = padding
    pos = np.arange(HW)
    rr, cc = pos // Ww, pos % Ww
    shifts, masks = [], []
    for dy in range(K):
        for dx in range(K):
            sy, sx = dy - P, dx - P
            shifts.append(int((-(sy * Ww + sx)) % HW))
            masks.append(((rr + sy >= 0) & (rr + sy < Hh) &
                          (cc + sx >= 0) & (cc + sx < Ww)).astype(np.float32))
    masks = jnp.asarray(np.stack(masks))                         # (KK, HW)

    # ---- masked weight planes: (KK, C_all, 4*OC*Bb, HW) -------------------
    wcol = jnp.transpose(w_conv.reshape(4 * OC, C_all, K * K), (2, 1, 0))
    wcol = jnp.repeat(wcol, Bb, axis=2)                          # row go*Bb+b
    wplanes = wcol[:, :, :, None] * masks[:, None, None, :]      # f32

    # ---- bias pre-broadcast to the packed gate rows ------------------------
    bias = jnp.broadcast_to(jnp.repeat(b_conv, Bb)[:, None], (R4, HW))

    # ---- peephole weights packed to (OC*Bb, HW) ----------------------------
    wci = jnp.repeat(w_ci.reshape(OC, HW).astype(f32), Bb, axis=0)
    wcf = jnp.repeat(w_cf.reshape(OC, HW).astype(f32), Bb, axis=0)
    wco = jnp.repeat(w_co.reshape(OC, HW).astype(f32), Bb, axis=0)

    kernel = functools.partial(
        _convlstm_kernel, Tc=Tc, Bb=Bb, Cin=Cin, OC=OC,
        shifts=tuple(shifts), activation=activation)

    out = pl.pallas_call(
        kernel,
        out_shape=jax.ShapeDtypeStruct((nB, T * OC * Bb, HW), f32),
        grid_spec=pltpu.PrefetchScalarGridSpec(
            num_scalar_prefetch=0,
            grid=(nB, T // Tc),
            in_specs=[
                pl.BlockSpec((1, Tc * Cin * Bb, HW), lambda b, t: (b, t, 0)),
                pl.BlockSpec((K * K, C_all, R4, HW), lambda b, t: (0, 0, 0, 0)),
                pl.BlockSpec((R, HW), lambda b, t: (0, 0)),       # W_ci
                pl.BlockSpec((R, HW), lambda b, t: (0, 0)),       # W_cf
                pl.BlockSpec((R, HW), lambda b, t: (0, 0)),       # W_co
                pl.BlockSpec((R4, HW), lambda b, t: (0, 0)),      # bias
            ],
            out_specs=pl.BlockSpec((1, Tc * OC * Bb, HW), lambda b, t: (b, t, 0)),
            scratch_shapes=[pltpu.VMEM((R, HW), f32),             # h carry
                            pltpu.VMEM((R, HW), f32)],            # c carry
        ),
        compiler_params=pltpu.CompilerParams(
            dimension_semantics=("parallel", "arbitrary")),
    )(xk, wplanes, wci, wcf, wco, bias)

    # Unpack (B//Bb, T*OC*Bb, HW) -> (B, OC, T, H, W).
    out = out.reshape(nB, T, OC, Bb, Hh, Ww)
    out = jnp.transpose(out, (0, 3, 2, 1, 4, 5)).reshape(B, OC, T, Hh, Ww)
    return out


def convlstm_reference(x, w_conv, b_conv, w_ci, w_cf, w_co,
                       activation="tanh", padding=1):
    """Pure-JAX reference mirroring the PyTorch forward exactly (f32)."""
    B, Cin, T, Hh, Ww = x.shape
    OC = w_conv.shape[0] // 4
    act = jnp.tanh if activation == "tanh" else (lambda v: jnp.maximum(v, 0.0))
    H = jnp.zeros((B, OC, Hh, Ww), jnp.float32)
    C = jnp.zeros((B, OC, Hh, Ww), jnp.float32)
    outs = []
    for t in range(T):
        inp = jnp.concatenate([x[:, :, t], H], axis=1)
        conv = lax.conv_general_dilated(
            inp, w_conv, window_strides=(1, 1),
            padding=[(padding, padding), (padding, padding)],
            dimension_numbers=("NCHW", "OIHW", "NCHW"),
            precision=lax.Precision.HIGHEST)
        conv = conv + b_conv[None, :, None, None]
        i_c, f_c, g_c, o_c = jnp.split(conv, 4, axis=1)
        i_g = jax.nn.sigmoid(i_c + w_ci[None] * C)
        f_g = jax.nn.sigmoid(f_c + w_cf[None] * C)
        C = f_g * C + i_g * act(g_c)
        o_g = jax.nn.sigmoid(o_c + w_co[None] * C)
        H = o_g * act(C)
        outs.append(H)
    return jnp.stack(outs, axis=2)


if __name__ == "__main__":
    # Module config: in_channels=1, out_channels=1, kernel_size=3, padding=1,
    # activation='tanh', frame_size=(16, 16), batch=2, seq_len=8.
    B, Cin, OC, T, Hh, Ww, K, P = 2, 1, 1, 8, 16, 16, 3, 1

    key = jax.random.PRNGKey(0)
    ks = jax.random.split(key, 6)
    x = jax.random.normal(ks[0], (B, Cin, T, Hh, Ww), jnp.float32)
    # Deterministic synthetic parameters (the PyTorch module zero-inits the
    # Hadamard weights; small random values exercise every term).
    w_conv = jax.random.normal(ks[1], (4 * OC, Cin + OC, K, K), jnp.float32) * 0.3
    b_conv = jax.random.normal(ks[2], (4 * OC,), jnp.float32) * 0.1
    w_ci = jax.random.normal(ks[3], (OC, Hh, Ww), jnp.float32) * 0.1
    w_cf = jax.random.normal(ks[4], (OC, Hh, Ww), jnp.float32) * 0.1
    w_co = jax.random.normal(ks[5], (OC, Hh, Ww), jnp.float32) * 0.1

    # time_chunk=4 exercises the chunked grid with h/c carried in VMEM scratch.
    out = convlstm_forward(x, w_conv, b_conv, w_ci, w_cf, w_co,
                           activation="tanh", padding=P, time_chunk=4)
    out = jax.block_until_ready(out)

    ref = convlstm_reference(x, w_conv, b_conv, w_ci, w_cf, w_co,
                             activation="tanh", padding=P)
    np.testing.assert_allclose(np.asarray(out), np.asarray(ref),
                               atol=1e-4, rtol=1e-4)
    print("KERNEL_OK")
</pallas_src>

<mosaic_0001>
module attributes {stable_mosaic.version = 11 : i64} {
  func.func @_convlstm_kernel(%arg0: i32, %arg1: i32, %arg2: memref<1x8x256xf32, #tpu.memory_space<vmem>>, %arg3: memref<9x2x8x256xf32, #tpu.memory_space<vmem>>, %arg4: memref<2x256xf32, #tpu.memory_space<vmem>>, %arg5: memref<2x256xf32, #tpu.memory_space<vmem>>, %arg6: memref<2x256xf32, #tpu.memory_space<vmem>>, %arg7: memref<8x256xf32, #tpu.memory_space<vmem>>, %arg8: memref<1x8x256xf32, #tpu.memory_space<vmem>>, %arg9: memref<2x256xf32, #tpu.memory_space<vmem>>, %arg10: memref<2x256xf32, #tpu.memory_space<vmem>>) attributes {dimension_semantics = [#tpu.dimension_semantics<parallel>, #tpu.dimension_semantics<arbitrary>], iteration_bounds = array<i64: 1, 2>, scalar_prefetch = 0 : i64, scratch_operands = 2 : i64, tpu.core_type = #tpu.core_type<tc>, window_params = [{transform_indices = @transform_0, window_bounds = array<i64: 1, 8, 256>}, {pipeline_mode = #tpu.pipeline_mode<synchronous>, transform_indices = @transform_1, window_bounds = array<i64: 9, 2, 8, 256>}, {pipeline_mode = #tpu.pipeline_mode<synchronous>, transform_indices = @transform_2, window_bounds = array<i64: 2, 256>}, {pipeline_mode = #tpu.pipeline_mode<synchronous>, transform_indices = @transform_3, window_bounds = array<i64: 2, 256>}, {pipeline_mode = #tpu.pipeline_mode<synchronous>, transform_indices = @transform_4, window_bounds = array<i64: 2, 256>}, {pipeline_mode = #tpu.pipeline_mode<synchronous>, transform_indices = @transform_5, window_bounds = array<i64: 8, 256>}, {transform_indices = @transform_6, window_bounds = array<i64: 1, 8, 256>}]} {
    %c0_i32 = arith.constant 0 : i32
    %0 = arith.cmpi eq, %arg1, %c0_i32 : i32
    %1 = arith.extui %0 : i1 to i32
    %c0_i32_0 = arith.constant 0 : i32
    %2 = arith.cmpi ne, %1, %c0_i32_0 : i32
    scf.if %2 {
      %cst_413 = arith.constant 0.000000e+00 : f32
      %543 = vector.broadcast %cst_413 : f32 to vector<2x256xf32>
      %c0_414 = arith.constant 0 : index
      %c0_415 = arith.constant 0 : index
      %544 = vector.load %arg9[%c0_414, %c0_415] : memref<2x256xf32, #tpu.memory_space<vmem>>, vector<2x256xf32>
      tpu.vector_store %arg9[%c0_414, %c0_415], %543 {strides = array<i32>} : memref<2x256xf32, #tpu.memory_space<vmem>>, vector<2x256xf32>,
      %cst_416 = arith.constant 0.000000e+00 : f32
      %545 = vector.broadcast %cst_416 : f32 to vector<2x256xf32>
      %c0_417 = arith.constant 0 : index
      %c0_418 = arith.constant 0 : index
      %546 = vector.load %arg10[%c0_417, %c0_418] : memref<2x256xf32, #tpu.memory_space<vmem>>, vector<2x256xf32>
      tpu.vector_store %arg10[%c0_417, %c0_418], %545 {strides = array<i32>} : memref<2x256xf32, #tpu.memory_space<vmem>>, vector<2x256xf32>,
    } else {
    }
    %c0 = arith.constant 0 : index
    %c0_1 = arith.constant 0 : index
    %3 = vector.load %arg9[%c0, %c0_1] : memref<2x256xf32, #tpu.memory_space<vmem>>, vector<2x256xf32>
    %c0_2 = arith.constant 0 : index
    %c0_3 = arith.constant 0 : index
    %4 = vector.load %arg10[%c0_2, %c0_3] : memref<2x256xf32, #tpu.memory_space<vmem>>, vector<2x256xf32>
    %c0_i32_4 = arith.constant 0 : i32
    %c2_i32 = arith.constant 2 : i32
    %5 = arith.muli %c0_i32_4, %c2_i32 : i32
    %c0_5 = arith.constant 0 : index
    %6 = arith.index_cast %5 : i32 to index
    %c0_6 = arith.constant 0 : index
    %7 = vector.load %arg2[%c0_5, %6, %c0_6] : memref<1x8x256xf32, #tpu.memory_space<vmem>>, vector<1x2x256xf32>
    %8 = vector.shape_cast %7 : vector<1x2x256xf32> to vector<2x256xf32>
    %c0_7 = arith.constant 0 : index
    %c0_8 = arith.constant 0 : index
    %9 = vector.load %arg7[%c0_7, %c0_8] : memref<8x256xf32, #tpu.memory_space<vmem>>, vector<8x256xf32>
    %10 = tpu.concatenate %8, %8, %8, %8 in 0 : vector<2x256xf32>, vector<2x256xf32>, vector<2x256xf32>, vector<2x256xf32> -> vector<8x256xf32>
    %c0_9 = arith.constant 0 : index
    %c0_10 = arith.constant 0 : index
    %c0_11 = arith.constant 0 : index
    %c0_12 = arith.constant 0 : index
    %11 = vector.load %arg3[%c0_9, %c0_10, %c0_11, %c0_12] : memref<9x2x8x256xf32, #tpu.memory_space<vmem>>, vector<1x1x8x256xf32>
    %12 = vector.shape_cast %11 : vector<1x1x8x256xf32> to vector<8x256xf32>
    %c17_i32 = arith.constant 17 : i32
    %13 = tpu.dynamic_rotate %10 by %c17_i32 dim 1 : vector<8x256xf32>, i32 -> vector<8x256xf32>
    %14 = arith.mulf %12, %13 : vector<8x256xf32>
    %15 = arith.addf %9, %14 : vector<8x256xf32>
    %c1 = arith.constant 1 : index
    %c0_13 = arith.constant 0 : index
    %c0_14 = arith.constant 0 : index
    %c0_15 = arith.constant 0 : index
    %16 = vector.load %arg3[%c1, %c0_13, %c0_14, %c0_15] : memref<9x2x8x256xf32, #tpu.memory_space<vmem>>, vector<1x1x8x256xf32>
    %17 = vector.shape_cast %16 : vector<1x1x8x256xf32> to vector<8x256xf32>
    %c16_i32 = arith.constant 16 : i32
    %18 = tpu.dynamic_rotate %10 by %c16_i32 dim 1 : vector<8x256xf32>, i32 -> vector<8x256xf32>
    %19 = arith.mulf %17, %18 : vector<8x256xf32>
    %20 = arith.addf %15, %19 : vector<8x256xf32>
    %c2 = arith.constant 2 : index
    %c0_16 = arith.constant 0 : index
    %c0_17 = arith.constant 0 : index
    %c0_18 = arith.constant 0 : index
    %21 = vector.load %arg3[%c2, %c0_16, %c0_17, %c0_18] : memref<9x2x8x256xf32, #tpu.memory_space<vmem>>, vector<1x1x8x256xf32>
    %22 = vector.shape_cast %21 : vector<1x1x8x256xf32> to vector<8x256xf32>
    %c15_i32 = arith.constant 15 : i32
    %23 = tpu.dynamic_rotate %10 by %c15_i32 dim 1 : vector<8x256xf32>, i32 -> vector<8x256xf32>
    %24 = arith.mulf %22, %23 : vector<8x256xf32>
    %25 = arith.addf %20, %24 : vector<8x256xf32>
    %c3 = arith.constant 3 : index
    %c0_19 = arith.constant 0 : index
    %c0_20 = arith.constant 0 : index
    %c0_21 = arith.constant 0 : index
    %26 = vector.load %arg3[%c3, %c0_19, %c0_20, %c0_21] : memref<9x2x8x256xf32, #tpu.memory_space<vmem>>, vector<1x1x8x256xf32>
    %27 = vector.shape_cast %26 : vector<1x1x8x256xf32> to vector<8x256xf32>
    %c1_i32 = arith.constant 1 : i32
    %28 = tpu.dynamic_rotate %10 by %c1_i32 dim 1 : vector<8x256xf32>, i32 -> vector<8x256xf32>
    %29 = arith.mulf %27, %28 : vector<8x256xf32>
    %30 = arith.addf %25, %29 : vector<8x256xf32>
    %c4 = arith.constant 4 : index
    %c0_22 = arith.constant 0 : index
    %c0_23 = arith.constant 0 : index
    %c0_24 = arith.constant 0 : index
    %31 = vector.load %arg3[%c4, %c0_22, %c0_23, %c0_24] : memref<9x2x8x256xf32, #tpu.memory_space<vmem>>, vector<1x1x8x256xf32>
    %32 = vector.shape_cast %31 : vector<1x1x8x256xf32> to vector<8x256xf32>
    %33 = arith.mulf %32, %10 : vector<8x256xf32>
    %34 = arith.addf %30, %33 : vector<8x256xf32>
    %c5 = arith.constant 5 : index
    %c0_25 = arith.constant 0 : index
    %c0_26 = arith.constant 0 : index
    %c0_27 = arith.constant 0 : index
    %35 = vector.load %arg3[%c5, %c0_25, %c0_26, %c0_27] : memref<9x2x8x256xf32, #tpu.memory_space<vmem>>, vector<1x1x8x256xf32>
    %36 = vector.shape_cast %35 : vector<1x1x8x256xf32> to vector<8x256xf32>
    %c255_i32 = arith.constant 255 : i32
    %37 = tpu.dynamic_rotate %10 by %c255_i32 dim 1 : vector<8x256xf32>, i32 -> vector<8x256xf32>
    %38 = arith.mulf %36, %37 : vector<8x256xf32>
    %39 = arith.addf %34, %38 : vector<8x256xf32>
    %c6 = arith.constant 6 : index
    %c0_28 = arith.constant 0 : index
    %c0_29 = arith.constant 0 : index
    %c0_30 = arith.constant 0 : index
    %40 = vector.load %arg3[%c6, %c0_28, %c0_29, %c0_30] : memref<9x2x8x256xf32, #tpu.memory_space<vmem>>, vector<1x1x8x256xf32>
    %41 = vector.shape_cast %40 : vector<1x1x8x256xf32> to vector<8x256xf32>
    %c241_i32 = arith.constant 241 : i32
    %42 = tpu.dynamic_rotate %10 by %c241_i32 dim 1 : vector<8x256xf32>, i32 -> vector<8x256xf32>
    %43 = arith.mulf %41, %42 : vector<8x256xf32>
    %44 = arith.addf %39, %43 : vector<8x256xf32>
    %c7 = arith.constant 7 : index
    %c0_31 = arith.constant 0 : index
    %c0_32 = arith.constant 0 : index
    %c0_33 = arith.constant 0 : index
    %45 = vector.load %arg3[%c7, %c0_31, %c0_32, %c0_33] : memref<9x2x8x256xf32, #tpu.memory_space<vmem>>, vector<1x1x8x256xf32>
    %46 = vector.shape_cast %45 : vector<1x1x8x256xf32> to vector<8x256xf32>
    %c240_i32 = arith.constant 240 : i32
    %47 = tpu.dynamic_rotate %10 by %c240_i32 dim 1 : vector<8x256xf32>, i32 -> vector<8x256xf32>
    %48 = arith.mulf %46, %47 : vector<8x256xf32>
    %49 = arith.addf %44, %48 : vector<8x256xf32>
    %c8 = arith.constant 8 : index
    %c0_34 = arith.constant 0 : index
    %c0_35 = arith.constant 0 : index
    %c0_36 = arith.constant 0 : index
    %50 = vector.load %arg3[%c8, %c0_34, %c0_35, %c0_36] : memref<9x2x8x256xf32, #tpu.memory_space<vmem>>, vector<1x1x8x256xf32>
    %51 = vector.shape_cast %50 : vector<1x1x8x256xf32> to vector<8x256xf32>
    %c239_i32 = arith.constant 239 : i32
    %52 = tpu.dynamic_rotate %10 by %c239_i32 dim 1 : vector<8x256xf32>, i32 -> vector<8x256xf32>
    %53 = arith.mulf %51, %52 : vector<8x256xf32>
    %54 = arith.addf %49, %53 : vector<8x256xf32>
    %55 = tpu.concatenate %3, %3, %3, %3 in 0 : vector<2x256xf32>, vector<2x256xf32>, vector<2x256xf32>, vector<2x256xf32> -> vector<8x256xf32>
    %c0_37 = arith.constant 0 : index
    %c1_38 = arith.constant 1 : index
    %c0_39 = arith.constant 0 : index
    %c0_40 = arith.constant 0 : index
    %56 = vector.load %arg3[%c0_37, %c1_38, %c0_39, %c0_40] : memref<9x2x8x256xf32, #tpu.memory_space<vmem>>, vector<1x1x8x256xf32>
    %57 = vector.shape_cast %56 : vector<1x1x8x256xf32> to vector<8x256xf32>
    %c17_i32_41 = arith.constant 17 : i32
    %58 = tpu.dynamic_rotate %55 by %c17_i32_41 dim 1 : vector<8x256xf32>, i32 -> vector<8x256xf32>
    %59 = arith.mulf %57, %58 : vector<8x256xf32>
    %60 = arith.addf %54, %59 : vector<8x256xf32>
    %c1_42 = arith.constant 1 : index
    %c1_43 = arith.constant 1 : index
    %c0_44 = arith.constant 0 : index
    %c0_45 = arith.constant 0 : index
    %61 = vector.load %arg3[%c1_42, %c1_43, %c0_44, %c0_45] : memref<9x2x8x256xf32, #tpu.memory_space<vmem>>, vector<1x1x8x256xf32>
    %62 = vector.shape_cast %61 : vector<1x1x8x256xf32> to vector<8x256xf32>
    %c16_i32_46 = arith.constant 16 : i32
    %63 = tpu.dynamic_rotate %55 by %c16_i32_46 dim 1 : vector<8x256xf32>, i32 -> vector<8x256xf32>
    %64 = arith.mulf %62, %63 : vector<8x256xf32>
    %65 = arith.addf %60, %64 : vector<8x256xf32>
    %c2_47 = arith.constant 2 : index
    %c1_48 = arith.constant 1 : index
    %c0_49 = arith.constant 0 : index
    %c0_50 = arith.constant 0 : index
    %66 = vector.load %arg3[%c2_47, %c1_48, %c0_49, %c0_50] : memref<9x2x8x256xf32, #tpu.memory_space<vmem>>, vector<1x1x8x256xf32>
    %67 = vector.shape_cast %66 : vector<1x1x8x256xf32> to vector<8x256xf32>
    %c15_i32_51 = arith.constant 15 : i32
    %68 = tpu.dynamic_rotate %55 by %c15_i32_51 dim 1 : vector<8x256xf32>, i32 -> vector<8x256xf32>
    %69 = arith.mulf %67, %68 : vector<8x256xf32>
    %70 = arith.addf %65, %69 : vector<8x256xf32>
    %c3_52 = arith.constant 3 : index
    %c1_53 = arith.constant 1 : index
    %c0_54 = arith.constant 0 : index
    %c0_55 = arith.constant 0 : index
    %71 = vector.load %arg3[%c3_52, %c1_53, %c0_54, %c0_55] : memref<9x2x8x256xf32, #tpu.memory_space<vmem>>, vector<1x1x8x256xf32>
    %72 = vector.shape_cast %71 : vector<1x1x8x256xf32> to vector<8x256xf32>
    %c1_i32_56 = arith.constant 1 : i32
    %73 = tpu.dynamic_rotate %55 by %c1_i32_56 dim 1 : vector<8x256xf32>, i32 -> vector<8x256xf32>
    %74 = arith.mulf %72, %73 : vector<8x256xf32>
    %75 = arith.addf %70, %74 : vector<8x256xf32>
    %c4_57 = arith.constant 4 : index
    %c1_58 = arith.constant 1 : index
    %c0_59 = arith.constant 0 : index
    %c0_60 = arith.constant 0 : index
    %76 = vector.load %arg3[%c4_57, %c1_58, %c0_59, %c0_60] : memref<9x2x8x256xf32, #tpu.memory_space<vmem>>, vector<1x1x8x256xf32>
    %77 = vector.shape_cast %76 : vector<1x1x8x256xf32> to vector<8x256xf32>
    %78 = arith.mulf %77, %55 : vector<8x256xf32>
    %79 = arith.addf %75, %78 : vector<8x256xf32>
    %c5_61 = arith.constant 5 : index
    %c1_62 = arith.constant 1 : index
    %c0_63 = arith.constant 0 : index
    %c0_64 = arith.constant 0 : index
    %80 = vector.load %arg3[%c5_61, %c1_62, %c0_63, %c0_64] : memref<9x2x8x256xf32, #tpu.memory_space<vmem>>, vector<1x1x8x256xf32>
    %81 = vector.shape_cast %80 : vector<1x1x8x256xf32> to vector<8x256xf32>
    %c255_i32_65 = arith.constant 255 : i32
    %82 = tpu.dynamic_rotate %55 by %c255_i32_65 dim 1 : vector<8x256xf32>, i32 -> vector<8x256xf32>
    %83 = arith.mulf %81, %82 : vector<8x256xf32>
    %84 = arith.addf %79, %83 : vector<8x256xf32>
    %c6_66 = arith.constant 6 : index
    %c1_67 = arith.constant 1 : index
    %c0_68 = arith.constant 0 : index
    %c0_69 = arith.constant 0 : index
    %85 = vector.load %arg3[%c6_66, %c1_67, %c0_68, %c0_69] : memref<9x2x8x256xf32, #tpu.memory_space<vmem>>, vector<1x1x8x256xf32>
    %86 = vector.shape_cast %85 : vector<1x1x8x256xf32> to vector<8x256xf32>
    %c241_i32_70 = arith.constant 241 : i32
    %87 = tpu.dynamic_rotate %55 by %c241_i32_70 dim 1 : vector<8x256xf32>, i32 -> vector<8x256xf32>
    %88 = arith.mulf %86, %87 : vector<8x256xf32>
    %89 = arith.addf %84, %88 : vector<8x256xf32>
    %c7_71 = arith.constant 7 : index
    %c1_72 = arith.constant 1 : index
    %c0_73 = arith.constant 0 : index
    %c0_74 = arith.constant 0 : index
    %90 = vector.load %arg3[%c7_71, %c1_72, %c0_73, %c0_74] : memref<9x2x8x256xf32, #tpu.memory_space<vmem>>, vector<1x1x8x256xf32>
    %91 = vector.shape_cast %90 : vector<1x1x8x256xf32> to vector<8x256xf32>
    %c240_i32_75 = arith.constant 240 : i32
    %92 = tpu.dynamic_rotate %55 by %c240_i32_75 dim 1 : vector<8x256xf32>, i32 -> vector<8x256xf32>
    %93 = arith.mulf %91, %92 : vector<8x256xf32>
    %94 = arith.addf %89, %93 : vector<8x256xf32>
    %c8_76 = arith.constant 8 : index
    %c1_77 = arith.constant 1 : index
    %c0_78 = arith.constant 0 : index
    %c0_79 = arith.constant 0 : index
    %95 = vector.load %arg3[%c8_76, %c1_77, %c0_78, %c0_79] : memref<9x2x8x256xf32, #tpu.memory_space<vmem>>, vector<1x1x8x256xf32>
    %96 = vector.shape_cast %95 : vector<1x1x8x256xf32> to vector<8x256xf32>
    %c239_i32_80 = arith.constant 239 : i32
    %97 = tpu.dynamic_rotate %55 by %c239_i32_80 dim 1 : vector<8x256xf32>, i32 -> vector<8x256xf32>
    %98 = arith.mulf %96, %97 : vector<8x256xf32>
    %99 = arith.addf %94, %98 : vector<8x256xf32>
    %100 = vector.extract_strided_slice %99 {offsets = [0, 0], sizes = [2, 256], strides = [1, 1]} : vector<8x256xf32> to vector<2x256xf32>
    %101 = vector.extract_strided_slice %99 {offsets = [2, 0], sizes = [2, 256], strides = [1, 1]} : vector<8x256xf32> to vector<2x256xf32>
    %102 = vector.extract_strided_slice %99 {offsets = [4, 0], sizes = [2, 256], strides = [1, 1]} : vector<8x256xf32> to vector<2x256xf32>
    %103 = vector.extract_strided_slice %99 {offsets = [6, 0], sizes = [2, 256], strides = [1, 1]} : vector<8x256xf32> to vector<2x256xf32>
    %c0_81 = arith.constant 0 : index
    %c0_82 = arith.constant 0 : index
    %104 = vector.load %arg4[%c0_81, %c0_82] : memref<2x256xf32, #tpu.memory_space<vmem>>, vector<2x256xf32>
    %105 = arith.mulf %104, %4 : vector<2x256xf32>
    %106 = arith.addf %100, %105 : vector<2x256xf32>
    %107 = arith.negf %106 : vector<2x256xf32>
    %108 = math.exp %107 : vector<2x256xf32>
    %cst = arith.constant 1.000000e+00 : f32
    %109 = vector.broadcast %cst : f32 to vector<2x256xf32>
    %110 = arith.addf %109, %108 : vector<2x256xf32>
    %111 = arith.divf %109, %110 : vector<2x256xf32>
    %c0_83 = arith.constant 0 : index
    %c0_84 = arith.constant 0 : index
    %112 = vector.load %arg5[%c0_83, %c0_84] : memref<2x256xf32, #tpu.memory_space<vmem>>, vector<2x256xf32>
    %113 = arith.mulf %112, %4 : vector<2x256xf32>
    %114 = arith.addf %101, %113 : vector<2x256xf32>
    %115 = arith.negf %114 : vector<2x256xf32>
    %116 = math.exp %115 : vector<2x256xf32>
    %cst_85 = arith.constant 1.000000e+00 : f32
    %117 = vector.broadcast %cst_85 : f32 to vector<2x256xf32>
    %118 = arith.addf %117, %116 : vector<2x256xf32>
    %119 = arith.divf %117, %118 : vector<2x256xf32>
    %120 = arith.mulf %119, %4 : vector<2x256xf32>
    %121 = math.tanh %102 : vector<2x256xf32>
    %122 = arith.mulf %111, %121 : vector<2x256xf32>
    %123 = arith.addf %120, %122 : vector<2x256xf32>
    %c0_86 = arith.constant 0 : index
    %c0_87 = arith.constant 0 : index
    %124 = vector.load %arg6[%c0_86, %c0_87] : memref<2x256xf32, #tpu.memory_space<vmem>>, vector<2x256xf32>
    %125 = arith.mulf %124, %123 : vector<2x256xf32>
    %126 = arith.addf %103, %125 : vector<2x256xf32>
    %127 = arith.negf %126 : vector<2x256xf32>
    %128 = math.exp %127 : vector<2x256xf32>
    %cst_88 = arith.constant 1.000000e+00 : f32
    %129 = vector.broadcast %cst_88 : f32 to vector<2x256xf32>
    %130 = arith.addf %129, %128 : vector<2x256xf32>
    %131 = arith.divf %129, %130 : vector<2x256xf32>
    %132 = math.tanh %123 : vector<2x256xf32>
    %133 = arith.mulf %131, %132 : vector<2x256xf32>
    %c2_i32_89 = arith.constant 2 : i32
    %134 = arith.muli %c0_i32_4, %c2_i32_89 : i32
    %c0_90 = arith.constant 0 : index
    %135 = arith.index_cast %134 : i32 to index
    %c0_91 = arith.constant 0 : index
    %136 = vector.load %arg8[%c0_90, %135, %c0_91] : memref<1x8x256xf32, #tpu.memory_space<vmem>>, vector<1x2x256xf32>
    %137 = vector.shape_cast %136 : vector<1x2x256xf32> to vector<2x256xf32>
    %138 = vector.shape_cast %133 : vector<2x256xf32> to vector<1x2x256xf32>
    tpu.vector_store %arg8[%c0_90, %135, %c0_91], %138 {strides = array<i32>} : memref<1x8x256xf32, #tpu.memory_space<vmem>>, vector<1x2x256xf32>,
    %c1_i32_92 = arith.constant 1 : i32
    %c2_i32_93 = arith.constant 2 : i32
    %139 = arith.muli %c1_i32_92, %c2_i32_93 : i32
    %c0_94 = arith.constant 0 : index
    %140 = arith.index_cast %139 : i32 to index
    %c0_95 = arith.constant 0 : index
    %141 = vector.load %arg2[%c0_94, %140, %c0_95] : memref<1x8x256xf32, #tpu.memory_space<vmem>>, vector<1x2x256xf32>
    %142 = vector.shape_cast %141 : vector<1x2x256xf32> to vector<2x256xf32>
    %c0_96 = arith.constant 0 : index
    %c0_97 = arith.constant 0 : index
    %143 = vector.load %arg7[%c0_96, %c0_97] : memref<8x256xf32, #tpu.memory_space<vmem>>, vector<8x256xf32>
    %144 = tpu.concatenate %142, %142, %142, %142 in 0 : vector<2x256xf32>, vector<2x256xf32>, vector<2x256xf32>, vector<2x256xf32> -> vector<8x256xf32>
    %c0_98 = arith.constant 0 : index
    %c0_99 = arith.constant 0 : index
    %c0_100 = arith.constant 0 : index
    %c0_101 = arith.constant 0 : index
    %145 = vector.load %arg3[%c0_98, %c0_99, %c0_100, %c0_101] : memref<9x2x8x256xf32, #tpu.memory_space<vmem>>, vector<1x1x8x256xf32>
    %146 = vector.shape_cast %145 : vector<1x1x8x256xf32> to vector<8x256xf32>
    %c17_i32_102 = arith.constant 17 : i32
    %147 = tpu.dynamic_rotate %144 by %c17_i32_102 dim 1 : vector<8x256xf32>, i32 -> vector<8x256xf32>
    %148 = arith.mulf %146, %147 : vector<8x256xf32>
    %149 = arith.addf %143, %148 : vector<8x256xf32>
    %c1_103 = arith.constant 1 : index
    %c0_104 = arith.constant 0 : index
    %c0_105 = arith.constant 0 : index
    %c0_106 = arith.constant 0 : index
    %150 = vector.load %arg3[%c1_103, %c0_104, %c0_105, %c0_106] : memref<9x2x8x256xf32, #tpu.memory_space<vmem>>, vector<1x1x8x256xf32>
    %151 = vector.shape_cast %150 : vector<1x1x8x256xf32> to vector<8x256xf32>
    %c16_i32_107 = arith.constant 16 : i32
    %152 = tpu.dynamic_rotate %144 by %c16_i32_107 dim 1 : vector<8x256xf32>, i32 -> vector<8x256xf32>
    %153 = arith.mulf %151, %152 : vector<8x256xf32>
    %154 = arith.addf %149, %153 : vector<8x256xf32>
    %c2_108 = arith.constant 2 : index
    %c0_109 = arith.constant 0 : index
    %c0_110 = arith.constant 0 : index
    %c0_111 = arith.constant 0 : index
    %155 = vector.load %arg3[%c2_108, %c0_109, %c0_110, %c0_111] : memref<9x2x8x256xf32, #tpu.memory_space<vmem>>, vector<1x1x8x256xf32>
    %156 = vector.shape_cast %155 : vector<1x1x8x256xf32> to vector<8x256xf32>
    %c15_i32_112 = arith.constant 15 : i32
    %157 = tpu.dynamic_rotate %144 by %c15_i32_112 dim 1 : vector<8x256xf32>, i32 -> vector<8x256xf32>
    %158 = arith.mulf %156, %157 : vector<8x256xf32>
    %159 = arith.addf %154, %158 : vector<8x256xf32>
    %c3_113 = arith.constant 3 : index
    %c0_114 = arith.constant 0 : index
    %c0_115 = arith.constant 0 : index
    %c0_116 = arith.constant 0 : index
    %160 = vector.load %arg3[%c3_113, %c0_114, %c0_115, %c0_116] : memref<9x2x8x256xf32, #tpu.memory_space<vmem>>, vector<1x1x8x256xf32>
    %161 = vector.shape_cast %160 : vector<1x1x8x256xf32> to vector<8x256xf32>
    %c1_i32_117 = arith.constant 1 : i32
    %162 = tpu.dynamic_rotate %144 by %c1_i32_117 dim 1 : vector<8x256xf32>, i32 -> vector<8x256xf32>
    %163 = arith.mulf %161, %162 : vector<8x256xf32>
    %164 = arith.addf %159, %163 : vector<8x256xf32>
    %c4_118 = arith.constant 4 : index
    %c0_119 = arith.constant 0 : index
    %c0_120 = arith.constant 0 : index
    %c0_121 = arith.constant 0 : index
    %165 = vector.load %arg3[%c4_118, %c0_119, %c0_120, %c0_121] : memref<9x2x8x256xf32, #tpu.memory_space<vmem>>, vector<1x1x8x256xf32>
    %166 = vector.shape_cast %165 : vector<1x1x8x256xf32> to vector<8x256xf32>
    %167 = arith.mulf %166, %144 : vector<8x256xf32>
    %168 = arith.addf %164, %167 : vector<8x256xf32>
    %c5_122 = arith.constant 5 : index
    %c0_123 = arith.constant 0 : index
    %c0_124 = arith.constant 0 : index
    %c0_125 = arith.constant 0 : index
    %169 = vector.load %arg3[%c5_122, %c0_123, %c0_124, %c0_125] : memref<9x2x8x256xf32, #tpu.memory_space<vmem>>, vector<1x1x8x256xf32>
    %170 = vector.shape_cast %169 : vector<1x1x8x256xf32> to vector<8x256xf32>
    %c255_i32_126 = arith.constant 255 : i32
    %171 = tpu.dynamic_rotate %144 by %c255_i32_126 dim 1 : vector<8x256xf32>, i32 -> vector<8x256xf32>
    %172 = arith.mulf %170, %171 : vector<8x256xf32>
    %173 = arith.addf %168, %172 : vector<8x256xf32>
    %c6_127 = arith.constant 6 : index
    %c0_128 = arith.constant 0 : index
    %c0_129 = arith.constant 0 : index
    %c0_130 = arith.constant 0 : index
    %174 = vector.load %arg3[%c6_127, %c0_128, %c0_129, %c0_130] : memref<9x2x8x256xf32, #tpu.memory_space<vmem>>, vector<1x1x8x256xf32>
    %175 = vector.shape_cast %174 : vector<1x1x8x256xf32> to vector<8x256xf32>
    %c241_i32_131 = arith.constant 241 : i32
    %176 = tpu.dynamic_rotate %144 by %c241_i32_131 dim 1 : vector<8x256xf32>, i32 -> vector<8x256xf32>
    %177 = arith.mulf %175, %176 : vector<8x256xf32>
    %178 = arith.addf %173, %177 : vector<8x256xf32>
    %c7_132 = arith.constant 7 : index
    %c0_133 = arith.constant 0 : index
    %c0_134 = arith.constant 0 : index
    %c0_135 = arith.constant 0 : index
    %179 = vector.load %arg3[%c7_132, %c0_133, %c0_134, %c0_135] : memref<9x2x8x256xf32, #tpu.memory_space<vmem>>, vector<1x1x8x256xf32>
    %180 = vector.shape_cast %179 : vector<1x1x8x256xf32> to vector<8x256xf32>
    %c240_i32_136 = arith.constant 240 : i32
    %181 = tpu.dynamic_rotate %144 by %c240_i32_136 dim 1 : vector<8x256xf32>, i32 -> vector<8x256xf32>
    %182 = arith.mulf %180, %181 : vector<8x256xf32>
    %183 = arith.addf %178, %182 : vector<8x256xf32>
    %c8_137 = arith.constant 8 : index
    %c0_138 = arith.constant 0 : index
    %c0_139 = arith.constant 0 : index
    %c0_140 = arith.constant 0 : index
    %184 = vector.load %arg3[%c8_137, %c0_138, %c0_139, %c0_140] : memref<9x2x8x256xf32, #tpu.memory_space<vmem>>, vector<1x1x8x256xf32>
    %185 = vector.shape_cast %184 : vector<1x1x8x256xf32> to vector<8x256xf32>
    %c239_i32_141 = arith.constant 239 : i32
    %186 = tpu.dynamic_rotate %144 by %c239_i32_141 dim 1 : vector<8x256xf32>, i32 -> vector<8x256xf32>
    %187 = arith.mulf %185, %186 : vector<8x256xf32>
    %188 = arith.addf %183, %187 : vector<8x256xf32>
    %189 = tpu.concatenate %133, %133, %133, %133 in 0 : vector<2x256xf32>, vector<2x256xf32>, vector<2x256xf32>, vector<2x256xf32> -> vector<8x256xf32>
    %c0_142 = arith.constant 0 : index
    %c1_143 = arith.constant 1 : index
    %c0_144 = arith.constant 0 : index
    %c0_145 = arith.constant 0 : index
    %190 = vector.load %arg3[%c0_142, %c1_143, %c0_144, %c0_145] : memref<9x2x8x256xf32, #tpu.memory_space<vmem>>, vector<1x1x8x256xf32>
    %191 = vector.shape_cast %190 : vector<1x1x8x256xf32> to vector<8x256xf32>
    %c17_i32_146 = arith.constant 17 : i32
    %192 = tpu.dynamic_rotate %189 by %c17_i32_146 dim 1 : vector<8x256xf32>, i32 -> vector<8x256xf32>
    %193 = arith.mulf %191, %192 : vector<8x256xf32>
    %194 = arith.addf %188, %193 : vector<8x256xf32>
    %c1_147 = arith.constant 1 : index
    %c1_148 = arith.constant 1 : index
    %c0_149 = arith.constant 0 : index
    %c0_150 = arith.constant 0 : index
    %195 = vector.load %arg3[%c1_147, %c1_148, %c0_149, %c0_150] : memref<9x2x8x256xf32, #tpu.memory_space<vmem>>, vector<1x1x8x256xf32>
    %196 = vector.shape_cast %195 : vector<1x1x8x256xf32> to vector<8x256xf32>
    %c16_i32_151 = arith.constant 16 : i32
    %197 = tpu.dynamic_rotate %189 by %c16_i32_151 dim 1 : vector<8x256xf32>, i32 -> vector<8x256xf32>
    %198 = arith.mulf %196, %197 : vector<8x256xf32>
    %199 = arith.addf %194, %198 : vector<8x256xf32>
    %c2_152 = arith.constant 2 : index
    %c1_153 = arith.constant 1 : index
    %c0_154 = arith.constant 0 : index
    %c0_155 = arith.constant 0 : index
    %200 = vector.load %arg3[%c2_152, %c1_153, %c0_154, %c0_155] : memref<9x2x8x256xf32, #tpu.memory_space<vmem>>, vector<1x1x8x256xf32>
    %201 = vector.shape_cast %200 : vector<1x1x8x256xf32> to vector<8x256xf32>
    %c15_i32_156 = arith.constant 15 : i32
    %202 = tpu.dynamic_rotate %189 by %c15_i32_156 dim 1 : vector<8x256xf32>, i32 -> vector<8x256xf32>
    %203 = arith.mulf %201, %202 : vector<8x256xf32>
    %204 = arith.addf %199, %203 : vector<8x256xf32>
    %c3_157 = arith.constant 3 : index
    %c1_158 = arith.constant 1 : index
    %c0_159 = arith.constant 0 : index
    %c0_160 = arith.constant 0 : index
    %205 = vector.load %arg3[%c3_157, %c1_158, %c0_159, %c0_160] : memref<9x2x8x256xf32, #tpu.memory_space<vmem>>, vector<1x1x8x256xf32>
    %206 = vector.shape_cast %205 : vector<1x1x8x256xf32> to vector<8x256xf32>
    %c1_i32_161 = arith.constant 1 : i32
    %207 = tpu.dynamic_rotate %189 by %c1_i32_161 dim 1 : vector<8x256xf32>, i32 -> vector<8x256xf32>
    %208 = arith.mulf %206, %207 : vector<8x256xf32>
    %209 = arith.addf %204, %208 : vector<8x256xf32>
    %c4_162 = arith.constant 4 : index
    %c1_163 = arith.constant 1 : index
    %c0_164 = arith.constant 0 : index
    %c0_165 = arith.constant 0 : index
    %210 = vector.load %arg3[%c4_162, %c1_163, %c0_164, %c0_165] : memref<9x2x8x256xf32, #tpu.memory_space<vmem>>, vector<1x1x8x256xf32>
    %211 = vector.shape_cast %210 : vector<1x1x8x256xf32> to vector<8x256xf32>
    %212 = arith.mulf %211, %189 : vector<8x256xf32>
    %213 = arith.addf %209, %212 : vector<8x256xf32>
    %c5_166 = arith.constant 5 : index
    %c1_167 = arith.constant 1 : index
    %c0_168 = arith.constant 0 : index
    %c0_169 = arith.constant 0 : index
    %214 = vector.load %arg3[%c5_166, %c1_167, %c0_168, %c0_169] : memref<9x2x8x256xf32, #tpu.memory_space<vmem>>, vector<1x1x8x256xf32>
    %215 = vector.shape_cast %214 : vector<1x1x8x256xf32> to vector<8x256xf32>
    %c255_i32_170 = arith.constant 255 : i32
    %216 = tpu.dynamic_rotate %189 by %c255_i32_170 dim 1 : vector<8x256xf32>, i32 -> vector<8x256xf32>
    %217 = arith.mulf %215, %216 : vector<8x256xf32>
    %218 = arith.addf %213, %217 : vector<8x256xf32>
    %c6_171 = arith.constant 6 : index
    %c1_172 = arith.constant 1 : index
    %c0_173 = arith.constant 0 : index
    %c0_174 = arith.constant 0 : index
    %219 = vector.load %arg3[%c6_171, %c1_172, %c0_173, %c0_174] : memref<9x2x8x256xf32, #tpu.memory_space<vmem>>, vector<1x1x8x256xf32>
    %220 = vector.shape_cast %219 : vector<1x1x8x256xf32> to vector<8x256xf32>
    %c241_i32_175 = arith.constant 241 : i32
    %221 = tpu.dynamic_rotate %189 by %c241_i32_175 dim 1 : vector<8x256xf32>, i32 -> vector<8x256xf32>
    %222 = arith.mulf %220, %221 : vector<8x256xf32>
    %223 = arith.addf %218, %222 : vector<8x256xf32>
    %c7_176 = arith.constant 7 : index
    %c1_177 = arith.constant 1 : index
    %c0_178 = arith.constant 0 : index
    %c0_179 = arith.constant 0 : index
    %224 = vector.load %arg3[%c7_176, %c1_177, %c0_178, %c0_179] : memref<9x2x8x256xf32, #tpu.memory_space<vmem>>, vector<1x1x8x256xf32>
    %225 = vector.shape_cast %224 : vector<1x1x8x256xf32> to vector<8x256xf32>
    %c240_i32_180 = arith.constant 240 : i32
    %226 = tpu.dynamic_rotate %189 by %c240_i32_180 dim 1 : vector<8x256xf32>, i32 -> vector<8x256xf32>
    %227 = arith.mulf %225, %226 : vector<8x256xf32>
    %228 = arith.addf %223, %227 : vector<8x256xf32>
    %c8_181 = arith.constant 8 : index
    %c1_182 = arith.constant 1 : index
    %c0_183 = arith.constant 0 : index
    %c0_184 = arith.constant 0 : index
    %229 = vector.load %arg3[%c8_181, %c1_182, %c0_183, %c0_184] : memref<9x2x8x256xf32, #tpu.memory_space<vmem>>, vector<1x1x8x256xf32>
    %230 = vector.shape_cast %229 : vector<1x1x8x256xf32> to vector<8x256xf32>
    %c239_i32_185 = arith.constant 239 : i32
    %231 = tpu.dynamic_rotate %189 by %c239_i32_185 dim 1 : vector<8x256xf32>, i32 -> vector<8x256xf32>
    %232 = arith.mulf %230, %231 : vector<8x256xf32>
    %233 = arith.addf %228, %232 : vector<8x256xf32>
    %234 = vector.extract_strided_slice %233 {offsets = [0, 0], sizes = [2, 256], strides = [1, 1]} : vector<8x256xf32> to vector<2x256xf32>
    %235 = vector.extract_strided_slice %233 {offsets = [2, 0], sizes = [2, 256], strides = [1, 1]} : vector<8x256xf32> to vector<2x256xf32>
    %236 = vector.extract_strided_slice %233 {offsets = [4, 0], sizes = [2, 256], strides = [1, 1]} : vector<8x256xf32> to vector<2x256xf32>
    %237 = vector.extract_strided_slice %233 {offsets = [6, 0], sizes = [2, 256], strides = [1, 1]} : vector<8x256xf32> to vector<2x256xf32>
    %c0_186 = arith.constant 0 : index
    %c0_187 = arith.constant 0 : index
    %238 = vector.load %arg4[%c0_186, %c0_187] : memref<2x256xf32, #tpu.memory_space<vmem>>, vector<2x256xf32>
    %239 = arith.mulf %238, %123 : vector<2x256xf32>
    %240 = arith.addf %234, %239 : vector<2x256xf32>
    %241 = arith.negf %240 : vector<2x256xf32>
    %242 = math.exp %241 : vector<2x256xf32>
    %cst_188 = arith.constant 1.000000e+00 : f32
    %243 = vector.broadcast %cst_188 : f32 to vector<2x256xf32>
    %244 = arith.addf %243, %242 : vector<2x256xf32>
    %245 = arith.divf %243, %244 : vector<2x256xf32>
    %c0_189 = arith.constant 0 : index
    %c0_190 = arith.constant 0 : index
    %246 = vector.load %arg5[%c0_189, %c0_190] : memref<2x256xf32, #tpu.memory_space<vmem>>, vector<2x256xf32>
    %247 = arith.mulf %246, %123 : vector<2x256xf32>
    %248 = arith.addf %235, %247 : vector<2x256xf32>
    %249 = arith.negf %248 : vector<2x256xf32>
    %250 = math.exp %249 : vector<2x256xf32>
    %cst_191 = arith.constant 1.000000e+00 : f32
    %251 = vector.broadcast %cst_191 : f32 to vector<2x256xf32>
    %252 = arith.addf %251, %250 : vector<2x256xf32>
    %253 = arith.divf %251, %252 : vector<2x256xf32>
    %254 = arith.mulf %253, %123 : vector<2x256xf32>
    %255 = math.tanh %236 : vector<2x256xf32>
    %256 = arith.mulf %245, %255 : vector<2x256xf32>
    %257 = arith.addf %254, %256 : vector<2x256xf32>
    %c0_192 = arith.constant 0 : index
    %c0_193 = arith.constant 0 : index
    %258 = vector.load %arg6[%c0_192, %c0_193] : memref<2x256xf32, #tpu.memory_space<vmem>>, vector<2x256xf32>
    %259 = arith.mulf %258, %257 : vector<2x256xf32>
    %260 = arith.addf %237, %259 : vector<2x256xf32>
    %261 = arith.negf %260 : vector<2x256xf32>
    %262 = math.exp %261 : vector<2x256xf32>
    %cst_194 = arith.constant 1.000000e+00 : f32
    %263 = vector.broadcast %cst_194 : f32 to vector<2x256xf32>
    %264 = arith.addf %263, %262 : vector<2x256xf32>
    %265 = arith.divf %263, %264 : vector<2x256xf32>
    %266 = math.tanh %257 : vector<2x256xf32>
    %267 = arith.mulf %265, %266 : vector<2x256xf32>
    %c2_i32_195 = arith.constant 2 : i32
    %268 = arith.muli %c1_i32_92, %c2_i32_195 : i32
    %c0_196 = arith.constant 0 : index
    %269 = arith.index_cast %268 : i32 to index
    %c0_197 = arith.constant 0 : index
    %270 = vector.load %arg8[%c0_196, %269, %c0_197] : memref<1x8x256xf32, #tpu.memory_space<vmem>>, vector<1x2x256xf32>
    %271 = vector.shape_cast %270 : vector<1x2x256xf32> to vector<2x256xf32>
    %272 = vector.shape_cast %267 : vector<2x256xf32> to vector<1x2x256xf32>
    tpu.vector_store %arg8[%c0_196, %269, %c0_197], %272 {strides = array<i32>} : memref<1x8x256xf32, #tpu.memory_space<vmem>>, vector<1x2x256xf32>,
    %c2_i32_198 = arith.constant 2 : i32
    %c2_i32_199 = arith.constant 2 : i32
    %273 = arith.muli %c2_i32_198, %c2_i32_199 : i32
    %c0_200 = arith.constant 0 : index
    %274 = arith.index_cast %273 : i32 to index
    %c0_201 = arith.constant 0 : index
    %275 = vector.load %arg2[%c0_200, %274, %c0_201] : memref<1x8x256xf32, #tpu.memory_space<vmem>>, vector<1x2x256xf32>
    %276 = vector.shape_cast %275 : vector<1x2x256xf32> to vector<2x256xf32>
    %c0_202 = arith.constant 0 : index
    %c0_203 = arith.constant 0 : index
    %277 = vector.load %arg7[%c0_202, %c0_203] : memref<8x256xf32, #tpu.memory_space<vmem>>, vector<8x256xf32>
    %278 = tpu.concatenate %276, %276, %276, %276 in 0 : vector<2x256xf32>, vector<2x256xf32>, vector<2x256xf32>, vector<2x256xf32> -> vector<8x256xf32>
    %c0_204 = arith.constant 0 : index
    %c0_205 = arith.constant 0 : index
    %c0_206 = arith.constant 0 : index
    %c0_207 = arith.constant 0 : index
    %279 = vector.load %arg3[%c0_204, %c0_205, %c0_206, %c0_207] : memref<9x2x8x256xf32, #tpu.memory_space<vmem>>, vector<1x1x8x256xf32>
    %280 = vector.shape_cast %279 : vector<1x1x8x256xf32> to vector<8x256xf32>
    %c17_i32_208 = arith.constant 17 : i32
    %281 = tpu.dynamic_rotate %278 by %c17_i32_208 dim 1 : vector<8x256xf32>, i32 -> vector<8x256xf32>
    %282 = arith.mulf %280, %281 : vector<8x256xf32>
    %283 = arith.addf %277, %282 : vector<8x256xf32>
    %c1_209 = arith.constant 1 : index
    %c0_210 = arith.constant 0 : index
    %c0_211 = arith.constant 0 : index
    %c0_212 = arith.constant 0 : index
    %284 = vector.load %arg3[%c1_209, %c0_210, %c0_211, %c0_212] : memref<9x2x8x256xf32, #tpu.memory_space<vmem>>, vector<1x1x8x256xf32>
    %285 = vector.shape_cast %284 : vector<1x1x8x256xf32> to vector<8x256xf32>
    %c16_i32_213 = arith.constant 16 : i32
    %286 = tpu.dynamic_rotate %278 by %c16_i32_213 dim 1 : vector<8x256xf32>, i32 -> vector<8x256xf32>
    %287 = arith.mulf %285, %286 : vector<8x256xf32>
    %288 = arith.addf %283, %287 : vector<8x256xf32>
    %c2_214 = arith.constant 2 : index
    %c0_215 = arith.constant 0 : index
    %c0_216 = arith.constant 0 : index
    %c0_217 = arith.constant 0 : index
    %289 = vector.load %arg3[%c2_214, %c0_215, %c0_216, %c0_217] : memref<9x2x8x256xf32, #tpu.memory_space<vmem>>, vector<1x1x8x256xf32>
    %290 = vector.shape_cast %289 : vector<1x1x8x256xf32> to vector<8x256xf32>
    %c15_i32_218 = arith.constant 15 : i32
    %291 = tpu.dynamic_rotate %278 by %c15_i32_218 dim 1 : vector<8x256xf32>, i32 -> vector<8x256xf32>
    %292 = arith.mulf %290, %291 : vector<8x256xf32>
    %293 = arith.addf %288, %292 : vector<8x256xf32>
    %c3_219 = arith.constant 3 : index
    %c0_220 = arith.constant 0 : index
    %c0_221 = arith.constant 0 : index
    %c0_222 = arith.constant 0 : index
    %294 = vector.load %arg3[%c3_219, %c0_220, %c0_221, %c0_222] : memref<9x2x8x256xf32, #tpu.memory_space<vmem>>, vector<1x1x8x256xf32>
    %295 = vector.shape_cast %294 : vector<1x1x8x256xf32> to vector<8x256xf32>
    %c1_i32_223 = arith.constant 1 : i32
    %296 = tpu.dynamic_rotate %278 by %c1_i32_223 dim 1 : vector<8x256xf32>, i32 -> vector<8x256xf32>
    %297 = arith.mulf %295, %296 : vector<8x256xf32>
    %298 = arith.addf %293, %297 : vector<8x256xf32>
    %c4_224 = arith.constant 4 : index
    %c0_225 = arith.constant 0 : index
    %c0_226 = arith.constant 0 : index
    %c0_227 = arith.constant 0 : index
    %299 = vector.load %arg3[%c4_224, %c0_225, %c0_226, %c0_227] : memref<9x2x8x256xf32, #tpu.memory_space<vmem>>, vector<1x1x8x256xf32>
    %300 = vector.shape_cast %299 : vector<1x1x8x256xf32> to vector<8x256xf32>
    %301 = arith.mulf %300, %278 : vector<8x256xf32>
    %302 = arith.addf %298, %301 : vector<8x256xf32>
    %c5_228 = arith.constant 5 : index
    %c0_229 = arith.constant 0 : index
    %c0_230 = arith.constant 0 : index
    %c0_231 = arith.constant 0 : index
    %303 = vector.load %arg3[%c5_228, %c0_229, %c0_230, %c0_231] : memref<9x2x8x256xf32, #tpu.memory_space<vmem>>, vector<1x1x8x256xf32>
    %304 = vector.shape_cast %303 : vector<1x1x8x256xf32> to vector<8x256xf32>
    %c255_i32_232 = arith.constant 255 : i32
    %305 = tpu.dynamic_rotate %278 by %c255_i32_232 dim 1 : vector<8x256xf32>, i32 -> vector<8x256xf32>
    %306 = arith.mulf %304, %305 : vector<8x256xf32>
    %307 = arith.addf %302, %306 : vector<8x256xf32>
    %c6_233 = arith.constant 6 : index
    %c0_234 = arith.constant 0 : index
    %c0_235 = arith.constant 0 : index
    %c0_236 = arith.constant 0 : index
    %308 = vector.load %arg3[%c6_233, %c0_234, %c0_235, %c0_236] : memref<9x2x8x256xf32, #tpu.memory_space<vmem>>, vector<1x1x8x256xf32>
    %309 = vector.shape_cast %308 : vector<1x1x8x256xf32> to vector<8x256xf32>
    %c241_i32_237 = arith.constant 241 : i32
    %310 = tpu.dynamic_rotate %278 by %c241_i32_237 dim 1 : vector<8x256xf32>, i32 -> vector<8x256xf32>
    %311 = arith.mulf %309, %310 : vector<8x256xf32>
    %312 = arith.addf %307, %311 : vector<8x256xf32>
    %c7_238 = arith.constant 7 : index
    %c0_239 = arith.constant 0 : index
    %c0_240 = arith.constant 0 : index
    %c0_241 = arith.constant 0 : index
    %313 = vector.load %arg3[%c7_238, %c0_239, %c0_240, %c0_241] : memref<9x2x8x256xf32, #tpu.memory_space<vmem>>, vector<1x1x8x256xf32>
    %314 = vector.shape_cast %313 : vector<1x1x8x256xf32> to vector<8x256xf32>
    %c240_i32_242 = arith.constant 240 : i32
    %315 = tpu.dynamic_rotate %278 by %c240_i32_242 dim 1 : vector<8x256xf32>, i32 -> vector<8x256xf32>
    %316 = arith.mulf %314, %315 : vector<8x256xf32>
    %317 = arith.addf %312, %316 : vector<8x256xf32>
    %c8_243 = arith.constant 8 : index
    %c0_244 = arith.constant 0 : index
    %c0_245 = arith.constant 0 : index
    %c0_246 = arith.constant 0 : index
    %318 = vector.load %arg3[%c8_243, %c0_244, %c0_245, %c0_246] : memref<9x2x8x256xf32, #tpu.memory_space<vmem>>, vector<1x1x8x256xf32>
    %319 = vector.shape_cast %318 : vector<1x1x8x256xf32> to vector<8x256xf32>
    %c239_i32_247 = arith.constant 239 : i32
    %320 = tpu.dynamic_rotate %278 by %c239_i32_247 dim 1 : vector<8x256xf32>, i32 -> vector<8x256xf32>
    %321 = arith.mulf %319, %320 : vector<8x256xf32>
    %322 = arith.addf %317, %321 : vector<8x256xf32>
    %323 = tpu.concatenate %267, %267, %267, %267 in 0 : vector<2x256xf32>, vector<2x256xf32>, vector<2x256xf32>, vector<2x256xf32> -> vector<8x256xf32>
    %c0_248 = arith.constant 0 : index
    %c1_249 = arith.constant 1 : index
    %c0_250 = arith.constant 0 : index
    %c0_251 = arith.constant 0 : index
    %324 = vector.load %arg3[%c0_248, %c1_249, %c0_250, %c0_251] : memref<9x2x8x256xf32, #tpu.memory_space<vmem>>, vector<1x1x8x256xf32>
    %325 = vector.shape_cast %324 : vector<1x1x8x256xf32> to vector<8x256xf32>
    %c17_i32_252 = arith.constant 17 : i32
    %326 = tpu.dynamic_rotate %323 by %c17_i32_252 dim 1 : vector<8x256xf32>, i32 -> vector<8x256xf32>
    %327 = arith.mulf %325, %326 : vector<8x256xf32>
    %328 = arith.addf %322, %327 : vector<8x256xf32>
    %c1_253 = arith.constant 1 : index
    %c1_254 = arith.constant 1 : index
    %c0_255 = arith.constant 0 : index
    %c0_256 = arith.constant 0 : index
    %329 = vector.load %arg3[%c1_253, %c1_254, %c0_255, %c0_256] : memref<9x2x8x256xf32, #tpu.memory_space<vmem>>, vector<1x1x8x256xf32>
    %330 = vector.shape_cast %329 : vector<1x1x8x256xf32> to vector<8x256xf32>
    %c16_i32_257 = arith.constant 16 : i32
    %331 = tpu.dynamic_rotate %323 by %c16_i32_257 dim 1 : vector<8x256xf32>, i32 -> vector<8x256xf32>
    %332 = arith.mulf %330, %331 : vector<8x256xf32>
    %333 = arith.addf %328, %332 : vector<8x256xf32>
    %c2_258 = arith.constant 2 : index
    %c1_259 = arith.constant 1 : index
    %c0_260 = arith.constant 0 : index
    %c0_261 = arith.constant 0 : index
    %334 = vector.load %arg3[%c2_258, %c1_259, %c0_260, %c0_261] : memref<9x2x8x256xf32, #tpu.memory_space<vmem>>, vector<1x1x8x256xf32>
    %335 = vector.shape_cast %334 : vector<1x1x8x256xf32> to vector<8x256xf32>
    %c15_i32_262 = arith.constant 15 : i32
    %336 = tpu.dynamic_rotate %323 by %c15_i32_262 dim 1 : vector<8x256xf32>, i32 -> vector<8x256xf32>
    %337 = arith.mulf %335, %336 : vector<8x256xf32>
    %338 = arith.addf %333, %337 : vector<8x256xf32>
    %c3_263 = arith.constant 3 : index
    %c1_264 = arith.constant 1 : index
    %c0_265 = arith.constant 0 : index
    %c0_266 = arith.constant 0 : index
    %339 = vector.load %arg3[%c3_263, %c1_264, %c0_265, %c0_266] : memref<9x2x8x256xf32, #tpu.memory_space<vmem>>, vector<1x1x8x256xf32>
    %340 = vector.shape_cast %339 : vector<1x1x8x256xf32> to vector<8x256xf32>
    %c1_i32_267 = arith.constant 1 : i32
    %341 = tpu.dynamic_rotate %323 by %c1_i32_267 dim 1 : vector<8x256xf32>, i32 -> vector<8x256xf32>
    %342 = arith.mulf %340, %341 : vector<8x256xf32>
    %343 = arith.addf %338, %342 : vector<8x256xf32>
    %c4_268 = arith.constant 4 : index
    %c1_269 = arith.constant 1 : index
    %c0_270 = arith.constant 0 : index
    %c0_271 = arith.constant 0 : index
    %344 = vector.load %arg3[%c4_268, %c1_269, %c0_270, %c0_271] : memref<9x2x8x256xf32, #tpu.memory_space<vmem>>, vector<1x1x8x256xf32>
    %345 = vector.shape_cast %344 : vector<1x1x8x256xf32> to vector<8x256xf32>
    %346 = arith.mulf %345, %323 : vector<8x256xf32>
    %347 = arith.addf %343, %346 : vector<8x256xf32>
    %c5_272 = arith.constant 5 : index
    %c1_273 = arith.constant 1 : index
    %c0_274 = arith.constant 0 : index
    %c0_275 = arith.constant 0 : index
    %348 = vector.load %arg3[%c5_272, %c1_273, %c0_274, %c0_275] : memref<9x2x8x256xf32, #tpu.memory_space<vmem>>, vector<1x1x8x256xf32>
    %349 = vector.shape_cast %348 : vector<1x1x8x256xf32> to vector<8x256xf32>
    %c255_i32_276 = arith.constant 255 : i32
    %350 = tpu.dynamic_rotate %323 by %c255_i32_276 dim 1 : vector<8x256xf32>, i32 -> vector<8x256xf32>
    %351 = arith.mulf %349, %350 : vector<8x256xf32>
    %352 = arith.addf %347, %351 : vector<8x256xf32>
    %c6_277 = arith.constant 6 : index
    %c1_278 = arith.constant 1 : index
    %c0_279 = arith.constant 0 : index
    %c0_280 = arith.constant 0 : index
    %353 = vector.load %arg3[%c6_277, %c1_278, %c0_279, %c0_280] : memref<9x2x8x256xf32, #tpu.memory_space<vmem>>, vector<1x1x8x256xf32>
    %354 = vector.shape_cast %353 : vector<1x1x8x256xf32> to vector<8x256xf32>
    %c241_i32_281 = arith.constant 241 : i32
    %355 = tpu.dynamic_rotate %323 by %c241_i32_281 dim 1 : vector<8x256xf32>, i32 -> vector<8x256xf32>
    %356 = arith.mulf %354, %355 : vector<8x256xf32>
    %357 = arith.addf %352, %356 : vector<8x256xf32>
    %c7_282 = arith.constant 7 : index
    %c1_283 = arith.constant 1 : index
    %c0_284 = arith.constant 0 : index
    %c0_285 = arith.constant 0 : index
    %358 = vector.load %arg3[%c7_282, %c1_283, %c0_284, %c0_285] : memref<9x2x8x256xf32, #tpu.memory_space<vmem>>, vector<1x1x8x256xf32>
    %359 = vector.shape_cast %358 : vector<1x1x8x256xf32> to vector<8x256xf32>
    %c240_i32_286 = arith.constant 240 : i32
    %360 = tpu.dynamic_rotate %323 by %c240_i32_286 dim 1 : vector<8x256xf32>, i32 -> vector<8x256xf32>
    %361 = arith.mulf %359, %360 : vector<8x256xf32>
    %362 = arith.addf %357, %361 : vector<8x256xf32>
    %c8_287 = arith.constant 8 : index
    %c1_288 = arith.constant 1 : index
    %c0_289 = arith.constant 0 : index
    %c0_290 = arith.constant 0 : index
    %363 = vector.load %arg3[%c8_287, %c1_288, %c0_289, %c0_290] : memref<9x2x8x256xf32, #tpu.memory_space<vmem>>, vector<1x1x8x256xf32>
    %364 = vector.shape_cast %363 : vector<1x1x8x256xf32> to vector<8x256xf32>
    %c239_i32_291 = arith.constant 239 : i32
    %365 = tpu.dynamic_rotate %323 by %c239_i32_291 dim 1 : vector<8x256xf32>, i32 -> vector<8x256xf32>
    %366 = arith.mulf %364, %365 : vector<8x256xf32>
    %367 = arith.addf %362, %366 : vector<8x256xf32>
    %368 = vector.extract_strided_slice %367 {offsets = [0, 0], sizes = [2, 256], strides = [1, 1]} : vector<8x256xf32> to vector<2x256xf32>
    %369 = vector.extract_strided_slice %367 {offsets = [2, 0], sizes = [2, 256], strides = [1, 1]} : vector<8x256xf32> to vector<2x256xf32>
    %370 = vector.extract_strided_slice %367 {offsets = [4, 0], sizes = [2, 256], strides = [1, 1]} : vector<8x256xf32> to vector<2x256xf32>
    %371 = vector.extract_strided_slice %367 {offsets = [6, 0], sizes = [2, 256], strides = [1, 1]} : vector<8x256xf32> to vector<2x256xf32>
    %c0_292 = arith.constant 0 : index
    %c0_293 = arith.constant 0 : index
    %372 = vector.load %arg4[%c0_292, %c0_293] : memref<2x256xf32, #tpu.memory_space<vmem>>, vector<2x256xf32>
    %373 = arith.mulf %372, %257 : vector<2x256xf32>
    %374 = arith.addf %368, %373 : vector<2x256xf32>
    %375 = arith.negf %374 : vector<2x256xf32>
    %376 = math.exp %375 : vector<2x256xf32>
    %cst_294 = arith.constant 1.000000e+00 : f32
    %377 = vector.broadcast %cst_294 : f32 to vector<2x256xf32>
    %378 = arith.addf %377, %376 : vector<2x256xf32>
    %379 = arith.divf %377, %378 : vector<2x256xf32>
    %c0_295 = arith.constant 0 : index
    %c0_296 = arith.constant 0 : index
    %380 = vector.load %arg5[%c0_295, %c0_296] : memref<2x256xf32, #tpu.memory_space<vmem>>, vector<2x256xf32>
    %381 = arith.mulf %380, %257 : vector<2x256xf32>
    %382 = arith.addf %369, %381 : vector<2x256xf32>
    %383 = arith.negf %382 : vector<2x256xf32>
    %384 = math.exp %383 : vector<2x256xf32>
    %cst_297 = arith.constant 1.000000e+00 : f32
    %385 = vector.broadcast %cst_297 : f32 to vector<2x256xf32>
    %386 = arith.addf %385, %384 : vector<2x256xf32>
    %387 = arith.divf %385, %386 : vector<2x256xf32>
    %388 = arith.mulf %387, %257 : vector<2x256xf32>
    %389 = math.tanh %370 : vector<2x256xf32>
    %390 = arith.mulf %379, %389 : vector<2x256xf32>
    %391 = arith.addf %388, %390 : vector<2x256xf32>
    %c0_298 = arith.constant 0 : index
    %c0_299 = arith.constant 0 : index
    %392 = vector.load %arg6[%c0_298, %c0_299] : memref<2x256xf32, #tpu.memory_space<vmem>>, vector<2x256xf32>
    %393 = arith.mulf %392, %391 : vector<2x256xf32>
    %394 = arith.addf %371, %393 : vector<2x256xf32>
    %395 = arith.negf %394 : vector<2x256xf32>
    %396 = math.exp %395 : vector<2x256xf32>
    %cst_300 = arith.constant 1.000000e+00 : f32
    %397 = vector.broadcast %cst_300 : f32 to vector<2x256xf32>
    %398 = arith.addf %397, %396 : vector<2x256xf32>
    %399 = arith.divf %397, %398 : vector<2x256xf32>
    %400 = math.tanh %391 : vector<2x256xf32>
    %401 = arith.mulf %399, %400 : vector<2x256xf32>
    %c2_i32_301 = arith.constant 2 : i32
    %402 = arith.muli %c2_i32_198, %c2_i32_301 : i32
    %c0_302 = arith.constant 0 : index
    %403 = arith.index_cast %402 : i32 to index
    %c0_303 = arith.constant 0 : index
    %404 = vector.load %arg8[%c0_302, %403, %c0_303] : memref<1x8x256xf32, #tpu.memory_space<vmem>>, vector<1x2x256xf32>
    %405 = vector.shape_cast %404 : vector<1x2x256xf32> to vector<2x256xf32>
    %406 = vector.shape_cast %401 : vector<2x256xf32> to vector<1x2x256xf32>
    tpu.vector_store %arg8[%c0_302, %403, %c0_303], %406 {strides = array<i32>} : memref<1x8x256xf32, #tpu.memory_space<vmem>>, vector<1x2x256xf32>,
    %c3_i32 = arith.constant 3 : i32
    %c2_i32_304 = arith.constant 2 : i32
    %407 = arith.muli %c3_i32, %c2_i32_304 : i32
    %c0_305 = arith.constant 0 : index
    %408 = arith.index_cast %407 : i32 to index
    %c0_306 = arith.constant 0 : index
    %409 = vector.load %arg2[%c0_305, %408, %c0_306] : memref<1x8x256xf32, #tpu.memory_space<vmem>>, vector<1x2x256xf32>
    %410 = vector.shape_cast %409 : vector<1x2x256xf32> to vector<2x256xf32>
    %c0_307 = arith.constant 0 : index
    %c0_308 = arith.constant 0 : index
    %411 = vector.load %arg7[%c0_307, %c0_308] : memref<8x256xf32, #tpu.memory_space<vmem>>, vector<8x256xf32>
    %412 = tpu.concatenate %410, %410, %410, %410 in 0 : vector<2x256xf32>, vector<2x256xf32>, vector<2x256xf32>, vector<2x256xf32> -> vector<8x256xf32>
    %c0_309 = arith.constant 0 : index
    %c0_310 = arith.constant 0 : index
    %c0_311 = arith.constant 0 : index
    %c0_312 = arith.constant 0 : index
    %413 = vector.load %arg3[%c0_309, %c0_310, %c0_311, %c0_312] : memref<9x2x8x256xf32, #tpu.memory_space<vmem>>, vector<1x1x8x256xf32>
    %414 = vector.shape_cast %413 : vector<1x1x8x256xf32> to vector<8x256xf32>
    %c17_i32_313 = arith.constant 17 : i32
    %415 = tpu.dynamic_rotate %412 by %c17_i32_313 dim 1 : vector<8x256xf32>, i32 -> vector<8x256xf32>
    %416 = arith.mulf %414, %415 : vector<8x256xf32>
    %417 = arith.addf %411, %416 : vector<8x256xf32>
    %c1_314 = arith.constant 1 : index
    %c0_315 = arith.constant 0 : index
    %c0_316 = arith.constant 0 : index
    %c0_317 = arith.constant 0 : index
    %418 = vector.load %arg3[%c1_314, %c0_315, %c0_316, %c0_317] : memref<9x2x8x256xf32, #tpu.memory_space<vmem>>, vector<1x1x8x256xf32>
    %419 = vector.shape_cast %418 : vector<1x1x8x256xf32> to vector<8x256xf32>
    %c16_i32_318 = arith.constant 16 : i32
    %420 = tpu.dynamic_rotate %412 by %c16_i32_318 dim 1 : vector<8x256xf32>, i32 -> vector<8x256xf32>
    %421 = arith.mulf %419, %420 : vector<8x256xf32>
    %422 = arith.addf %417, %421 : vector<8x256xf32>
    %c2_319 = arith.constant 2 : index
    %c0_320 = arith.constant 0 : index
    %c0_321 = arith.constant 0 : index
    %c0_322 = arith.constant 0 : index
    %423 = vector.load %arg3[%c2_319, %c0_320, %c0_321, %c0_322] : memref<9x2x8x256xf32, #tpu.memory_space<vmem>>, vector<1x1x8x256xf32>
    %424 = vector.shape_cast %423 : vector<1x1x8x256xf32> to vector<8x256xf32>
    %c15_i32_323 = arith.constant 15 : i32
    %425 = tpu.dynamic_rotate %412 by %c15_i32_323 dim 1 : vector<8x256xf32>, i32 -> vector<8x256xf32>
    %426 = arith.mulf %424, %425 : vector<8x256xf32>
    %427 = arith.addf %422, %426 : vector<8x256xf32>
    %c3_324 = arith.constant 3 : index
    %c0_325 = arith.constant 0 : index
    %c0_326 = arith.constant 0 : index
    %c0_327 = arith.constant 0 : index
    %428 = vector.load %arg3[%c3_324, %c0_325, %c0_326, %c0_327] : memref<9x2x8x256xf32, #tpu.memory_space<vmem>>, vector<1x1x8x256xf32>
    %429 = vector.shape_cast %428 : vector<1x1x8x256xf32> to vector<8x256xf32>
    %c1_i32_328 = arith.constant 1 : i32
    %430 = tpu.dynamic_rotate %412 by %c1_i32_328 dim 1 : vector<8x256xf32>, i32 -> vector<8x256xf32>
    %431 = arith.mulf %429, %430 : vector<8x256xf32>
    %432 = arith.addf %427, %431 : vector<8x256xf32>
    %c4_329 = arith.constant 4 : index
    %c0_330 = arith.constant 0 : index
    %c0_331 = arith.constant 0 : index
    %c0_332 = arith.constant 0 : index
    %433 = vector.load %arg3[%c4_329, %c0_330, %c0_331, %c0_332] : memref<9x2x8x256xf32, #tpu.memory_space<vmem>>, vector<1x1x8x256xf32>
    %434 = vector.shape_cast %433 : vector<1x1x8x256xf32> to vector<8x256xf32>
    %435 = arith.mulf %434, %412 : vector<8x256xf32>
    %436 = arith.addf %432, %435 : vector<8x256xf32>
    %c5_333 = arith.constant 5 : index
    %c0_334 = arith.constant 0 : index
    %c0_335 = arith.constant 0 : index
    %c0_336 = arith.constant 0 : index
    %437 = vector.load %arg3[%c5_333, %c0_334, %c0_335, %c0_336] : memref<9x2x8x256xf32, #tpu.memory_space<vmem>>, vector<1x1x8x256xf32>
    %438 = vector.shape_cast %437 : vector<1x1x8x256xf32> to vector<8x256xf32>
    %c255_i32_337 = arith.constant 255 : i32
    %439 = tpu.dynamic_rotate %412 by %c255_i32_337 dim 1 : vector<8x256xf32>, i32 -> vector<8x256xf32>
    %440 = arith.mulf %438, %439 : vector<8x256xf32>
    %441 = arith.addf %436, %440 : vector<8x256xf32>
    %c6_338 = arith.constant 6 : index
    %c0_339 = arith.constant 0 : index
    %c0_340 = arith.constant 0 : index
    %c0_341 = arith.constant 0 : index
    %442 = vector.load %arg3[%c6_338, %c0_339, %c0_340, %c0_341] : memref<9x2x8x256xf32, #tpu.memory_space<vmem>>, vector<1x1x8x256xf32>
    %443 = vector.shape_cast %442 : vector<1x1x8x256xf32> to vector<8x256xf32>
    %c241_i32_342 = arith.constant 241 : i32
    %444 = tpu.dynamic_rotate %412 by %c241_i32_342 dim 1 : vector<8x256xf32>, i32 -> vector<8x256xf32>
    %445 = arith.mulf %443, %444 : vector<8x256xf32>
    %446 = arith.addf %441, %445 : vector<8x256xf32>
    %c7_343 = arith.constant 7 : index
    %c0_344 = arith.constant 0 : index
    %c0_345 = arith.constant 0 : index
    %c0_346 = arith.constant 0 : index
    %447 = vector.load %arg3[%c7_343, %c0_344, %c0_345, %c0_346] : memref<9x2x8x256xf32, #tpu.memory_space<vmem>>, vector<1x1x8x256xf32>
    %448 = vector.shape_cast %447 : vector<1x1x8x256xf32> to vector<8x256xf32>
    %c240_i32_347 = arith.constant 240 : i32
    %449 = tpu.dynamic_rotate %412 by %c240_i32_347 dim 1 : vector<8x256xf32>, i32 -> vector<8x256xf32>
    %450 = arith.mulf %448, %449 : vector<8x256xf32>
    %451 = arith.addf %446, %450 : vector<8x256xf32>
    %c8_348 = arith.constant 8 : index
    %c0_349 = arith.constant 0 : index
    %c0_350 = arith.constant 0 : index
    %c0_351 = arith.constant 0 : index
    %452 = vector.load %arg3[%c8_348, %c0_349, %c0_350, %c0_351] : memref<9x2x8x256xf32, #tpu.memory_space<vmem>>, vector<1x1x8x256xf32>
    %453 = vector.shape_cast %452 : vector<1x1x8x256xf32> to vector<8x256xf32>
    %c239_i32_352 = arith.constant 239 : i32
    %454 = tpu.dynamic_rotate %412 by %c239_i32_352 dim 1 : vector<8x256xf32>, i32 -> vector<8x256xf32>
    %455 = arith.mulf %453, %454 : vector<8x256xf32>
    %456 = arith.addf %451, %455 : vector<8x256xf32>
    %457 = tpu.concatenate %401, %401, %401, %401 in 0 : vector<2x256xf32>, vector<2x256xf32>, vector<2x256xf32>, vector<2x256xf32> -> vector<8x256xf32>
    %c0_353 = arith.constant 0 : index
    %c1_354 = arith.constant 1 : index
    %c0_355 = arith.constant 0 : index
    %c0_356 = arith.constant 0 : index
    %458 = vector.load %arg3[%c0_353, %c1_354, %c0_355, %c0_356] : memref<9x2x8x256xf32, #tpu.memory_space<vmem>>, vector<1x1x8x256xf32>
    %459 = vector.shape_cast %458 : vector<1x1x8x256xf32> to vector<8x256xf32>
    %c17_i32_357 = arith.constant 17 : i32
    %460 = tpu.dynamic_rotate %457 by %c17_i32_357 dim 1 : vector<8x256xf32>, i32 -> vector<8x256xf32>
    %461 = arith.mulf %459, %460 : vector<8x256xf32>
    %462 = arith.addf %456, %461 : vector<8x256xf32>
    %c1_358 = arith.constant 1 : index
    %c1_359 = arith.constant 1 : index
    %c0_360 = arith.constant 0 : index
    %c0_361 = arith.constant 0 : index
    %463 = vector.load %arg3[%c1_358, %c1_359, %c0_360, %c0_361] : memref<9x2x8x256xf32, #tpu.memory_space<vmem>>, vector<1x1x8x256xf32>
    %464 = vector.shape_cast %463 : vector<1x1x8x256xf32> to vector<8x256xf32>
    %c16_i32_362 = arith.constant 16 : i32
    %465 = tpu.dynamic_rotate %457 by %c16_i32_362 dim 1 : vector<8x256xf32>, i32 -> vector<8x256xf32>
    %466 = arith.mulf %464, %465 : vector<8x256xf32>
    %467 = arith.addf %462, %466 : vector<8x256xf32>
    %c2_363 = arith.constant 2 : index
    %c1_364 = arith.constant 1 : index
    %c0_365 = arith.constant 0 : index
    %c0_366 = arith.constant 0 : index
    %468 = vector.load %arg3[%c2_363, %c1_364, %c0_365, %c0_366] : memref<9x2x8x256xf32, #tpu.memory_space<vmem>>, vector<1x1x8x256xf32>
    %469 = vector.shape_cast %468 : vector<1x1x8x256xf32> to vector<8x256xf32>
    %c15_i32_367 = arith.constant 15 : i32
    %470 = tpu.dynamic_rotate %457 by %c15_i32_367 dim 1 : vector<8x256xf32>, i32 -> vector<8x256xf32>
    %471 = arith.mulf %469, %470 : vector<8x256xf32>
    %472 = arith.addf %467, %471 : vector<8x256xf32>
    %c3_368 = arith.constant 3 : index
    %c1_369 = arith.constant 1 : index
    %c0_370 = arith.constant 0 : index
    %c0_371 = arith.constant 0 : index
    %473 = vector.load %arg3[%c3_368, %c1_369, %c0_370, %c0_371] : memref<9x2x8x256xf32, #tpu.memory_space<vmem>>, vector<1x1x8x256xf32>
    %474 = vector.shape_cast %473 : vector<1x1x8x256xf32> to vector<8x256xf32>
    %c1_i32_372 = arith.constant 1 : i32
    %475 = tpu.dynamic_rotate %457 by %c1_i32_372 dim 1 : vector<8x256xf32>, i32 -> vector<8x256xf32>
    %476 = arith.mulf %474, %475 : vector<8x256xf32>
    %477 = arith.addf %472, %476 : vector<8x256xf32>
    %c4_373 = arith.constant 4 : index
    %c1_374 = arith.constant 1 : index
    %c0_375 = arith.constant 0 : index
    %c0_376 = arith.constant 0 : index
    %478 = vector.load %arg3[%c4_373, %c1_374, %c0_375, %c0_376] : memref<9x2x8x256xf32, #tpu.memory_space<vmem>>, vector<1x1x8x256xf32>
    %479 = vector.shape_cast %478 : vector<1x1x8x256xf32> to vector<8x256xf32>
    %480 = arith.mulf %479, %457 : vector<8x256xf32>
    %481 = arith.addf %477, %480 : vector<8x256xf32>
    %c5_377 = arith.constant 5 : index
    %c1_378 = arith.constant 1 : index
    %c0_379 = arith.constant 0 : index
    %c0_380 = arith.constant 0 : index
    %482 = vector.load %arg3[%c5_377, %c1_378, %c0_379, %c0_380] : memref<9x2x8x256xf32, #tpu.memory_space<vmem>>, vector<1x1x8x256xf32>
    %483 = vector.shape_cast %482 : vector<1x1x8x256xf32> to vector<8x256xf32>
    %c255_i32_381 = arith.constant 255 : i32
    %484 = tpu.dynamic_rotate %457 by %c255_i32_381 dim 1 : vector<8x256xf32>, i32 -> vector<8x256xf32>
    %485 = arith.mulf %483, %484 : vector<8x256xf32>
    %486 = arith.addf %481, %485 : vector<8x256xf32>
    %c6_382 = arith.constant 6 : index
    %c1_383 = arith.constant 1 : index
    %c0_384 = arith.constant 0 : index
    %c0_385 = arith.constant 0 : index
    %487 = vector.load %arg3[%c6_382, %c1_383, %c0_384, %c0_385] : memref<9x2x8x256xf32, #tpu.memory_space<vmem>>, vector<1x1x8x256xf32>
    %488 = vector.shape_cast %487 : vector<1x1x8x256xf32> to vector<8x256xf32>
    %c241_i32_386 = arith.constant 241 : i32
    %489 = tpu.dynamic_rotate %457 by %c241_i32_386 dim 1 : vector<8x256xf32>, i32 -> vector<8x256xf32>
    %490 = arith.mulf %488, %489 : vector<8x256xf32>
    %491 = arith.addf %486, %490 : vector<8x256xf32>
    %c7_387 = arith.constant 7 : index
    %c1_388 = arith.constant 1 : index
    %c0_389 = arith.constant 0 : index
    %c0_390 = arith.constant 0 : index
    %492 = vector.load %arg3[%c7_387, %c1_388, %c0_389, %c0_390] : memref<9x2x8x256xf32, #tpu.memory_space<vmem>>, vector<1x1x8x256xf32>
    %493 = vector.shape_cast %492 : vector<1x1x8x256xf32> to vector<8x256xf32>
    %c240_i32_391 = arith.constant 240 : i32
    %494 = tpu.dynamic_rotate %457 by %c240_i32_391 dim 1 : vector<8x256xf32>, i32 -> vector<8x256xf32>
    %495 = arith.mulf %493, %494 : vector<8x256xf32>
    %496 = arith.addf %491, %495 : vector<8x256xf32>
    %c8_392 = arith.constant 8 : index
    %c1_393 = arith.constant 1 : index
    %c0_394 = arith.constant 0 : index
    %c0_395 = arith.constant 0 : index
    %497 = vector.load %arg3[%c8_392, %c1_393, %c0_394, %c0_395] : memref<9x2x8x256xf32, #tpu.memory_space<vmem>>, vector<1x1x8x256xf32>
    %498 = vector.shape_cast %497 : vector<1x1x8x256xf32> to vector<8x256xf32>
    %c239_i32_396 = arith.constant 239 : i32
    %499 = tpu.dynamic_rotate %457 by %c239_i32_396 dim 1 : vector<8x256xf32>, i32 -> vector<8x256xf32>
    %500 = arith.mulf %498, %499 : vector<8x256xf32>
    %501 = arith.addf %496, %500 : vector<8x256xf32>
    %502 = vector.extract_strided_slice %501 {offsets = [0, 0], sizes = [2, 256], strides = [1, 1]} : vector<8x256xf32> to vector<2x256xf32>
    %503 = vector.extract_strided_slice %501 {offsets = [2, 0], sizes = [2, 256], strides = [1, 1]} : vector<8x256xf32> to vector<2x256xf32>
    %504 = vector.extract_strided_slice %501 {offsets = [4, 0], sizes = [2, 256], strides = [1, 1]} : vector<8x256xf32> to vector<2x256xf32>
    %505 = vector.extract_strided_slice %501 {offsets = [6, 0], sizes = [2, 256], strides = [1, 1]} : vector<8x256xf32> to vector<2x256xf32>
    %c0_397 = arith.constant 0 : index
    %c0_398 = arith.constant 0 : index
    %506 = vector.load %arg4[%c0_397, %c0_398] : memref<2x256xf32, #tpu.memory_space<vmem>>, vector<2x256xf32>
    %507 = arith.mulf %506, %391 : vector<2x256xf32>
    %508 = arith.addf %502, %507 : vector<2x256xf32>
    %509 = arith.negf %508 : vector<2x256xf32>
    %510 = math.exp %509 : vector<2x256xf32>
    %cst_399 = arith.constant 1.000000e+00 : f32
    %511 = vector.broadcast %cst_399 : f32 to vector<2x256xf32>
    %512 = arith.addf %511, %510 : vector<2x256xf32>
    %513 = arith.divf %511, %512 : vector<2x256xf32>
    %c0_400 = arith.constant 0 : index
    %c0_401 = arith.constant 0 : index
    %514 = vector.load %arg5[%c0_400, %c0_401] : memref<2x256xf32, #tpu.memory_space<vmem>>, vector<2x256xf32>
    %515 = arith.mulf %514, %391 : vector<2x256xf32>
    %516 = arith.addf %503, %515 : vector<2x256xf32>
    %517 = arith.negf %516 : vector<2x256xf32>
    %518 = math.exp %517 : vector<2x256xf32>
    %cst_402 = arith.constant 1.000000e+00 : f32
    %519 = vector.broadcast %cst_402 : f32 to vector<2x256xf32>
    %520 = arith.addf %519, %518 : vector<2x256xf32>
    %521 = arith.divf %519, %520 : vector<2x256xf32>
    %522 = arith.mulf %521, %391 : vector<2x256xf32>
    %523 = math.tanh %504 : vector<2x256xf32>
    %524 = arith.mulf %513, %523 : vector<2x256xf32>
    %525 = arith.addf %522, %524 : vector<2x256xf32>
    %c0_403 = arith.constant 0 : index
    %c0_404 = arith.constant 0 : index
    %526 = vector.load %arg6[%c0_403, %c0_404] : memref<2x256xf32, #tpu.memory_space<vmem>>, vector<2x256xf32>
    %527 = arith.mulf %526, %525 : vector<2x256xf32>
    %528 = arith.addf %505, %527 : vector<2x256xf32>
    %529 = arith.negf %528 : vector<2x256xf32>
    %530 = math.exp %529 : vector<2x256xf32>
    %cst_405 = arith.constant 1.000000e+00 : f32
    %531 = vector.broadcast %cst_405 : f32 to vector<2x256xf32>
    %532 = arith.addf %531, %530 : vector<2x256xf32>
    %533 = arith.divf %531, %532 : vector<2x256xf32>
    %534 = math.tanh %525 : vector<2x256xf32>
    %535 = arith.mulf %533, %534 : vector<2x256xf32>
    %c2_i32_406 = arith.constant 2 : i32
    %536 = arith.muli %c3_i32, %c2_i32_406 : i32
    %c0_407 = arith.constant 0 : index
    %537 = arith.index_cast %536 : i32 to index
    %c0_408 = arith.constant 0 : index
    %538 = vector.load %arg8[%c0_407, %537, %c0_408] : memref<1x8x256xf32, #tpu.memory_space<vmem>>, vector<1x2x256xf32>
    %539 = vector.shape_cast %538 : vector<1x2x256xf32> to vector<2x256xf32>
    %540 = vector.shape_cast %535 : vector<2x256xf32> to vector<1x2x256xf32>
    tpu.vector_store %arg8[%c0_407, %537, %c0_408], %540 {strides = array<i32>} : memref<1x8x256xf32, #tpu.memory_space<vmem>>, vector<1x2x256xf32>,
    %c4_i32 = arith.constant 4 : i32
    %c0_409 = arith.constant 0 : index
    %c0_410 = arith.constant 0 : index
    %541 = vector.load %arg9[%c0_409, %c0_410] : memref<2x256xf32, #tpu.memory_space<vmem>>, vector<2x256xf32>
    tpu.vector_store %arg9[%c0_409, %c0_410], %535 {strides = array<i32>} : memref<2x256xf32, #tpu.memory_space<vmem>>, vector<2x256xf32>,
    %c0_411 = arith.constant 0 : index
    %c0_412 = arith.constant 0 : index
    %542 = vector.load %arg10[%c0_411, %c0_412] : memref<2x256xf32, #tpu.memory_space<vmem>>, vector<2x256xf32>
    tpu.vector_store %arg10[%c0_411, %c0_412], %525 {strides = array<i32>} : memref<2x256xf32, #tpu.memory_space<vmem>>, vector<2x256xf32>,
    return
  }
  func.func @transform_0(%arg0: i32, %arg1: i32) -> (i32, i32, i32) {
    %c0_i32 = arith.constant 0 : i32
    %c0_i32_0 = arith.constant 0 : i32
    return %arg0, %arg1, %c0_i32 : i32, i32, i32
  }
  func.func @transform_1(%arg0: i32, %arg1: i32) -> (i32, i32, i32, i32) {
    %c0_i32 = arith.constant 0 : i32
    %c0_i32_0 = arith.constant 0 : i32
    %c0_i32_1 = arith.constant 0 : i32
    %c0_i32_2 = arith.constant 0 : i32
    %c0_i32_3 = arith.constant 0 : i32
    return %c0_i32, %c0_i32_0, %c0_i32_1, %c0_i32_2 : i32, i32, i32, i32
  }
  func.func @transform_2(%arg0: i32, %arg1: i32) -> (i32, i32) {
    %c0_i32 = arith.constant 0 : i32
    %c0_i32_0 = arith.constant 0 : i32
    %c0_i32_1 = arith.constant 0 : i32
    return %c0_i32, %c0_i32_0 : i32, i32
  }
  func.func @transform_3(%arg0: i32, %arg1: i32) -> (i32, i32) {
    %c0_i32 = arith.constant 0 : i32
    %c0_i32_0 = arith.constant 0 : i32
    %c0_i32_1 = arith.constant 0 : i32
    return %c0_i32, %c0_i32_0 : i32, i32
  }
  func.func @transform_4(%arg0: i32, %arg1: i32) -> (i32, i32) {
    %c0_i32 = arith.constant 0 : i32
    %c0_i32_0 = arith.constant 0 : i32
    %c0_i32_1 = arith.constant 0 : i32
    return %c0_i32, %c0_i32_0 : i32, i32
  }
  func.func @transform_5(%arg0: i32, %arg1: i32) -> (i32, i32) {
    %c0_i32 = arith.constant 0 : i32
    %c0_i32_0 = arith.constant 0 : i32
    %c0_i32_1 = arith.constant 0 : i32
    return %c0_i32, %c0_i32_0 : i32, i32
  }
  func.func @transform_6(%arg0: i32, %arg1: i32) -> (i32, i32, i32) {
    %c0_i32 = arith.constant 0 : i32
    %c0_i32_0 = arith.constant 0 : i32
    return %arg0, %arg1, %c0_i32 : i32, i32, i32
  }
}

</mosaic_0001>

<llo_original>
// kernel: tpu_custom_call.1
$region0: #{tpu_custom_call.1}
  #allocation0 [shape = 'u32[]', space=smem, size = 0x4, offset = 0x4, fixed_abs, tag = 'smem constant byte address 0x4 - core index']
  #allocation1 [shape = 'u32[144,128]{1,0:T(1,128)}', space=vmem, size = 0x12000, scoped, tag = 'internal scratch']
  #allocation2 [shape = 'f32[2,256]{1,0:T(2,128)}', space=vmem, size = 0x800, scoped, tag = 'scratch operand']
  #allocation3 [shape = 'f32[2,256]{1,0:T(2,128)}', space=vmem, size = 0x800, scoped, tag = 'scratch operand']
  %s0 = inlined_call_operand.hbm [shape: f32[1,16,256], index: 0, kind: input, shape index: {}]
  %s1 = inlined_call_operand.hbm [shape: f32[9,2,8,256], index: 1, kind: input, shape index: {}]
  %s2 = inlined_call_operand.hbm [shape: f32[2,256], index: 2, kind: input, shape index: {}]
  %s3 = inlined_call_operand.hbm [shape: f32[2,256], index: 3, kind: input, shape index: {}]
  %s4 = inlined_call_operand.hbm [shape: f32[2,256], index: 4, kind: input, shape index: {}]
  %s5 = inlined_call_operand.vmem [shape: f32[8,256], index: 5, kind: input, shape index: {}]
  %s6 = inlined_call_operand.hbm [shape: f32[1,16,256], index: 6, kind: output, shape index: {}]
  %s7 = sld [smem:[#allocation0]]
  $region81: #{tpu_custom_call.1} parent=0
    _
  %s9 = ssub.s32 1, %s7
  %s10 = scalar_select 0, %s9, %s7
  $region1: #{tpu_custom_call.1} parent=0
    #allocation4 [shape = 'u8[16384]{0}', space=vmem, size = 0x4000, scoped, tag = 'input window, operand 0']
    #allocation5 [shape = 's32[2]{0}', space=sflag, size = 0x8, scoped, tag = 'scoped memory for tpu_custom_call.1']
    #allocation6 [shape = 's32[2]{0}', space=sflag, size = 0x8, scoped, tag = 'scoped memory for tpu_custom_call.1']
    #allocation7 [shape = 'u8[147456]{0}', space=vmem, size = 0x24000, scoped, tag = 'input window, operand 1, single buffered']
    #allocation8 [shape = 's32[1]{0}', space=sflag, size = 0x4, scoped, tag = 'scoped memory for tpu_custom_call.1']
    #allocation9 [shape = 'u8[2048]{0}', space=vmem, size = 0x800, scoped, tag = 'input window, operand 2, single buffered']
    #allocation10 [shape = 'u8[2048]{0}', space=vmem, size = 0x800, scoped, tag = 'input window, operand 3, single buffered']
    #allocation11 [shape = 's32[1]{0}', space=sflag, size = 0x4, scoped, tag = 'scoped memory for tpu_custom_call.1']
    #allocation12 [shape = 'u8[2048]{0}', space=vmem, size = 0x800, scoped, tag = 'input window, operand 4, single buffered']
    #allocation13 [shape = 'u8[16384]{0}', space=vmem, size = 0x4000, scoped, tag = 'output window, operand 0']
    %11 = vsyncpa [#allocation5], 0
    %s12 = scalar_lea.sflag [#allocation5], 1
    %13 = vsyncpa %s12, 0
    %14 = vsyncpa [#allocation8], 0
    %15 = vsyncpa [#allocation11], 0
    %16 = vsyncpa [#allocation6], 0
    %s17 = scalar_lea.sflag [#allocation6], 1
    %18 = vsyncpa %s17, 0
    loop: start=0, step=1, limit=4
    $region2: #{tpu_custom_call.1} parent=1 // loop_pre_header
      _
    $region3: #{tpu_custom_call.1} parent=1 // loop_header
      %s20 = sphi 0, %s24
      %p21 = scmp.ge.s32.totalorder %s20, 4
      %s27 = sphi 0, %s39
      %s28 = sphi 0, %s35
      %s29 = sphi 0, %s27
      %s30 = sphi 0, %s28
      %s31 = sphi 0, %s29
      %s32 = sphi 0, %s30
      %s44 = sphi 0, %s46
      %s47 = sphi 0, %s44
      %s48 = sphi 0, %s47
      %s64 = sphi 0, %s48
      %s68 = sphi 0, %s68
      %s70 = sphi 0, %s68
      %s71 = sphi 0, %s70
      %s85 = sphi 0, %s71
      %s89 = sphi 0, %s89
      %s91 = sphi 0, %s89
      %s92 = sphi 0, %s91
      %s106 = sphi 0, %s92
      %s110 = sphi 0, %s110
      %s112 = sphi 0, %s110
      %s113 = sphi 0, %s112
      %s127 = sphi 0, %s113
      %s131 = sphi 0, %s131
      %s133 = sphi 0, %s131
      %s134 = sphi 0, %s133
      %s148 = sphi 0, %s134
      %s152 = sphi 0, %s152
      %s154 = sphi 0, %s152
      %s155 = sphi 0, %s154
      %s169 = sphi 0, %s155
      %s177 = sphi 0, %s179
      %s180 = sphi 0, %s177
      %s181 = sphi 0, %s180
      %s197 = sphi 0, %s181
    $region4: #{tpu_custom_call.1} parent=1 // loop_header_branch
      %23 = sbr.rel (%p21) target = $region8
    $region5: #{tpu_custom_call.1} parent=1 // loop_body
      %s25 = ssub.s32 %s20, 1
      %s26 = ssub.s32 %s20, 2
      %s33 = sadd.s32 1, %s28
      %p34 = scmp.ge.s32.totalorder %s33, 2
      %s35 = scalar_select %p34, 0, %s33
      %s36 = sadd.s32 1, %s27
      %s37 = scalar_select %p34, %s36, %s27
      %p38 = scmp.ge.s32.totalorder %s37, 1
      %s39 = scalar_select %p38, 0, %s37
      %s40 = ssub.s32 %s27, %s39
      %s41 = ssub.s32 %s28, %s35
      %s42 = sor.u32 %s40, %s41
      %p43 = scmp.eq.s32.totalorder %s42, 0
      %s45 = sadd.s32 %s44, 1
      %s46 = scalar_select %p43, %s44, %s45
      %p49 = pneg %p43
      %p50 = scmp.eq.s32.totalorder %s20, 1
      %p51 = por %p49, %p50
      %p52 = scmp.ne.s32.totalorder %s44, %s47
      %p53 = scmp.eq.s32.totalorder %s20, 0
      %p54 = por %p52, %p53
      %p55 = scmp.ne.s32.totalorder %s44, %s47
      %p56 = scmp.eq.s32.totalorder %s25, 1
      %p57 = por %p55, %p56
      %p58 = scmp.ne.s32.totalorder %s47, %s48
      %p59 = scmp.eq.s32.totalorder %s25, 0
      %p60 = por %p58, %p59
      %p61 = scmp.ne.s32.totalorder %s47, %s48
      %p62 = scmp.eq.s32.totalorder %s26, 1
      %p63 = por %p61, %p62
      %p65 = scmp.ne.s32.totalorder %s48, %s64
      %p66 = scmp.eq.s32.totalorder %s26, 0
      %p67 = por %p65, %p66
      %s69 = sadd.s32 %s68, 1
      %p72 = scmp.eq.s32.totalorder %s20, 1
      %p73 = scmp.ne.s32.totalorder %s68, %s70
      %p74 = scmp.eq.s32.totalorder %s20, 0
      %p75 = por %p73, %p74
      %p76 = scmp.ne.s32.totalorder %s68, %s70
      %p77 = scmp.eq.s32.totalorder %s25, 1
      %p78 = por %p76, %p77
      %p79 = scmp.ne.s32.totalorder %s70, %s71
      %p80 = scmp.eq.s32.totalorder %s25, 0
      %p81 = por %p79, %p80
      %p82 = scmp.ne.s32.totalorder %s70, %s71
      %p83 = scmp.eq.s32.totalorder %s26, 1
      %p84 = por %p82, %p83
      %p86 = scmp.ne.s32.totalorder %s71, %s85
      %p87 = scmp.eq.s32.totalorder %s26, 0
      %p88 = por %p86, %p87
      %s90 = sadd.s32 %s89, 1
      %p93 = scmp.eq.s32.totalorder %s20, 1
      %p94 = scmp.ne.s32.totalorder %s89, %s91
      %p95 = scmp.eq.s32.totalorder %s20, 0
      %p96 = por %p94, %p95
      %p97 = scmp.ne.s32.totalorder %s89, %s91
      %p98 = scmp.eq.s32.totalorder %s25, 1
      %p99 = por %p97, %p98
      %p100 = scmp.ne.s32.totalorder %s91, %s92
      %p101 = scmp.eq.s32.totalorder %s25, 0
      %p102 = por %p100, %p101
      %p103 = scmp.ne.s32.totalorder %s91, %s92
      %p104 = scmp.eq.s32.totalorder %s26, 1
      %p105 = por %p103, %p104
      %p107 = scmp.ne.s32.totalorder %s92, %s106
      %p108 = scmp.eq.s32.totalorder %s26, 0
      %p109 = por %p107, %p108
      %s111 = sadd.s32 %s110, 1
      %p114 = scmp.eq.s32.totalorder %s20, 1
      %p115 = scmp.ne.s32.totalorder %s110, %s112
      %p116 = scmp.eq.s32.totalorder %s20, 0
      %p117 = por %p115, %p116
      %p118 = scmp.ne.s32.totalorder %s110, %s112
      %p119 = scmp.eq.s32.totalorder %s25, 1
      %p120 = por %p118, %p119
      %p121 = scmp.ne.s32.totalorder %s112, %s113
      %p122 = scmp.eq.s32.totalorder %s25, 0
      %p123 = por %p121, %p122
      %p124 = scmp.ne.s32.totalorder %s112, %s113
      %p125 = scmp.eq.s32.totalorder %s26, 1
      %p126 = por %p124, %p125
      %p128 = scmp.ne.s32.totalorder %s113, %s127
      %p129 = scmp.eq.s32.totalorder %s26, 0
      %p130 = por %p128, %p129
      %s132 = sadd.s32 %s131, 1
      %p135 = scmp.eq.s32.totalorder %s20, 1
      %p136 = scmp.ne.s32.totalorder %s131, %s133
      %p137 = scmp.eq.s32.totalorder %s20, 0
      %p138 = por %p136, %p137
      %p139 = scmp.ne.s32.totalorder %s131, %s133
      %p140 = scmp.eq.s32.totalorder %s25, 1
      %p141 = por %p139, %p140
      %p142 = scmp.ne.s32.totalorder %s133, %s134
      %p143 = scmp.eq.s32.totalorder %s25, 0
      %p144 = por %p142, %p143
      %p145 = scmp.ne.s32.totalorder %s133, %s134
      %p146 = scmp.eq.s32.totalorder %s26, 1
      %p147 = por %p145, %p146
      %p149 = scmp.ne.s32.totalorder %s134, %s148
      %p150 = scmp.eq.s32.totalorder %s26, 0
      %p151 = por %p149, %p150
      %s153 = sadd.s32 %s152, 1
      %p156 = scmp.eq.s32.totalorder %s20, 1
      %p157 = scmp.ne.s32.totalorder %s152, %s154
      %p158 = scmp.eq.s32.totalorder %s20, 0
      %p159 = por %p157, %p158
      %p160 = scmp.ne.s32.totalorder %s152, %s154
      %p161 = scmp.eq.s32.totalorder %s25, 1
      %p162 = por %p160, %p161
      %p163 = scmp.ne.s32.totalorder %s154, %s155
      %p164 = scmp.eq.s32.totalorder %s25, 0
      %p165 = por %p163, %p164
      %p166 = scmp.ne.s32.totalorder %s154, %s155
      %p167 = scmp.eq.s32.totalorder %s26, 1
      %p168 = por %p166, %p167
      %p170 = scmp.ne.s32.totalorder %s155, %s169
      %p171 = scmp.eq.s32.totalorder %s26, 0
      %p172 = por %p170, %p171
      %s173 = ssub.s32 %s27, %s39
      %s174 = ssub.s32 %s28, %s35
      %s175 = sor.u32 %s173, %s174
      %p176 = scmp.eq.s32.totalorder %s175, 0
      %s178 = sadd.s32 %s177, 1
      %s179 = scalar_select %p176, %s177, %s178
      %p182 = pneg %p176
      %p183 = scmp.eq.s32.totalorder %s20, 1
      %p184 = por %p182, %p183
      %p185 = scmp.ne.s32.totalorder %s177, %s180
      %p186 = scmp.eq.s32.totalorder %s20, 0
      %p187 = por %p185, %p186
      %p188 = scmp.ne.s32.totalorder %s177, %s180
      %p189 = scmp.eq.s32.totalorder %s25, 1
      %p190 = por %p188, %p189
      %p191 = scmp.ne.s32.totalorder %s180, %s181
      %p192 = scmp.eq.s32.totalorder %s25, 0
      %p193 = por %p191, %p192
      %p194 = scmp.ne.s32.totalorder %s180, %s181
      %p195 = scmp.eq.s32.totalorder %s26, 1
      %p196 = por %p194, %p195
      %p198 = scmp.ne.s32.totalorder %s181, %s197
      %p199 = scmp.eq.s32.totalorder %s26, 0
      %p200 = por %p198, %p199
      %p201 = scmp.le.s32.totalorder 1, %s20
      %p202 = scmp.lt.s32.totalorder %s20, 3
      %p203 = pnand %p201, %p202
      %p204 = pneg %p203
      // Predicated region
      $region9: #{tpu_custom_call.1} parent=5 // pred_check
        _
      $region10: #{tpu_custom_call.1} parent=5 // pred_check_branch
        %206 = sbr.rel (%p203) target = $region12
      $region11: #{tpu_custom_call.1} parent=5 // pred_region
        %s207 = ssub.s32 %s20, 1
        // Predicated region
        $region13: #{tpu_custom_call.1} parent=11 // pred_check
          %p208 = pneg %p81
        $region14: #{tpu_custom_call.1} parent=11 // pred_check_branch
          %210 = sbr.rel (%p208) target = $region16
        $region15: #{tpu_custom_call.1} parent=11 // pred_region
          %s212 = ssub.s32 4608, 4608
          %213 = vsyncadd [#allocation8], %s212
          %s214 = sshll.u32 [#allocation7], 4
          %s215 = int_to_ptr.vmem [resolvable:$true] %s214
          %220 = dma.hbm_to_vmem [thread:$0]  %s1, 4608, %s215, [#allocation8], 256, 256, 16
        $region16: #{tpu_custom_call.1} parent=11 // pred_fallthru
          _
        // Predicated region
        $region17: #{tpu_custom_call.1} parent=11 // pred_check
          %p221 = pneg %p102
        $region18: #{tpu_custom_call.1} parent=11 // pred_check_branch
          %223 = sbr.rel (%p221) target = $region20
        $region19: #{tpu_custom_call.1} parent=11 // pred_region
          %s225 = ssub.s32 64, 64
          %226 = vsyncadd [#allocation8], %s225
          %s228 = sshll.u32 [#allocation9], 4
          %s229 = int_to_ptr.vmem [resolvable:$true] %s228
          %231 = dma.hbm_to_vmem [thread:$0]  %s2, 64, %s229, [#allocation8]
        $region20: #{tpu_custom_call.1} parent=11 // pred_fallthru
          _
        // Predicated region
        $region21: #{tpu_custom_call.1} parent=11 // pred_check
          %p232 = pneg %p123
        $region22: #{tpu_custom_call.1} parent=11 // pred_check_branch
          %234 = sbr.rel (%p232) target = $region24
        $region23: #{tpu_custom_call.1} parent=11 // pred_region
          %s236 = ssub.s32 64, 64
          %237 = vsyncadd [#allocation11], %s236
          %s239 = sshll.u32 [#allocation10], 4
          %s240 = int_to_ptr.vmem [resolvable:$true] %s239
          %242 = dma.hbm_to_vmem [thread:$0]  %s3, 64, %s240, [#allocation11]
        $region24: #{tpu_custom_call.1} parent=11 // pred_fallthru
          _
        // Predicated region
        $region25: #{tpu_custom_call.1} parent=11 // pred_check
          %p243 = pneg %p144
        $region26: #{tpu_custom_call.1} parent=11 // pred_check_branch
          %245 = sbr.rel (%p243) target = $region28
        $region27: #{tpu_custom_call.1} parent=11 // pred_region
          %s247 = ssub.s32 64, 64
          %248 = vsyncadd [#allocation11], %s247
          %s250 = sshll.u32 [#allocation12], 4
          %s251 = int_to_ptr.vmem [resolvable:$true] %s250
          %253 = dma.hbm_to_vmem [thread:$0]  %s4, 64, %s251, [#allocation11]
        $region28: #{tpu_custom_call.1} parent=11 // pred_fallthru
          _
        // Predicated region
        $region29: #{tpu_custom_call.1} parent=11 // pred_check
          %p254 = pneg %p165
        $region30: #{tpu_custom_call.1} parent=11 // pred_check_branch
          %256 = sbr.rel (%p254) target = $region32
        $region31: #{tpu_custom_call.1} parent=11 // pred_region
          _
        $region32: #{tpu_custom_call.1} parent=11 // pred_fallthru
          _
      $region12: #{tpu_custom_call.1} parent=5 // pred_fallthru
        _
      %p257 = scmp.lt.s32.totalorder %s20, 2
      // Predicated region
      $region33: #{tpu_custom_call.1} parent=5 // pred_check
        %p258 = pneg %p257
      $region34: #{tpu_custom_call.1} parent=5 // pred_check_branch
        %260 = sbr.rel (%p258) target = $region36
      $region35: #{tpu_custom_call.1} parent=5 // pred_region
        // Predicated region
        $region37: #{tpu_custom_call.1} parent=35 // pred_check
          %p261 = pneg %p54
        $region38: #{tpu_custom_call.1} parent=35 // pred_check_branch
          %263 = sbr.rel (%p261) target = $region40
        $region39: #{tpu_custom_call.1} parent=35 // pred_region
          %s264 = sand.u32 %s44, 1
          %s265 = scalar_lea.sflag [#allocation5], %s264
          %s266 = sand.u32 %s44, 1
          %s267 = smul.addr %s266, 16
          %s268 = scalar_lea.vmem [#allocation4], %s267
          %s270 = ssub.s32 256, 256
          %271 = vsyncadd %s265, %s270
          %s272 = smul.addr %s28, 2
          %s273 = smul.addr %s27, 4
          %s274 = sadd.s32 %s272, %s273
          %s275 = smul.addr %s274, 128
          %s276 = scalar_lea.hbm %s0, %s275
          %s278 = sshll.u32 %s268, 4
          %s279 = int_to_ptr.vmem [resolvable:$true] %s278
          %281 = dma.hbm_to_vmem [thread:$0]  %s276, 256, %s279, %s265
        $region40: #{tpu_custom_call.1} parent=35 // pred_fallthru
          _
      $region36: #{tpu_custom_call.1} parent=5 // pred_fallthru
        _
      %p282 = scmp.le.s32.totalorder 1, %s20
      %p283 = scmp.lt.s32.totalorder %s20, 3
      %p284 = pnand %p282, %p283
      %p285 = pneg %p284
      // Predicated region
      $region41: #{tpu_custom_call.1} parent=5 // pred_check
        _
      $region42: #{tpu_custom_call.1} parent=5 // pred_check_branch
        %287 = sbr.rel (%p284) target = $region44
      $region43: #{tpu_custom_call.1} parent=5 // pred_region
        %s288 = ssub.s32 %s20, 1
        %s289 = sand.u32 %s47, 1
        %s290 = scalar_lea.sflag [#allocation5], %s289
        %s291 = sand.u32 %s47, 1
        %s292 = smul.addr %s291, 16
        %s293 = scalar_lea.vmem [#allocation4], %s292
        // Predicated region
        $region45: #{tpu_custom_call.1} parent=43 // pred_check
          %p294 = pneg %p60
        $region46: #{tpu_custom_call.1} parent=43 // pred_check_branch
          %296 = sbr.rel (%p294) target = $region48
        $region47: #{tpu_custom_call.1} parent=43 // pred_region
          %297 = dma.done %s290, 256
        $region48: #{tpu_custom_call.1} parent=43 // pred_fallthru
          _
        // Predicated region
        $region49: #{tpu_custom_call.1} parent=43 // pred_check
          %p298 = pneg %p81
        $region50: #{tpu_custom_call.1} parent=43 // pred_check_branch
          %300 = sbr.rel (%p298) target = $region52
        $region51: #{tpu_custom_call.1} parent=43 // pred_region
          %301 = dma.done [#allocation8], 4608
        $region52: #{tpu_custom_call.1} parent=43 // pred_fallthru
          _
        // Predicated region
        $region53: #{tpu_custom_call.1} parent=43 // pred_check
          %p302 = pneg %p102
        $region54: #{tpu_custom_call.1} parent=43 // pred_check_branch
          %304 = sbr.rel (%p302) target = $region56
        $region55: #{tpu_custom_call.1} parent=43 // pred_region
          %305 = dma.done [#allocation8], 64
        $region56: #{tpu_custom_call.1} parent=43 // pred_fallthru
          _
        // Predicated region
        $region57: #{tpu_custom_call.1} parent=43 // pred_check
          %p306 = pneg %p123
        $region58: #{tpu_custom_call.1} parent=43 // pred_check_branch
          %308 = sbr.rel (%p306) target = $region60
        $region59: #{tpu_custom_call.1} parent=43 // pred_region
          %309 = dma.done [#allocation11], 64
        $region60: #{tpu_custom_call.1} parent=43 // pred_fallthru
          _
        // Predicated region
        $region61: #{tpu_custom_call.1} parent=43 // pred_check
          %p310 = pneg %p144
        $region62: #{tpu_custom_call.1} parent=43 // pred_check_branch
          %312 = sbr.rel (%p310) target = $region64
        $region63: #{tpu_custom_call.1} parent=43 // pred_region
          %313 = dma.done [#allocation11], 64
        $region64: #{tpu_custom_call.1} parent=43 // pred_fallthru
          _
        %s314 = sand.u32 %s47, 1
        %s315 = scalar_lea.sflag [#allocation5], %s314
        %s316 = sand.u32 %s47, 1
        %s317 = smul.addr %s316, 16
        %s318 = scalar_lea.vmem [#allocation4], %s317
        %p319 = pneg %p60
        %p320 = pneg %p57
        %p321 = pneg %p81
        %p322 = pneg %p78
        %p323 = pneg %p102
        %p324 = pneg %p99
        %p325 = pneg %p123
        %p326 = pneg %p120
        %p327 = pneg %p144
        %p328 = pneg %p141
        %p329 = pneg %p165
        %p330 = pneg %p162
        %p331 = pneg %p193
        %p332 = pneg %p190
        %s333 = sand.u32 %s180, 1
        %s334 = scalar_lea.sflag [#allocation6], %s333
        %s335 = sand.u32 %s180, 1
        %s336 = smul.addr %s335, 16
        %s337 = scalar_lea.vmem [#allocation13], %s336
        %p338 = scmp.eq.s32.totalorder %s30, 0
        // Predicated region
        $region65: #{tpu_custom_call.1} parent=43 // pred_check
          %p339 = pneg %p338
        $region66: #{tpu_custom_call.1} parent=43 // pred_check_branch
          %341 = sbr.rel (%p339) target = $region68
        $region67: #{tpu_custom_call.1} parent=43 // pred_region
          %342 = vst [vmem:[#allocation2] sm:$0xf] 0.0
          %343 = vst [vmem:[#allocation3] sm:$0xf] 0.0
        $region68: #{tpu_custom_call.1} parent=43 // pred_fallthru
          _
        %v344 = vld [vmem:[#allocation2] sm:$0xf]
        %v345 = vld [vmem:[#allocation3] sm:$0xf]
        %v346 = vld [vmem:[%s293] sm:$0x3]
        %v347 = vld [vmem:[%s293 + $0x8] sm:$0x3]
        %v348 = vld [vmem:[%s5] sm:$0xff]
        %v349 = vld [vmem:[%s5 + $0x8] sm:$0xff]
        %v352 = vrot.slane %v346, 6
        %v353 = vrot.slane %v347, 6
        %v356 = vrot.slane %v346, 4
        %v357 = vrot.slane %v347, 4
        %v360 = vrot.slane %v346, 2
        %v361 = vrot.slane %v347, 2
        %vm364 = vcmask 1041408
        %v365 = vsel %vm364, %v346, %v352
        %v366 = vsel %vm364, %v347, %v353
        %vm367 = vcmask 1043456
        %v368 = vsel %vm367, %v365, %v356
        %v369 = vsel %vm367, %v366, %v357
        %vm370 = vcmask 1045504
        %v371 = vsel %vm370, %v368, %v360
        %v372 = vsel %vm370, %v369, %v361
        %v373 = vld [vmem:[#allocation7] sm:$0xff]
        %v374 = vld [vmem:[#allocation7 + $0x8] sm:$0xff]
        %375 = vrot.lane.b32.xlu0 %v371, 17
        %v376 = vpop.permute.xlu0 %375
        %377 = vrot.lane.b32.xlu0 %v372, 17
        %v378 = vpop.permute.xlu0 %377
        %v379 = vlaneseq
        %v380 = vand.u32 %v379, 127
        %vm381 = vcmp.lt.s32.totalorder %v380, 17
        %v382 = vsel %vm381, %v376, %v378
        %v383 = vsel %vm381, %v378, %v376
        %v384 = vmul.f32 %v373, %v383
        %v385 = vmul.f32 %v374, %v382
        %v386 = vadd.f32 %v348, %v384
        %v387 = vadd.f32 %v349, %v385
        %s388 = scalar_lea.vmem [#allocation7], 32
        %v389 = vld [vmem:[%s388] sm:$0xff]
        %v390 = vld [vmem:[%s388 + $0x8] sm:$0xff]
        %391 = vrot.lane.b32.xlu0 %v371, 16
        %v392 = vpop.permute.xlu0 %391
        %393 = vrot.lane.b32.xlu0 %v372, 16
        %v394 = vpop.permute.xlu0 %393
        %vm395 = vcmp.lt.s32.totalorder %v380, 16
        %v396 = vsel %vm395, %v392, %v394
        %v397 = vsel %vm395, %v394, %v392
        %v398 = vmul.f32 %v389, %v397
        %v399 = vmul.f32 %v390, %v396
        %v400 = vadd.f32 %v386, %v398
        %v401 = vadd.f32 %v387, %v399
        %s402 = scalar_lea.vmem [#allocation7], 64
        %v403 = vld [vmem:[%s402] sm:$0xff]
        %v404 = vld [vmem:[%s402 + $0x8] sm:$0xff]
        %405 = vrot.lane.b32.xlu0 %v371, 15
        %v406 = vpop.permute.xlu0 %405
        %407 = vrot.lane.b32.xlu0 %v372, 15
        %v408 = vpop.permute.xlu0 %407
        %vm409 = vcmp.lt.s32.totalorder %v380, 15
        %v410 = vsel %vm409, %v406, %v408
        %v411 = vsel %vm409, %v408, %v406
        %v412 = vmul.f32 %v403, %v411
        %v413 = vmul.f32 %v404, %v410
        %v414 = vadd.f32 %v400, %v412
        %v415 = vadd.f32 %v401, %v413
        %s416 = scalar_lea.vmem [#allocation7], 96
        %v417 = vld [vmem:[%s416] sm:$0xff]
        %v418 = vld [vmem:[%s416 + $0x8] sm:$0xff]
        %419 = vrot.lane.b32.xlu0 %v371, 1
        %v420 = vpop.permute.xlu0 %419
        %421 = vrot.lane.b32.xlu0 %v372, 1
        %v422 = vpop.permute.xlu0 %421
        %vm423 = vcmp.lt.s32.totalorder %v380, 1
        %v424 = vsel %vm423, %v420, %v422
        %v425 = vsel %vm423, %v422, %v420
        %v426 = vmul.f32 %v417, %v425
        %v427 = vmul.f32 %v418, %v424
        %v428 = vadd.f32 %v414, %v426
        %v429 = vadd.f32 %v415, %v427
        %s430 = scalar_lea.vmem [#allocation7], 128
        %v431 = vld [vmem:[%s430] sm:$0xff]
        %v432 = vld [vmem:[%s430 + $0x8] sm:$0xff]
        %v433 = vmul.f32 %v431, %v371
        %v434 = vmul.f32 %v432, %v372
        %v435 = vadd.f32 %v428, %v433
        %v436 = vadd.f32 %v429, %v434
        %s437 = scalar_lea.vmem [#allocation7], 160
        %v438 = vld [vmem:[%s437] sm:$0xff]
        %v439 = vld [vmem:[%s437 + $0x8] sm:$0xff]
        %440 = vrot.lane.b32.xlu0 %v371, 127
        %v441 = vpop.permute.xlu0 %440
        %442 = vrot.lane.b32.xlu0 %v372, 127
        %v443 = vpop.permute.xlu0 %442
        %vm444 = vcmp.lt.s32.totalorder %v380, 127
        %v445 = vsel %vm444, %v441, %v443
        %v446 = vsel %vm444, %v443, %v441
        %v447 = vmul.f32 %v438, %v445
        %v448 = vmul.f32 %v439, %v446
        %v449 = vadd.f32 %v435, %v447
        %v450 = vadd.f32 %v436, %v448
        %s451 = scalar_lea.vmem [#allocation7], 192
        %v452 = vld [vmem:[%s451] sm:$0xff]
        %v453 = vld [vmem:[%s451 + $0x8] sm:$0xff]
        %454 = vrot.lane.b32.xlu0 %v371, 113
        %v455 = vpop.permute.xlu0 %454
        %456 = vrot.lane.b32.xlu0 %v372, 113
        %v457 = vpop.permute.xlu0 %456
        %vm458 = vcmp.lt.s32.totalorder %v380, 113
        %v459 = vsel %vm458, %v455, %v457
        %v460 = vsel %vm458, %v457, %v455
        %v461 = vmul.f32 %v452, %v459
        %v462 = vmul.f32 %v453, %v460
        %v463 = vadd.f32 %v449, %v461
        %v464 = vadd.f32 %v450, %v462
        %s465 = scalar_lea.vmem [#allocation7], 224
        %v466 = vld [vmem:[%s465] sm:$0xff]
        %v467 = vld [vmem:[%s465 + $0x8] sm:$0xff]
        %468 = vrot.lane.b32.xlu0 %v371, 112
        %v469 = vpop.permute.xlu0 %468
        %470 = vrot.lane.b32.xlu0 %v372, 112
        %v471 = vpop.permute.xlu0 %470
        %vm472 = vcmp.lt.s32.totalorder %v380, 112
        %v473 = vsel %vm472, %v469, %v471
        %v474 = vsel %vm472, %v471, %v469
        %v475 = vmul.f32 %v466, %v473
        %v476 = vmul.f32 %v467, %v474
        %v477 = vadd.f32 %v463, %v475
        %v478 = vadd.f32 %v464, %v476
        %s479 = scalar_lea.vmem [#allocation7], 256
        %v480 = vld [vmem:[%s479] sm:$0xff]
        %v481 = vld [vmem:[%s479 + $0x8] sm:$0xff]
        %482 = vrot.lane.b32.xlu0 %v371, 111
        %v483 = vpop.permute.xlu0 %482
        %484 = vrot.lane.b32.xlu0 %v372, 111
        %v485 = vpop.permute.xlu0 %484
        %vm486 = vcmp.lt.s32.totalorder %v380, 111
        %v487 = vsel %vm486, %v483, %v485
        %v488 = vsel %vm486, %v485, %v483
        %v489 = vmul.f32 %v480, %v487
        %v490 = vmul.f32 %v481, %v488
        %v491 = vadd.f32 %v477, %v489
        %v492 = vadd.f32 %v478, %v490
        %v495 = vunpack.c.l.s4 1983009808
        %v496 = vunpack.c.0.s8 %v495
        %v497 = vlaneseq
        %v498 = vshrl.u32 %v497, 7
        %v499 = vsub.s32 %v496, %v498
        %v500 = vrot.slane %v344, %v499
        %v501 = vcombine.high %v500, %v500
        %v504 = vcombine.low %v344, %v344
        %v506 = vunpack.c.l.s4 1983009808
        %v507 = vunpack.c.0.s8 %v506
        %v508 = vlaneseq
        %v509 = vshrl.u32 %v508, 7
        %v510 = vsub.s32 %v507, %v509
        %v511 = vrot.slane %v504, %v510
        %v512 = vcombine.high %v511, %v511
        %v515 = vcombine.low %v500, %v500
        %v517 = vcombine.low %v511, %v511
        %v519 = vsel %vm364, %v500, %v511
        %v520 = vsel %vm364, %v501, %v512
        %v521 = vsel %vm367, %v519, %v515
        %v522 = vsel %vm367, %v520, %v500
        %v523 = vsel %vm370, %v521, %v517
        %v524 = vsel %vm370, %v522, %v511
        %s525 = scalar_lea.vmem [#allocation7], 16
        %v526 = vld [vmem:[%s525] sm:$0xff]
        %v527 = vld [vmem:[%s525 + $0x8] sm:$0xff]
        %528 = vrot.lane.b32.xlu0 %v523, 17
        %v529 = vpop.permute.xlu0 %528
        %530 = vrot.lane.b32.xlu0 %v524, 17
        %v531 = vpop.permute.xlu0 %530
        %v532 = vsel %vm381, %v529, %v531
        %v533 = vsel %vm381, %v531, %v529
        %v534 = vmul.f32 %v526, %v533
        %v535 = vmul.f32 %v527, %v532
        %v536 = vadd.f32 %v491, %v534
        %v537 = vadd.f32 %v492, %v535
        %s538 = scalar_lea.vmem [#allocation7], 48
        %v539 = vld [vmem:[%s538] sm:$0xff]
        %v540 = vld [vmem:[%s538 + $0x8] sm:$0xff]
        %541 = vrot.lane.b32.xlu0 %v523, 16
        %v542 = vpop.permute.xlu0 %541
        %543 = vrot.lane.b32.xlu0 %v524, 16
        %v544 = vpop.permute.xlu0 %543
        %v545 = vsel %vm395, %v542, %v544
        %v546 = vsel %vm395, %v544, %v542
        %v547 = vmul.f32 %v539, %v546
        %v548 = vmul.f32 %v540, %v545
        %v549 = vadd.f32 %v536, %v547
        %v550 = vadd.f32 %v537, %v548
        %s551 = scalar_lea.vmem [#allocation7], 80
        %v552 = vld [vmem:[%s551] sm:$0xff]
        %v553 = vld [vmem:[%s551 + $0x8] sm:$0xff]
        %554 = vrot.lane.b32.xlu0 %v523, 15
        %v555 = vpop.permute.xlu0 %554
        %556 = vrot.lane.b32.xlu0 %v524, 15
        %v557 = vpop.permute.xlu0 %556
        %v558 = vsel %vm409, %v555, %v557
        %v559 = vsel %vm409, %v557, %v555
        %v560 = vmul.f32 %v552, %v559
        %v561 = vmul.f32 %v553, %v558
        %v562 = vadd.f32 %v549, %v560
        %v563 = vadd.f32 %v550, %v561
        %s564 = scalar_lea.vmem [#allocation7], 112
        %v565 = vld [vmem:[%s564] sm:$0xff]
        %v566 = vld [vmem:[%s564 + $0x8] sm:$0xff]
        %567 = vrot.lane.b32.xlu0 %v523, 1
        %v568 = vpop.permute.xlu0 %567
        %569 = vrot.lane.b32.xlu0 %v524, 1
        %v570 = vpop.permute.xlu0 %569
        %v571 = vsel %vm423, %v568, %v570
        %v572 = vsel %vm423, %v570, %v568
        %v573 = vmul.f32 %v565, %v572
        %v574 = vmul.f32 %v566, %v571
        %v575 = vadd.f32 %v562, %v573
        %v576 = vadd.f32 %v563, %v574
        %s577 = scalar_lea.vmem [#allocation7], 144
        %v578 = vld [vmem:[%s577] sm:$0xff]
        %v579 = vld [vmem:[%s577 + $0x8] sm:$0xff]
        %v580 = vmul.f32 %v578, %v523
        %v581 = vmul.f32 %v579, %v524
        %v582 = vadd.f32 %v575, %v580
        %v583 = vadd.f32 %v576, %v581
        %s584 = scalar_lea.vmem [#allocation7], 176
        %v585 = vld [vmem:[%s584] sm:$0xff]
        %v586 = vld [vmem:[%s584 + $0x8] sm:$0xff]
        %587 = vrot.lane.b32.xlu0 %v523, 127
        %v588 = vpop.permute.xlu0 %587
        %589 = vrot.lane.b32.xlu0 %v524, 127
        %v590 = vpop.permute.xlu0 %589
        %v591 = vsel %vm444, %v588, %v590
        %v592 = vsel %vm444, %v590, %v588
        %v593 = vmul.f32 %v585, %v591
        %v594 = vmul.f32 %v586, %v592
        %v595 = vadd.f32 %v582, %v593
        %v596 = vadd.f32 %v583, %v594
        %s597 = scalar_lea.vmem [#allocation7], 208
        %v598 = vld [vmem:[%s597] sm:$0xff]
        %v599 = vld [vmem:[%s597 + $0x8] sm:$0xff]
        %600 = vrot.lane.b32.xlu0 %v523, 113
        %v601 = vpop.permute.xlu0 %600
        %602 = vrot.lane.b32.xlu0 %v524, 113
        %v603 = vpop.permute.xlu0 %602
        %v604 = vsel %vm458, %v601, %v603
        %v605 = vsel %vm458, %v603, %v601
        %v606 = vmul.f32 %v598, %v604
        %v607 = vmul.f32 %v599, %v605
        %v608 = vadd.f32 %v595, %v606
        %v609 = vadd.f32 %v596, %v607
        %s610 = scalar_lea.vmem [#allocation7], 240
        %v611 = vld [vmem:[%s610] sm:$0xff]
        %v612 = vld [vmem:[%s610 + $0x8] sm:$0xff]
        %613 = vrot.lane.b32.xlu0 %v523, 112
        %v614 = vpop.permute.xlu0 %613
        %615 = vrot.lane.b32.xlu0 %v524, 112
        %v616 = vpop.permute.xlu0 %615
        %v617 = vsel %vm472, %v614, %v616
        %v618 = vsel %vm472, %v616, %v614
        %v619 = vmul.f32 %v611, %v617
        %v620 = vmul.f32 %v612, %v618
        %v621 = vadd.f32 %v608, %v619
        %v622 = vadd.f32 %v609, %v620
        %s623 = scalar_lea.vmem [#allocation7], 272
        %v624 = vld [vmem:[%s623] sm:$0xff]
        %v625 = vld [vmem:[%s623 + $0x8] sm:$0xff]
        %626 = vrot.lane.b32.xlu0 %v523, 111
        %v627 = vpop.permute.xlu0 %626
        %628 = vrot.lane.b32.xlu0 %v524, 111
        %v629 = vpop.permute.xlu0 %628
        %v630 = vsel %vm486, %v627, %v629
        %v631 = vsel %vm486, %v629, %v627
        %v632 = vmul.f32 %v624, %v630
        %v633 = vmul.f32 %v625, %v631
        %v634 = vadd.f32 %v621, %v632
        %v635 = vadd.f32 %v622, %v633
        %v636 = vld [vmem:[#allocation9] sm:$0xf]
        %v637 = vmul.f32 %v636, %v345
        %v640 = vunpack.c.l.s4 1983009808
        %v641 = vunpack.c.0.s8 %v640
        %v642 = vlaneseq
        %v643 = vshrl.u32 %v642, 7
        %v644 = vsub.s32 %v641, %v643
        %v645 = vrot.slane %v637, %v644
        %v646 = vcombine.high %v645, %v645
        %v649 = vadd.f32 %v634, %v645
        %v650 = vadd.f32 %v635, %v646
        %v651 = vxor.u32 %v649, 2147483648
        %v652 = vxor.u32 %v650, 2147483648
        %v653 = vmul.f32 %v651, 1.442695
        %v654 = vpow.pop %v653
        %v655 = vmul.f32 %v652, 1.442695
        %v656 = vpow.pop %v655
        %v657 = vadd.f32 %v654, 1.0
        %v658 = vadd.f32 %v656, 1.0
        %v659 = vrcp.pop %v657
        %v660 = vmul.f32 1.0, %v659
        %v661 = vrcp.pop %v658
        %v662 = vmul.f32 1.0, %v661
        %v663 = vld [vmem:[#allocation10] sm:$0xf]
        %v664 = vmul.f32 %v663, %v345
        %v666 = vcombine.low %v664, %v664
        %v668 = vunpack.c.l.s4 1983009808
        %v669 = vunpack.c.0.s8 %v668
        %v670 = vlaneseq
        %v671 = vshrl.u32 %v670, 7
        %v672 = vsub.s32 %v669, %v671
        %v673 = vrot.slane %v666, %v672
        %v674 = vcombine.high %v673, %v673
        %v677 = vadd.f32 %v634, %v673
        %v678 = vadd.f32 %v635, %v674
        %v679 = vxor.u32 %v677, 2147483648
        %v680 = vxor.u32 %v678, 2147483648
        %v681 = vmul.f32 %v679, 1.442695
        %v682 = vpow.pop %v681
        %v683 = vmul.f32 %v680, 1.442695
        %v684 = vpow.pop %v683
        %v685 = vadd.f32 %v682, 1.0
        %v686 = vadd.f32 %v684, 1.0
        %v687 = vrcp.pop %v685
        %v688 = vmul.f32 1.0, %v687
        %v689 = vrcp.pop %v686
        %v690 = vmul.f32 1.0, %v689
        %v692 = vcombine.low %v345, %v345
        %v694 = vunpack.c.l.s4 1983009808
        %v695 = vunpack.c.0.s8 %v694
        %v696 = vlaneseq
        %v697 = vshrl.u32 %v696, 7
        %v698 = vsub.s32 %v695, %v697
        %v699 = vrot.slane %v692, %v698
        %v700 = vcombine.high %v699, %v699
        %v703 = vmul.f32 %v688, %v699
        %v704 = vmul.f32 %v690, %v700
        %v705 = vtanh.pop %v634
        %v706 = vtanh.pop %v635
        %v709 = vrot.slane %v705, 4
        %v710 = vrot.slane %v706, 4
        %v713 = vmul.f32 %v660, %v709
        %v714 = vmul.f32 %v662, %v710
        %v717 = vrot.slane %v713, 6
        %v718 = vrot.slane %v714, 6
        %v721 = vadd.f32 %v703, %v717
        %v722 = vadd.f32 %v704, %v718
        %v723 = vld [vmem:[#allocation12] sm:$0xf]
        %v726 = vcombine.low %v721, %v722
        %v728 = vunpack.c.l.s4 1983009808
        %v729 = vunpack.c.0.s8 %v728
        %v730 = vlaneseq
        %v731 = vshrl.u32 %v730, 7
        %v732 = vsub.s32 %v729, %v731
        %v733 = vrot.slane %v726, %v732
        %v734 = vcombine.high %v733, %v733
        %v736 = vmul.f32 %v723, %v734
        %v738 = vcombine.low %v736, %v736
        %v740 = vunpack.c.l.s4 1983009808
        %v741 = vunpack.c.0.s8 %v740
        %v742 = vlaneseq
        %v743 = vshrl.u32 %v742, 7
        %v744 = vsub.s32 %v741, %v743
        %v745 = vrot.slane %v738, %v744
        %v746 = vcombine.low %v745, %v745
        %v749 = vadd.f32 %v634, %v746
        %v750 = vadd.f32 %v635, %v745
        %v751 = vxor.u32 %v749, 2147483648
        %v752 = vxor.u32 %v750, 2147483648
        %v753 = vmul.f32 %v751, 1.442695
        %v754 = vpow.pop %v753
        %v755 = vmul.f32 %v752, 1.442695
        %v756 = vpow.pop %v755
        %v757 = vadd.f32 %v754, 1.0
        %v758 = vadd.f32 %v756, 1.0
        %v759 = vrcp.pop %v757
        %v760 = vmul.f32 1.0, %v759
        %v761 = vrcp.pop %v758
        %v762 = vmul.f32 1.0, %v761
        %v763 = vtanh.pop %v721
        %v764 = vtanh.pop %v722
        %v767 = vrot.slane %v763, 4
        %v768 = vrot.slane %v764, 4
        %v771 = vmul.f32 %v760, %v767
        %v772 = vmul.f32 %v762, %v768
        %v775 = vrot.slane %v771, 6
        %v776 = vrot.slane %v772, 6
        %779 = vst [vmem:[%s337] sm:$0x3] %v775
        %780 = vst [vmem:[%s337 + $0x8] sm:$0x3] %v776
        %v781 = vld [vmem:[%s293] sm:$0xc]
        %v782 = vld [vmem:[%s293 + $0x8] sm:$0xc]
        %v783 = vld [vmem:[%s5] sm:$0xff]
        %v784 = vld [vmem:[%s5 + $0x8] sm:$0xff]
        %v787 = vrot.slane %v781, 2
        %v788 = vrot.slane %v782, 2
        %v791 = vrot.slane %v781, 6
        %v792 = vrot.slane %v782, 6
        %v795 = vrot.slane %v781, 4
        %v796 = vrot.slane %v782, 4
        %v799 = vsel %vm364, %v787, %v781
        %v800 = vsel %vm364, %v788, %v782
        %v801 = vsel %vm367, %v799, %v791
        %v802 = vsel %vm367, %v800, %v792
        %v803 = vsel %vm370, %v801, %v795
        %v804 = vsel %vm370, %v802, %v796
        %v805 = vld [vmem:[#allocation7] sm:$0xff]
        %v806 = vld [vmem:[#allocation7 + $0x8] sm:$0xff]
        %807 = vrot.lane.b32.xlu0 %v803, 17
        %v808 = vpop.permute.xlu0 %807
        %809 = vrot.lane.b32.xlu0 %v804, 17
        %v810 = vpop.permute.xlu0 %809
        %v811 = vsel %vm381, %v808, %v810
        %v812 = vsel %vm381, %v810, %v808
        %v813 = vmul.f32 %v805, %v812
        %v814 = vmul.f32 %v806, %v811
        %v815 = vadd.f32 %v783, %v813
        %v816 = vadd.f32 %v784, %v814
        %v817 = vld [vmem:[%s388] sm:$0xff]
        %v818 = vld [vmem:[%s388 + $0x8] sm:$0xff]
        %819 = vrot.lane.b32.xlu0 %v803, 16
        %v820 = vpop.permute.xlu0 %819
        %821 = vrot.lane.b32.xlu0 %v804, 16
        %v822 = vpop.permute.xlu0 %821
        %v823 = vsel %vm395, %v820, %v822
        %v824 = vsel %vm395, %v822, %v820
        %v825 = vmul.f32 %v817, %v824
        %v826 = vmul.f32 %v818, %v823
        %v827 = vadd.f32 %v815, %v825
        %v828 = vadd.f32 %v816, %v826
        %v829 = vld [vmem:[%s402] sm:$0xff]
        %v830 = vld [vmem:[%s402 + $0x8] sm:$0xff]
        %831 = vrot.lane.b32.xlu0 %v803, 15
        %v832 = vpop.permute.xlu0 %831
        %833 = vrot.lane.b32.xlu0 %v804, 15
        %v834 = vpop.permute.xlu0 %833
        %v835 = vsel %vm409, %v832, %v834
        %v836 = vsel %vm409, %v834, %v832
        %v837 = vmul.f32 %v829, %v836
        %v838 = vmul.f32 %v830, %v835
        %v839 = vadd.f32 %v827, %v837
        %v840 = vadd.f32 %v828, %v838
        %v841 = vld [vmem:[%s416] sm:$0xff]
        %v842 = vld [vmem:[%s416 + $0x8] sm:$0xff]
        %843 = vrot.lane.b32.xlu0 %v803, 1
        %v844 = vpop.permute.xlu0 %843
        %845 = vrot.lane.b32.xlu0 %v804, 1
        %v846 = vpop.permute.xlu0 %845
        %v847 = vsel %vm423, %v844, %v846
        %v848 = vsel %vm423, %v846, %v844
        %v849 = vmul.f32 %v841, %v848
        %v850 = vmul.f32 %v842, %v847
        %v851 = vadd.f32 %v839, %v849
        %v852 = vadd.f32 %v840, %v850
        %v853 = vld [vmem:[%s430] sm:$0xff]
        %v854 = vld [vmem:[%s430 + $0x8] sm:$0xff]
        %v855 = vmul.f32 %v853, %v803
        %v856 = vmul.f32 %v854, %v804
        %v857 = vadd.f32 %v851, %v855
        %v858 = vadd.f32 %v852, %v856
        %v859 = vld [vmem:[%s437] sm:$0xff]
        %v860 = vld [vmem:[%s437 + $0x8] sm:$0xff]
        %861 = vrot.lane.b32.xlu0 %v803, 127
        %v862 = vpop.permute.xlu0 %861
        %863 = vrot.lane.b32.xlu0 %v804, 127
        %v864 = vpop.permute.xlu0 %863
        %v865 = vsel %vm444, %v862, %v864
        %v866 = vsel %vm444, %v864, %v862
        %v867 = vmul.f32 %v859, %v865
        %v868 = vmul.f32 %v860, %v866
        %v869 = vadd.f32 %v857, %v867
        %v870 = vadd.f32 %v858, %v868
        %v871 = vld [vmem:[%s451] sm:$0xff]
        %v872 = vld [vmem:[%s451 + $0x8] sm:$0xff]
        %873 = vrot.lane.b32.xlu0 %v803, 113
        %v874 = vpop.permute.xlu0 %873
        %875 = vrot.lane.b32.xlu0 %v804, 113
        %v876 = vpop.permute.xlu0 %875
        %v877 = vsel %vm458, %v874, %v876
        %v878 = vsel %vm458, %v876, %v874
        %v879 = vmul.f32 %v871, %v877
        %v880 = vmul.f32 %v872, %v878
        %v881 = vadd.f32 %v869, %v879
        %v882 = vadd.f32 %v870, %v880
        %v883 = vld [vmem:[%s465] sm:$0xff]
        %v884 = vld [vmem:[%s465 + $0x8] sm:$0xff]
        %885 = vrot.lane.b32.xlu0 %v803, 112
        %v886 = vpop.permute.xlu0 %885
        %887 = vrot.lane.b32.xlu0 %v804, 112
        %v888 = vpop.permute.xlu0 %887
        %v889 = vsel %vm472, %v886, %v888
        %v890 = vsel %vm472, %v888, %v886
        %v891 = vmul.f32 %v883, %v889
        %v892 = vmul.f32 %v884, %v890
        %v893 = vadd.f32 %v881, %v891
        %v894 = vadd.f32 %v882, %v892
        %v895 = vld [vmem:[%s479] sm:$0xff]
        %v896 = vld [vmem:[%s479 + $0x8] sm:$0xff]
        %897 = vrot.lane.b32.xlu0 %v803, 111
        %v898 = vpop.permute.xlu0 %897
        %899 = vrot.lane.b32.xlu0 %v804, 111
        %v900 = vpop.permute.xlu0 %899
        %v901 = vsel %vm486, %v898, %v900
        %v902 = vsel %vm486, %v900, %v898
        %v903 = vmul.f32 %v895, %v901
        %v904 = vmul.f32 %v896, %v902
        %v905 = vadd.f32 %v893, %v903
        %v906 = vadd.f32 %v894, %v904
        %v907 = vrot.slane %v771, 4
        %v908 = vrot.slane %v772, 4
        %v911 = vrot.slane %v771, 2
        %v912 = vrot.slane %v772, 2
        %v915 = vsel %vm364, %v775, %v907
        %v916 = vsel %vm364, %v776, %v908
        %v917 = vsel %vm367, %v915, %v911
        %v918 = vsel %vm367, %v916, %v912
        %v919 = vsel %vm370, %v917, %v771
        %v920 = vsel %vm370, %v918, %v772
        %v921 = vld [vmem:[%s525] sm:$0xff]
        %v922 = vld [vmem:[%s525 + $0x8] sm:$0xff]
        %923 = vrot.lane.b32.xlu0 %v919, 17
        %v924 = vpop.permute.xlu0 %923
        %925 = vrot.lane.b32.xlu0 %v920, 17
        %v926 = vpop.permute.xlu0 %925
        %v927 = vsel %vm381, %v924, %v926
        %v928 = vsel %vm381, %v926, %v924
        %v929 = vmul.f32 %v921, %v928
        %v930 = vmul.f32 %v922, %v927
        %v931 = vadd.f32 %v905, %v929
        %v932 = vadd.f32 %v906, %v930
        %v933 = vld [vmem:[%s538] sm:$0xff]
        %v934 = vld [vmem:[%s538 + $0x8] sm:$0xff]
        %935 = vrot.lane.b32.xlu0 %v919, 16
        %v936 = vpop.permute.xlu0 %935
        %937 = vrot.lane.b32.xlu0 %v920, 16
        %v938 = vpop.permute.xlu0 %937
        %v939 = vsel %vm395, %v936, %v938
        %v940 = vsel %vm395, %v938, %v936
        %v941 = vmul.f32 %v933, %v940
        %v942 = vmul.f32 %v934, %v939
        %v943 = vadd.f32 %v931, %v941
        %v944 = vadd.f32 %v932, %v942
        %v945 = vld [vmem:[%s551] sm:$0xff]
        %v946 = vld [vmem:[%s551 + $0x8] sm:$0xff]
        %947 = vrot.lane.b32.xlu0 %v919, 15
        %v948 = vpop.permute.xlu0 %947
        %949 = vrot.lane.b32.xlu0 %v920, 15
        %v950 = vpop.permute.xlu0 %949
        %v951 = vsel %vm409, %v948, %v950
        %v952 = vsel %vm409, %v950, %v948
        %v953 = vmul.f32 %v945, %v952
        %v954 = vmul.f32 %v946, %v951
        %v955 = vadd.f32 %v943, %v953
        %v956 = vadd.f32 %v944, %v954
        %v957 = vld [vmem:[%s564] sm:$0xff]
        %v958 = vld [vmem:[%s564 + $0x8] sm:$0xff]
        %959 = vrot.lane.b32.xlu0 %v919, 1
        %v960 = vpop.permute.xlu0 %959
        %961 = vrot.lane.b32.xlu0 %v920, 1
        %v962 = vpop.permute.xlu0 %961
        %v963 = vsel %vm423, %v960, %v962
        %v964 = vsel %vm423, %v962, %v960
        %v965 = vmul.f32 %v957, %v964
        %v966 = vmul.f32 %v958, %v963
        %v967 = vadd.f32 %v955, %v965
        %v968 = vadd.f32 %v956, %v966
        %v969 = vld [vmem:[%s577] sm:$0xff]
        %v970 = vld [vmem:[%s577 + $0x8] sm:$0xff]
        %v971 = vmul.f32 %v969, %v919
        %v972 = vmul.f32 %v970, %v920
        %v973 = vadd.f32 %v967, %v971
        %v974 = vadd.f32 %v968, %v972
        %v975 = vld [vmem:[%s584] sm:$0xff]
        %v976 = vld [vmem:[%s584 + $0x8] sm:$0xff]
        %977 = vrot.lane.b32.xlu0 %v919, 127
        %v978 = vpop.permute.xlu0 %977
        %979 = vrot.lane.b32.xlu0 %v920, 127
        %v980 = vpop.permute.xlu0 %979
        %v981 = vsel %vm444, %v978, %v980
        %v982 = vsel %vm444, %v980, %v978
        %v983 = vmul.f32 %v975, %v981
        %v984 = vmul.f32 %v976, %v982
        %v985 = vadd.f32 %v973, %v983
        %v986 = vadd.f32 %v974, %v984
        %v987 = vld [vmem:[%s597] sm:$0xff]
        %v988 = vld [vmem:[%s597 + $0x8] sm:$0xff]
        %989 = vrot.lane.b32.xlu0 %v919, 113
        %v990 = vpop.permute.xlu0 %989
        %991 = vrot.lane.b32.xlu0 %v920, 113
        %v992 = vpop.permute.xlu0 %991
        %v993 = vsel %vm458, %v990, %v992
        %v994 = vsel %vm458, %v992, %v990
        %v995 = vmul.f32 %v987, %v993
        %v996 = vmul.f32 %v988, %v994
        %v997 = vadd.f32 %v985, %v995
        %v998 = vadd.f32 %v986, %v996
        %v999 = vld [vmem:[%s610] sm:$0xff]
        %v1000 = vld [vmem:[%s610 + $0x8] sm:$0xff]
        %1001 = vrot.lane.b32.xlu0 %v919, 112
        %v1002 = vpop.permute.xlu0 %1001
        %1003 = vrot.lane.b32.xlu0 %v920, 112
        %v1004 = vpop.permute.xlu0 %1003
        %v1005 = vsel %vm472, %v1002, %v1004
        %v1006 = vsel %vm472, %v1004, %v1002
        %v1007 = vmul.f32 %v999, %v1005
        %v1008 = vmul.f32 %v1000, %v1006
        %v1009 = vadd.f32 %v997, %v1007
        %v1010 = vadd.f32 %v998, %v1008
        %v1011 = vld [vmem:[%s623] sm:$0xff]
        %v1012 = vld [vmem:[%s623 + $0x8] sm:$0xff]
        %1013 = vrot.lane.b32.xlu0 %v919, 111
        %v1014 = vpop.permute.xlu0 %1013
        %1015 = vrot.lane.b32.xlu0 %v920, 111
        %v1016 = vpop.permute.xlu0 %1015
        %v1017 = vsel %vm486, %v1014, %v1016
        %v1018 = vsel %vm486, %v1016, %v1014
        %v1019 = vmul.f32 %v1011, %v1017
        %v1020 = vmul.f32 %v1012, %v1018
        %v1021 = vadd.f32 %v1009, %v1019
        %v1022 = vadd.f32 %v1010, %v1020
        %v1023 = vld [vmem:[#allocation9] sm:$0xf]
        %v1024 = vmul.f32 %v1023, %v734
        %v1027 = vunpack.c.l.s4 1983009808
        %v1028 = vunpack.c.0.s8 %v1027
        %v1029 = vlaneseq
        %v1030 = vshrl.u32 %v1029, 7
        %v1031 = vsub.s32 %v1028, %v1030
        %v1032 = vrot.slane %v1024, %v1031
        %v1033 = vcombine.high %v1032, %v1032
        %v1036 = vadd.f32 %v1021, %v1032
        %v1037 = vadd.f32 %v1022, %v1033
        %v1038 = vxor.u32 %v1036, 2147483648
        %v1039 = vxor.u32 %v1037, 2147483648
        %v1040 = vmul.f32 %v1038, 1.442695
        %v1041 = vpow.pop %v1040
        %v1042 = vmul.f32 %v1039, 1.442695
        %v1043 = vpow.pop %v1042
        %v1044 = vadd.f32 %v1041, 1.0
        %v1045 = vadd.f32 %v1043, 1.0
        %v1046 = vrcp.pop %v1044
        %v1047 = vmul.f32 1.0, %v1046
        %v1048 = vrcp.pop %v1045
        %v1049 = vmul.f32 1.0, %v1048
        %v1050 = vld [vmem:[#allocation10] sm:$0xf]
        %v1051 = vmul.f32 %v1050, %v734
        %v1053 = vcombine.low %v1051, %v1051
        %v1055 = vunpack.c.l.s4 1983009808
        %v1056 = vunpack.c.0.s8 %v1055
        %v1057 = vlaneseq
        %v1058 = vshrl.u32 %v1057, 7
        %v1059 = vsub.s32 %v1056, %v1058
        %v1060 = vrot.slane %v1053, %v1059
        %v1061 = vcombine.high %v1060, %v1060
        %v1064 = vadd.f32 %v1021, %v1060
        %v1065 = vadd.f32 %v1022, %v1061
        %v1066 = vxor.u32 %v1064, 2147483648
        %v1067 = vxor.u32 %v1065, 2147483648
        %v1068 = vmul.f32 %v1066, 1.442695
        %v1069 = vpow.pop %v1068
        %v1070 = vmul.f32 %v1067, 1.442695
        %v1071 = vpow.pop %v1070
        %v1072 = vadd.f32 %v1069, 1.0
        %v1073 = vadd.f32 %v1071, 1.0
        %v1074 = vrcp.pop %v1072
        %v1075 = vmul.f32 1.0, %v1074
        %v1076 = vrcp.pop %v1073
        %v1077 = vmul.f32 1.0, %v1076
        %v1078 = vmul.f32 %v1075, %v721
        %v1079 = vmul.f32 %v1077, %v722
        %v1080 = vtanh.pop %v1021
        %v1081 = vtanh.pop %v1022
        %v1084 = vrot.slane %v1080, 4
        %v1085 = vrot.slane %v1081, 4
        %v1088 = vmul.f32 %v1047, %v1084
        %v1089 = vmul.f32 %v1049, %v1085
        %v1092 = vrot.slane %v1088, 6
        %v1093 = vrot.slane %v1089, 6
        %v1096 = vadd.f32 %v1078, %v1092
        %v1097 = vadd.f32 %v1079, %v1093
        %v1098 = vld [vmem:[#allocation12] sm:$0xf]
        %v1101 = vcombine.low %v1096, %v1097
        %v1103 = vunpack.c.l.s4 1983009808
        %v1104 = vunpack.c.0.s8 %v1103
        %v1105 = vlaneseq
        %v1106 = vshrl.u32 %v1105, 7
        %v1107 = vsub.s32 %v1104, %v1106
        %v1108 = vrot.slane %v1101, %v1107
        %v1109 = vcombine.high %v1108, %v1108
        %v1111 = vmul.f32 %v1098, %v1109
        %v1113 = vcombine.low %v1111, %v1111
        %v1115 = vunpack.c.l.s4 1983009808
        %v1116 = vunpack.c.0.s8 %v1115
        %v1117 = vlaneseq
        %v1118 = vshrl.u32 %v1117, 7
        %v1119 = vsub.s32 %v1116, %v1118
        %v1120 = vrot.slane %v1113, %v1119
        %v1121 = vcombine.low %v1120, %v1120
        %v1124 = vadd.f32 %v1021, %v1121
        %v1125 = vadd.f32 %v1022, %v1120
        %v1126 = vxor.u32 %v1124, 2147483648
        %v1127 = vxor.u32 %v1125, 2147483648
        %v1128 = vmul.f32 %v1126, 1.442695
        %v1129 = vpow.pop %v1128
        %v1130 = vmul.f32 %v1127, 1.442695
        %v1131 = vpow.pop %v1130
        %v1132 = vadd.f32 %v1129, 1.0
        %v1133 = vadd.f32 %v1131, 1.0
        %v1134 = vrcp.pop %v1132
        %v1135 = vmul.f32 1.0, %v1134
        %v1136 = vrcp.pop %v1133
        %v1137 = vmul.f32 1.0, %v1136
        %v1138 = vtanh.pop %v1096
        %v1139 = vtanh.pop %v1097
        %v1142 = vrot.slane %v1138, 4
        %v1143 = vrot.slane %v1139, 4
        %v1146 = vmul.f32 %v1135, %v1142
        %v1147 = vmul.f32 %v1137, %v1143
        %v1150 = vrot.slane %v1146, 4
        %v1151 = vrot.slane %v1147, 4
        %1154 = vst [vmem:[%s337] sm:$0xc] %v1150
        %1155 = vst [vmem:[%s337 + $0x8] sm:$0xc] %v1151
        %v1156 = vld [vmem:[%s293] sm:$0x30]
        %v1157 = vld [vmem:[%s293 + $0x8] sm:$0x30]
        %v1158 = vld [vmem:[%s5] sm:$0xff]
        %v1159 = vld [vmem:[%s5 + $0x8] sm:$0xff]
        %v1162 = vrot.slane %v1156, 4
        %v1163 = vrot.slane %v1157, 4
        %v1166 = vrot.slane %v1156, 2
        %v1167 = vrot.slane %v1157, 2
        %v1170 = vrot.slane %v1156, 6
        %v1171 = vrot.slane %v1157, 6
        %v1174 = vsel %vm364, %v1162, %v1166
        %v1175 = vsel %vm364, %v1163, %v1167
        %v1176 = vsel %vm367, %v1174, %v1156
        %v1177 = vsel %vm367, %v1175, %v1157
        %v1178 = vsel %vm370, %v1176, %v1170
        %v1179 = vsel %vm370, %v1177, %v1171
        %v1180 = vld [vmem:[#allocation7] sm:$0xff]
        %v1181 = vld [vmem:[#allocation7 + $0x8] sm:$0xff]
        %1182 = vrot.lane.b32.xlu0 %v1178, 17
        %v1183 = vpop.permute.xlu0 %1182
        %1184 = vrot.lane.b32.xlu0 %v1179, 17
        %v1185 = vpop.permute.xlu0 %1184
        %v1186 = vsel %vm381, %v1183, %v1185
        %v1187 = vsel %vm381, %v1185, %v1183
        %v1188 = vmul.f32 %v1180, %v1187
        %v1189 = vmul.f32 %v1181, %v1186
        %v1190 = vadd.f32 %v1158, %v1188
        %v1191 = vadd.f32 %v1159, %v1189
        %v1192 = vld [vmem:[%s388] sm:$0xff]
        %v1193 = vld [vmem:[%s388 + $0x8] sm:$0xff]
        %1194 = vrot.lane.b32.xlu0 %v1178, 16
        %v1195 = vpop.permute.xlu0 %1194
        %1196 = vrot.lane.b32.xlu0 %v1179, 16
        %v1197 = vpop.permute.xlu0 %1196
        %v1198 = vsel %vm395, %v1195, %v1197
        %v1199 = vsel %vm395, %v1197, %v1195
        %v1200 = vmul.f32 %v1192, %v1199
        %v1201 = vmul.f32 %v1193, %v1198
        %v1202 = vadd.f32 %v1190, %v1200
        %v1203 = vadd.f32 %v1191, %v1201
        %v1204 = vld [vmem:[%s402] sm:$0xff]
        %v1205 = vld [vmem:[%s402 + $0x8] sm:$0xff]
        %1206 = vrot.lane.b32.xlu0 %v1178, 15
        %v1207 = vpop.permute.xlu0 %1206
        %1208 = vrot.lane.b32.xlu0 %v1179, 15
        %v1209 = vpop.permute.xlu0 %1208
        %v1210 = vsel %vm409, %v1207, %v1209
        %v1211 = vsel %vm409, %v1209, %v1207
        %v1212 = vmul.f32 %v1204, %v1211
        %v1213 = vmul.f32 %v1205, %v1210
        %v1214 = vadd.f32 %v1202, %v1212
        %v1215 = vadd.f32 %v1203, %v1213
        %v1216 = vld [vmem:[%s416] sm:$0xff]
        %v1217 = vld [vmem:[%s416 + $0x8] sm:$0xff]
        %1218 = vrot.lane.b32.xlu0 %v1178, 1
        %v1219 = vpop.permute.xlu0 %1218
        %1220 = vrot.lane.b32.xlu0 %v1179, 1
        %v1221 = vpop.permute.xlu0 %1220
        %v1222 = vsel %vm423, %v1219, %v1221
        %v1223 = vsel %vm423, %v1221, %v1219
        %v1224 = vmul.f32 %v1216, %v1223
        %v1225 = vmul.f32 %v1217, %v1222
        %v1226 = vadd.f32 %v1214, %v1224
        %v1227 = vadd.f32 %v1215, %v1225
        %v1228 = vld [vmem:[%s430] sm:$0xff]
        %v1229 = vld [vmem:[%s430 + $0x8] sm:$0xff]
        %v1230 = vmul.f32 %v1228, %v1178
        %v1231 = vmul.f32 %v1229, %v1179
        %v1232 = vadd.f32 %v1226, %v1230
        %v1233 = vadd.f32 %v1227, %v1231
        %v1234 = vld [vmem:[%s437] sm:$0xff]
        %v1235 = vld [vmem:[%s437 + $0x8] sm:$0xff]
        %1236 = vrot.lane.b32.xlu0 %v1178, 127
        %v1237 = vpop.permute.xlu0 %1236
        %1238 = vrot.lane.b32.xlu0 %v1179, 127
        %v1239 = vpop.permute.xlu0 %1238
        %v1240 = vsel %vm444, %v1237, %v1239
        %v1241 = vsel %vm444, %v1239, %v1237
        %v1242 = vmul.f32 %v1234, %v1240
        %v1243 = vmul.f32 %v1235, %v1241
        %v1244 = vadd.f32 %v1232, %v1242
        %v1245 = vadd.f32 %v1233, %v1243
        %v1246 = vld [vmem:[%s451] sm:$0xff]
        %v1247 = vld [vmem:[%s451 + $0x8] sm:$0xff]
        %1248 = vrot.lane.b32.xlu0 %v1178, 113
        %v1249 = vpop.permute.xlu0 %1248
        %1250 = vrot.lane.b32.xlu0 %v1179, 113
        %v1251 = vpop.permute.xlu0 %1250
        %v1252 = vsel %vm458, %v1249, %v1251
        %v1253 = vsel %vm458, %v1251, %v1249
        %v1254 = vmul.f32 %v1246, %v1252
        %v1255 = vmul.f32 %v1247, %v1253
        %v1256 = vadd.f32 %v1244, %v1254
        %v1257 = vadd.f32 %v1245, %v1255
        %v1258 = vld [vmem:[%s465] sm:$0xff]
        %v1259 = vld [vmem:[%s465 + $0x8] sm:$0xff]
        %1260 = vrot.lane.b32.xlu0 %v1178, 112
        %v1261 = vpop.permute.xlu0 %1260
        %1262 = vrot.lane.b32.xlu0 %v1179, 112
        %v1263 = vpop.permute.xlu0 %1262
        %v1264 = vsel %vm472, %v1261, %v1263
        %v1265 = vsel %vm472, %v1263, %v1261
        %v1266 = vmul.f32 %v1258, %v1264
        %v1267 = vmul.f32 %v1259, %v1265
        %v1268 = vadd.f32 %v1256, %v1266
        %v1269 = vadd.f32 %v1257, %v1267
        %v1270 = vld [vmem:[%s479] sm:$0xff]
        %v1271 = vld [vmem:[%s479 + $0x8] sm:$0xff]
        %1272 = vrot.lane.b32.xlu0 %v1178, 111
        %v1273 = vpop.permute.xlu0 %1272
        %1274 = vrot.lane.b32.xlu0 %v1179, 111
        %v1275 = vpop.permute.xlu0 %1274
        %v1276 = vsel %vm486, %v1273, %v1275
        %v1277 = vsel %vm486, %v1275, %v1273
        %v1278 = vmul.f32 %v1270, %v1276
        %v1279 = vmul.f32 %v1271, %v1277
        %v1280 = vadd.f32 %v1268, %v1278
        %v1281 = vadd.f32 %v1269, %v1279
        %v1282 = vrot.slane %v1146, 6
        %v1283 = vrot.slane %v1147, 6
        %v1286 = vrot.slane %v1146, 2
        %v1287 = vrot.slane %v1147, 2
        %v1290 = vsel %vm364, %v1282, %v1150
        %v1291 = vsel %vm364, %v1283, %v1151
        %v1292 = vsel %vm367, %v1290, %v1286
        %v1293 = vsel %vm367, %v1291, %v1287
        %v1294 = vsel %vm370, %v1292, %v1146
        %v1295 = vsel %vm370, %v1293, %v1147
        %v1296 = vld [vmem:[%s525] sm:$0xff]
        %v1297 = vld [vmem:[%s525 + $0x8] sm:$0xff]
        %1298 = vrot.lane.b32.xlu0 %v1294, 17
        %v1299 = vpop.permute.xlu0 %1298
        %1300 = vrot.lane.b32.xlu0 %v1295, 17
        %v1301 = vpop.permute.xlu0 %1300
        %v1302 = vsel %vm381, %v1299, %v1301
        %v1303 = vsel %vm381, %v1301, %v1299
        %v1304 = vmul.f32 %v1296, %v1303
        %v1305 = vmul.f32 %v1297, %v1302
        %v1306 = vadd.f32 %v1280, %v1304
        %v1307 = vadd.f32 %v1281, %v1305
        %v1308 = vld [vmem:[%s538] sm:$0xff]
        %v1309 = vld [vmem:[%s538 + $0x8] sm:$0xff]
        %1310 = vrot.lane.b32.xlu0 %v1294, 16
        %v1311 = vpop.permute.xlu0 %1310
        %1312 = vrot.lane.b32.xlu0 %v1295, 16
        %v1313 = vpop.permute.xlu0 %1312
        %v1314 = vsel %vm395, %v1311, %v1313
        %v1315 = vsel %vm395, %v1313, %v1311
        %v1316 = vmul.f32 %v1308, %v1315
        %v1317 = vmul.f32 %v1309, %v1314
        %v1318 = vadd.f32 %v1306, %v1316
        %v1319 = vadd.f32 %v1307, %v1317
        %v1320 = vld [vmem:[%s551] sm:$0xff]
        %v1321 = vld [vmem:[%s551 + $0x8] sm:$0xff]
        %1322 = vrot.lane.b32.xlu0 %v1294, 15
        %v1323 = vpop.permute.xlu0 %1322
        %1324 = vrot.lane.b32.xlu0 %v1295, 15
        %v1325 = vpop.permute.xlu0 %1324
        %v1326 = vsel %vm409, %v1323, %v1325
        %v1327 = vsel %vm409, %v1325, %v1323
        %v1328 = vmul.f32 %v1320, %v1327
        %v1329 = vmul.f32 %v1321, %v1326
        %v1330 = vadd.f32 %v1318, %v1328
        %v1331 = vadd.f32 %v1319, %v1329
        %v1332 = vld [vmem:[%s564] sm:$0xff]
        %v1333 = vld [vmem:[%s564 + $0x8] sm:$0xff]
        %1334 = vrot.lane.b32.xlu0 %v1294, 1
        %v1335 = vpop.permute.xlu0 %1334
        %1336 = vrot.lane.b32.xlu0 %v1295, 1
        %v1337 = vpop.permute.xlu0 %1336
        %v1338 = vsel %vm423, %v1335, %v1337
        %v1339 = vsel %vm423, %v1337, %v1335
        %v1340 = vmul.f32 %v1332, %v1339
        %v1341 = vmul.f32 %v1333, %v1338
        %v1342 = vadd.f32 %v1330, %v1340
        %v1343 = vadd.f32 %v1331, %v1341
        %v1344 = vld [vmem:[%s577] sm:$0xff]
        %v1345 = vld [vmem:[%s577 + $0x8] sm:$0xff]
        %v1346 = vmul.f32 %v1344, %v1294
        %v1347 = vmul.f32 %v1345, %v1295
        %v1348 = vadd.f32 %v1342, %v1346
        %v1349 = vadd.f32 %v1343, %v1347
        %v1350 = vld [vmem:[%s584] sm:$0xff]
        %v1351 = vld [vmem:[%s584 + $0x8] sm:$0xff]
        %1352 = vrot.lane.b32.xlu0 %v1294, 127
        %v1353 = vpop.permute.xlu0 %1352
        %1354 = vrot.lane.b32.xlu0 %v1295, 127
        %v1355 = vpop.permute.xlu0 %1354
        %v1356 = vsel %vm444, %v1353, %v1355
        %v1357 = vsel %vm444, %v1355, %v1353
        %v1358 = vmul.f32 %v1350, %v1356
        %v1359 = vmul.f32 %v1351, %v1357
        %v1360 = vadd.f32 %v1348, %v1358
        %v1361 = vadd.f32 %v1349, %v1359
        %v1362 = vld [vmem:[%s597] sm:$0xff]
        %v1363 = vld [vmem:[%s597 + $0x8] sm:$0xff]
        %1364 = vrot.lane.b32.xlu0 %v1294, 113
        %v1365 = vpop.permute.xlu0 %1364
        %1366 = vrot.lane.b32.xlu0 %v1295, 113
        %v1367 = vpop.permute.xlu0 %1366
        %v1368 = vsel %vm458, %v1365, %v1367
        %v1369 = vsel %vm458, %v1367, %v1365
        %v1370 = vmul.f32 %v1362, %v1368
        %v1371 = vmul.f32 %v1363, %v1369
        %v1372 = vadd.f32 %v1360, %v1370
        %v1373 = vadd.f32 %v1361, %v1371
        %v1374 = vld [vmem:[%s610] sm:$0xff]
        %v1375 = vld [vmem:[%s610 + $0x8] sm:$0xff]
        %1376 = vrot.lane.b32.xlu0 %v1294, 112
        %v1377 = vpop.permute.xlu0 %1376
        %1378 = vrot.lane.b32.xlu0 %v1295, 112
        %v1379 = vpop.permute.xlu0 %1378
        %v1380 = vsel %vm472, %v1377, %v1379
        %v1381 = vsel %vm472, %v1379, %v1377
        %v1382 = vmul.f32 %v1374, %v1380
        %v1383 = vmul.f32 %v1375, %v1381
        %v1384 = vadd.f32 %v1372, %v1382
        %v1385 = vadd.f32 %v1373, %v1383
        %v1386 = vld [vmem:[%s623] sm:$0xff]
        %v1387 = vld [vmem:[%s623 + $0x8] sm:$0xff]
        %1388 = vrot.lane.b32.xlu0 %v1294, 111
        %v1389 = vpop.permute.xlu0 %1388
        %1390 = vrot.lane.b32.xlu0 %v1295, 111
        %v1391 = vpop.permute.xlu0 %1390
        %v1392 = vsel %vm486, %v1389, %v1391
        %v1393 = vsel %vm486, %v1391, %v1389
        %v1394 = vmul.f32 %v1386, %v1392
        %v1395 = vmul.f32 %v1387, %v1393
        %v1396 = vadd.f32 %v1384, %v1394
        %v1397 = vadd.f32 %v1385, %v1395
        %v1398 = vld [vmem:[#allocation9] sm:$0xf]
        %v1399 = vmul.f32 %v1398, %v1109
        %v1402 = vunpack.c.l.s4 1983009808
        %v1403 = vunpack.c.0.s8 %v1402
        %v1404 = vlaneseq
        %v1405 = vshrl.u32 %v1404, 7
        %v1406 = vsub.s32 %v1403, %v1405
        %v1407 = vrot.slane %v1399, %v1406
        %v1408 = vcombine.high %v1407, %v1407
        %v1411 = vadd.f32 %v1396, %v1407
        %v1412 = vadd.f32 %v1397, %v1408
        %v1413 = vxor.u32 %v1411, 2147483648
        %v1414 = vxor.u32 %v1412, 2147483648
        %v1415 = vmul.f32 %v1413, 1.442695
        %v1416 = vpow.pop %v1415
        %v1417 = vmul.f32 %v1414, 1.442695
        %v1418 = vpow.pop %v1417
        %v1419 = vadd.f32 %v1416, 1.0
        %v1420 = vadd.f32 %v1418, 1.0
        %v1421 = vrcp.pop %v1419
        %v1422 = vmul.f32 1.0, %v1421
        %v1423 = vrcp.pop %v1420
        %v1424 = vmul.f32 1.0, %v1423
        %v1425 = vld [vmem:[#allocation10] sm:$0xf]
        %v1426 = vmul.f32 %v1425, %v1109
        %v1428 = vcombine.low %v1426, %v1426
        %v1430 = vunpack.c.l.s4 1983009808
        %v1431 = vunpack.c.0.s8 %v1430
        %v1432 = vlaneseq
        %v1433 = vshrl.u32 %v1432, 7
        %v1434 = vsub.s32 %v1431, %v1433
        %v1435 = vrot.slane %v1428, %v1434
        %v1436 = vcombine.high %v1435, %v1435
        %v1439 = vadd.f32 %v1396, %v1435
        %v1440 = vadd.f32 %v1397, %v1436
        %v1441 = vxor.u32 %v1439, 2147483648
        %v1442 = vxor.u32 %v1440, 2147483648
        %v1443 = vmul.f32 %v1441, 1.442695
        %v1444 = vpow.pop %v1443
        %v1445 = vmul.f32 %v1442, 1.442695
        %v1446 = vpow.pop %v1445
        %v1447 = vadd.f32 %v1444, 1.0
        %v1448 = vadd.f32 %v1446, 1.0
        %v1449 = vrcp.pop %v1447
        %v1450 = vmul.f32 1.0, %v1449
        %v1451 = vrcp.pop %v1448
        %v1452 = vmul.f32 1.0, %v1451
        %v1453 = vmul.f32 %v1450, %v1096
        %v1454 = vmul.f32 %v1452, %v1097
        %v1455 = vtanh.pop %v1396
        %v1456 = vtanh.pop %v1397
        %v1459 = vrot.slane %v1455, 4
        %v1460 = vrot.slane %v1456, 4
        %v1463 = vmul.f32 %v1422, %v1459
        %v1464 = vmul.f32 %v1424, %v1460
        %v1467 = vrot.slane %v1463, 6
        %v1468 = vrot.slane %v1464, 6
        %v1471 = vadd.f32 %v1453, %v1467
        %v1472 = vadd.f32 %v1454, %v1468
        %v1473 = vld [vmem:[#allocation12] sm:$0xf]
        %v1476 = vcombine.low %v1471, %v1472
        %v1478 = vunpack.c.l.s4 1983009808
        %v1479 = vunpack.c.0.s8 %v1478
        %v1480 = vlaneseq
        %v1481 = vshrl.u32 %v1480, 7
        %v1482 = vsub.s32 %v1479, %v1481
        %v1483 = vrot.slane %v1476, %v1482
        %v1484 = vcombine.high %v1483, %v1483
        %v1486 = vmul.f32 %v1473, %v1484
        %v1488 = vcombine.low %v1486, %v1486
        %v1490 = vunpack.c.l.s4 1983009808
        %v1491 = vunpack.c.0.s8 %v1490
        %v1492 = vlaneseq
        %v1493 = vshrl.u32 %v1492, 7
        %v1494 = vsub.s32 %v1491, %v1493
        %v1495 = vrot.slane %v1488, %v1494
        %v1496 = vcombine.low %v1495, %v1495
        %v1499 = vadd.f32 %v1396, %v1496
        %v1500 = vadd.f32 %v1397, %v1495
        %v1501 = vxor.u32 %v1499, 2147483648
        %v1502 = vxor.u32 %v1500, 2147483648
        %v1503 = vmul.f32 %v1501, 1.442695
        %v1504 = vpow.pop %v1503
        %v1505 = vmul.f32 %v1502, 1.442695
        %v1506 = vpow.pop %v1505
        %v1507 = vadd.f32 %v1504, 1.0
        %v1508 = vadd.f32 %v1506, 1.0
        %v1509 = vrcp.pop %v1507
        %v1510 = vmul.f32 1.0, %v1509
        %v1511 = vrcp.pop %v1508
        %v1512 = vmul.f32 1.0, %v1511
        %v1513 = vtanh.pop %v1471
        %v1514 = vtanh.pop %v1472
        %v1517 = vrot.slane %v1513, 4
        %v1518 = vrot.slane %v1514, 4
        %v1521 = vmul.f32 %v1510, %v1517
        %v1522 = vmul.f32 %v1512, %v1518
        %v1525 = vrot.slane %v1521, 2
        %v1526 = vrot.slane %v1522, 2
        %1529 = vst [vmem:[%s337] sm:$0x30] %v1525
        %1530 = vst [vmem:[%s337 + $0x8] sm:$0x30] %v1526
        %v1531 = vld [vmem:[%s293] sm:$0xc0]
        %v1532 = vld [vmem:[%s293 + $0x8] sm:$0xc0]
        %v1533 = vld [vmem:[%s5] sm:$0xff]
        %v1534 = vld [vmem:[%s5 + $0x8] sm:$0xff]
        %v1537 = vrot.slane %v1531, 6
        %v1538 = vrot.slane %v1532, 6
        %v1541 = vrot.slane %v1531, 4
        %v1542 = vrot.slane %v1532, 4
        %v1545 = vrot.slane %v1531, 2
        %v1546 = vrot.slane %v1532, 2
        %v1549 = vsel %vm364, %v1537, %v1541
        %v1550 = vsel %vm364, %v1538, %v1542
        %v1551 = vsel %vm367, %v1549, %v1545
        %v1552 = vsel %vm367, %v1550, %v1546
        %v1553 = vsel %vm370, %v1551, %v1531
        %v1554 = vsel %vm370, %v1552, %v1532
        %v1555 = vld [vmem:[#allocation7] sm:$0xff]
        %v1556 = vld [vmem:[#allocation7 + $0x8] sm:$0xff]
        %1557 = vrot.lane.b32.xlu0 %v1553, 17
        %v1558 = vpop.permute.xlu0 %1557
        %1559 = vrot.lane.b32.xlu0 %v1554, 17
        %v1560 = vpop.permute.xlu0 %1559
        %v1561 = vsel %vm381, %v1558, %v1560
        %v1562 = vsel %vm381, %v1560, %v1558
        %v1563 = vmul.f32 %v1555, %v1562
        %v1564 = vmul.f32 %v1556, %v1561
        %v1565 = vadd.f32 %v1533, %v1563
        %v1566 = vadd.f32 %v1534, %v1564
        %v1567 = vld [vmem:[%s388] sm:$0xff]
        %v1568 = vld [vmem:[%s388 + $0x8] sm:$0xff]
        %1569 = vrot.lane.b32.xlu0 %v1553, 16
        %v1570 = vpop.permute.xlu0 %1569
        %1571 = vrot.lane.b32.xlu0 %v1554, 16
        %v1572 = vpop.permute.xlu0 %1571
        %v1573 = vsel %vm395, %v1570, %v1572
        %v1574 = vsel %vm395, %v1572, %v1570
        %v1575 = vmul.f32 %v1567, %v1574
        %v1576 = vmul.f32 %v1568, %v1573
        %v1577 = vadd.f32 %v1565, %v1575
        %v1578 = vadd.f32 %v1566, %v1576
        %v1579 = vld [vmem:[%s402] sm:$0xff]
        %v1580 = vld [vmem:[%s402 + $0x8] sm:$0xff]
        %1581 = vrot.lane.b32.xlu0 %v1553, 15
        %v1582 = vpop.permute.xlu0 %1581
        %1583 = vrot.lane.b32.xlu0 %v1554, 15
        %v1584 = vpop.permute.xlu0 %1583
        %v1585 = vsel %vm409, %v1582, %v1584
        %v1586 = vsel %vm409, %v1584, %v1582
        %v1587 = vmul.f32 %v1579, %v1586
        %v1588 = vmul.f32 %v1580, %v1585
        %v1589 = vadd.f32 %v1577, %v1587
        %v1590 = vadd.f32 %v1578, %v1588
        %v1591 = vld [vmem:[%s416] sm:$0xff]
        %v1592 = vld [vmem:[%s416 + $0x8] sm:$0xff]
        %1593 = vrot.lane.b32.xlu0 %v1553, 1
        %v1594 = vpop.permute.xlu0 %1593
        %1595 = vrot.lane.b32.xlu0 %v1554, 1
        %v1596 = vpop.permute.xlu0 %1595
        %v1597 = vsel %vm423, %v1594, %v1596
        %v1598 = vsel %vm423, %v1596, %v1594
        %v1599 = vmul.f32 %v1591, %v1598
        %v1600 = vmul.f32 %v1592, %v1597
        %v1601 = vadd.f32 %v1589, %v1599
        %v1602 = vadd.f32 %v1590, %v1600
        %v1603 = vld [vmem:[%s430] sm:$0xff]
        %v1604 = vld [vmem:[%s430 + $0x8] sm:$0xff]
        %v1605 = vmul.f32 %v1603, %v1553
        %v1606 = vmul.f32 %v1604, %v1554
        %v1607 = vadd.f32 %v1601, %v1605
        %v1608 = vadd.f32 %v1602, %v1606
        %v1609 = vld [vmem:[%s437] sm:$0xff]
        %v1610 = vld [vmem:[%s437 + $0x8] sm:$0xff]
        %1611 = vrot.lane.b32.xlu0 %v1553, 127
        %v1612 = vpop.permute.xlu0 %1611
        %1613 = vrot.lane.b32.xlu0 %v1554, 127
        %v1614 = vpop.permute.xlu0 %1613
        %v1615 = vsel %vm444, %v1612, %v1614
        %v1616 = vsel %vm444, %v1614, %v1612
        %v1617 = vmul.f32 %v1609, %v1615
        %v1618 = vmul.f32 %v1610, %v1616
        %v1619 = vadd.f32 %v1607, %v1617
        %v1620 = vadd.f32 %v1608, %v1618
        %v1621 = vld [vmem:[%s451] sm:$0xff]
        %v1622 = vld [vmem:[%s451 + $0x8] sm:$0xff]
        %1623 = vrot.lane.b32.xlu0 %v1553, 113
        %v1624 = vpop.permute.xlu0 %1623
        %1625 = vrot.lane.b32.xlu0 %v1554, 113
        %v1626 = vpop.permute.xlu0 %1625
        %v1627 = vsel %vm458, %v1624, %v1626
        %v1628 = vsel %vm458, %v1626, %v1624
        %v1629 = vmul.f32 %v1621, %v1627
        %v1630 = vmul.f32 %v1622, %v1628
        %v1631 = vadd.f32 %v1619, %v1629
        %v1632 = vadd.f32 %v1620, %v1630
        %v1633 = vld [vmem:[%s465] sm:$0xff]
        %v1634 = vld [vmem:[%s465 + $0x8] sm:$0xff]
        %1635 = vrot.lane.b32.xlu0 %v1553, 112
        %v1636 = vpop.permute.xlu0 %1635
        %1637 = vrot.lane.b32.xlu0 %v1554, 112
        %v1638 = vpop.permute.xlu0 %1637
        %v1639 = vsel %vm472, %v1636, %v1638
        %v1640 = vsel %vm472, %v1638, %v1636
        %v1641 = vmul.f32 %v1633, %v1639
        %v1642 = vmul.f32 %v1634, %v1640
        %v1643 = vadd.f32 %v1631, %v1641
        %v1644 = vadd.f32 %v1632, %v1642
        %v1645 = vld [vmem:[%s479] sm:$0xff]
        %v1646 = vld [vmem:[%s479 + $0x8] sm:$0xff]
        %1647 = vrot.lane.b32.xlu0 %v1553, 111
        %v1648 = vpop.permute.xlu0 %1647
        %1649 = vrot.lane.b32.xlu0 %v1554, 111
        %v1650 = vpop.permute.xlu0 %1649
        %v1651 = vsel %vm486, %v1648, %v1650
        %v1652 = vsel %vm486, %v1650, %v1648
        %v1653 = vmul.f32 %v1645, %v1651
        %v1654 = vmul.f32 %v1646, %v1652
        %v1655 = vadd.f32 %v1643, %v1653
        %v1656 = vadd.f32 %v1644, %v1654
        %v1657 = vrot.slane %v1521, 6
        %v1658 = vrot.slane %v1522, 6
        %v1661 = vrot.slane %v1521, 4
        %v1662 = vrot.slane %v1522, 4
        %v1665 = vsel %vm364, %v1657, %v1661
        %v1666 = vsel %vm364, %v1658, %v1662
        %v1667 = vsel %vm367, %v1665, %v1525
        %v1668 = vsel %vm367, %v1666, %v1526
        %v1669 = vsel %vm370, %v1667, %v1521
        %v1670 = vsel %vm370, %v1668, %v1522
        %v1671 = vld [vmem:[%s525] sm:$0xff]
        %v1672 = vld [vmem:[%s525 + $0x8] sm:$0xff]
        %1673 = vrot.lane.b32.xlu0 %v1669, 17
        %v1674 = vpop.permute.xlu0 %1673
        %1675 = vrot.lane.b32.xlu0 %v1670, 17
        %v1676 = vpop.permute.xlu0 %1675
        %v1677 = vsel %vm381, %v1674, %v1676
        %v1678 = vsel %vm381, %v1676, %v1674
        %v1679 = vmul.f32 %v1671, %v1678
        %v1680 = vmul.f32 %v1672, %v1677
        %v1681 = vadd.f32 %v1655, %v1679
        %v1682 = vadd.f32 %v1656, %v1680
        %v1683 = vld [vmem:[%s538] sm:$0xff]
        %v1684 = vld [vmem:[%s538 + $0x8] sm:$0xff]
        %1685 = vrot.lane.b32.xlu0 %v1669, 16
        %v1686 = vpop.permute.xlu0 %1685
        %1687 = vrot.lane.b32.xlu0 %v1670, 16
        %v1688 = vpop.permute.xlu0 %1687
        %v1689 = vsel %vm395, %v1686, %v1688
        %v1690 = vsel %vm395, %v1688, %v1686
        %v1691 = vmul.f32 %v1683, %v1690
        %v1692 = vmul.f32 %v1684, %v1689
        %v1693 = vadd.f32 %v1681, %v1691
        %v1694 = vadd.f32 %v1682, %v1692
        %v1695 = vld [vmem:[%s551] sm:$0xff]
        %v1696 = vld [vmem:[%s551 + $0x8] sm:$0xff]
        %1697 = vrot.lane.b32.xlu0 %v1669, 15
        %v1698 = vpop.permute.xlu0 %1697
        %1699 = vrot.lane.b32.xlu0 %v1670, 15
        %v1700 = vpop.permute.xlu0 %1699
        %v1701 = vsel %vm409, %v1698, %v1700
        %v1702 = vsel %vm409, %v1700, %v1698
        %v1703 = vmul.f32 %v1695, %v1702
        %v1704 = vmul.f32 %v1696, %v1701
        %v1705 = vadd.f32 %v1693, %v1703
        %v1706 = vadd.f32 %v1694, %v1704
        %v1707 = vld [vmem:[%s564] sm:$0xff]
        %v1708 = vld [vmem:[%s564 + $0x8] sm:$0xff]
        %1709 = vrot.lane.b32.xlu0 %v1669, 1
        %v1710 = vpop.permute.xlu0 %1709
        %1711 = vrot.lane.b32.xlu0 %v1670, 1
        %v1712 = vpop.permute.xlu0 %1711
        %v1713 = vsel %vm423, %v1710, %v1712
        %v1714 = vsel %vm423, %v1712, %v1710
        %v1715 = vmul.f32 %v1707, %v1714
        %v1716 = vmul.f32 %v1708, %v1713
        %v1717 = vadd.f32 %v1705, %v1715
        %v1718 = vadd.f32 %v1706, %v1716
        %v1719 = vld [vmem:[%s577] sm:$0xff]
        %v1720 = vld [vmem:[%s577 + $0x8] sm:$0xff]
        %v1721 = vmul.f32 %v1719, %v1669
        %v1722 = vmul.f32 %v1720, %v1670
        %v1723 = vadd.f32 %v1717, %v1721
        %v1724 = vadd.f32 %v1718, %v1722
        %v1725 = vld [vmem:[%s584] sm:$0xff]
        %v1726 = vld [vmem:[%s584 + $0x8] sm:$0xff]
        %1727 = vrot.lane.b32.xlu0 %v1669, 127
        %v1728 = vpop.permute.xlu0 %1727
        %1729 = vrot.lane.b32.xlu0 %v1670, 127
        %v1730 = vpop.permute.xlu0 %1729
        %v1731 = vsel %vm444, %v1728, %v1730
        %v1732 = vsel %vm444, %v1730, %v1728
        %v1733 = vmul.f32 %v1725, %v1731
        %v1734 = vmul.f32 %v1726, %v1732
        %v1735 = vadd.f32 %v1723, %v1733
        %v1736 = vadd.f32 %v1724, %v1734
        %v1737 = vld [vmem:[%s597] sm:$0xff]
        %v1738 = vld [vmem:[%s597 + $0x8] sm:$0xff]
        %1739 = vrot.lane.b32.xlu0 %v1669, 113
        %v1740 = vpop.permute.xlu0 %1739
        %1741 = vrot.lane.b32.xlu0 %v1670, 113
        %v1742 = vpop.permute.xlu0 %1741
        %v1743 = vsel %vm458, %v1740, %v1742
        %v1744 = vsel %vm458, %v1742, %v1740
        %v1745 = vmul.f32 %v1737, %v1743
        %v1746 = vmul.f32 %v1738, %v1744
        %v1747 = vadd.f32 %v1735, %v1745
        %v1748 = vadd.f32 %v1736, %v1746
        %v1749 = vld [vmem:[%s610] sm:$0xff]
        %v1750 = vld [vmem:[%s610 + $0x8] sm:$0xff]
        %1751 = vrot.lane.b32.xlu0 %v1669, 112
        %v1752 = vpop.permute.xlu0 %1751
        %1753 = vrot.lane.b32.xlu0 %v1670, 112
        %v1754 = vpop.permute.xlu0 %1753
        %v1755 = vsel %vm472, %v1752, %v1754
        %v1756 = vsel %vm472, %v1754, %v1752
        %v1757 = vmul.f32 %v1749, %v1755
        %v1758 = vmul.f32 %v1750, %v1756
        %v1759 = vadd.f32 %v1747, %v1757
        %v1760 = vadd.f32 %v1748, %v1758
        %v1761 = vld [vmem:[%s623] sm:$0xff]
        %v1762 = vld [vmem:[%s623 + $0x8] sm:$0xff]
        %1763 = vrot.lane.b32.xlu0 %v1669, 111
        %v1764 = vpop.permute.xlu0 %1763
        %1765 = vrot.lane.b32.xlu0 %v1670, 111
        %v1766 = vpop.permute.xlu0 %1765
        %v1767 = vsel %vm486, %v1764, %v1766
        %v1768 = vsel %vm486, %v1766, %v1764
        %v1769 = vmul.f32 %v1761, %v1767
        %v1770 = vmul.f32 %v1762, %v1768
        %v1771 = vadd.f32 %v1759, %v1769
        %v1772 = vadd.f32 %v1760, %v1770
        %v1773 = vld [vmem:[#allocation9] sm:$0xf]
        %v1774 = vmul.f32 %v1773, %v1484
        %v1777 = vunpack.c.l.s4 1983009808
        %v1778 = vunpack.c.0.s8 %v1777
        %v1779 = vlaneseq
        %v1780 = vshrl.u32 %v1779, 7
        %v1781 = vsub.s32 %v1778, %v1780
        %v1782 = vrot.slane %v1774, %v1781
        %v1783 = vcombine.high %v1782, %v1782
        %v1786 = vadd.f32 %v1771, %v1782
        %v1787 = vadd.f32 %v1772, %v1783
        %v1788 = vxor.u32 %v1786, 2147483648
        %v1789 = vxor.u32 %v1787, 2147483648
        %v1790 = vmul.f32 %v1788, 1.442695
        %v1791 = vpow.pop %v1790
        %v1792 = vmul.f32 %v1789, 1.442695
        %v1793 = vpow.pop %v1792
        %v1794 = vadd.f32 %v1791, 1.0
        %v1795 = vadd.f32 %v1793, 1.0
        %v1796 = vrcp.pop %v1794
        %v1797 = vmul.f32 1.0, %v1796
        %v1798 = vrcp.pop %v1795
        %v1799 = vmul.f32 1.0, %v1798
        %v1800 = vld [vmem:[#allocation10] sm:$0xf]
        %v1801 = vmul.f32 %v1800, %v1484
        %v1803 = vcombine.low %v1801, %v1801
        %v1805 = vunpack.c.l.s4 1983009808
        %v1806 = vunpack.c.0.s8 %v1805
        %v1807 = vlaneseq
        %v1808 = vshrl.u32 %v1807, 7
        %v1809 = vsub.s32 %v1806, %v1808
        %v1810 = vrot.slane %v1803, %v1809
        %v1811 = vcombine.high %v1810, %v1810
        %v1814 = vadd.f32 %v1771, %v1810
        %v1815 = vadd.f32 %v1772, %v1811
        %v1816 = vxor.u32 %v1814, 2147483648
        %v1817 = vxor.u32 %v1815, 2147483648
        %v1818 = vmul.f32 %v1816, 1.442695
        %v1819 = vpow.pop %v1818
        %v1820 = vmul.f32 %v1817, 1.442695
        %v1821 = vpow.pop %v1820
        %v1822 = vadd.f32 %v1819, 1.0
        %v1823 = vadd.f32 %v1821, 1.0
        %v1824 = vrcp.pop %v1822
        %v1825 = vmul.f32 1.0, %v1824
        %v1826 = vrcp.pop %v1823
        %v1827 = vmul.f32 1.0, %v1826
        %v1828 = vmul.f32 %v1825, %v1471
        %v1829 = vmul.f32 %v1827, %v1472
        %v1830 = vtanh.pop %v1771
        %v1831 = vtanh.pop %v1772
        %v1834 = vrot.slane %v1830, 4
        %v1835 = vrot.slane %v1831, 4
        %v1838 = vmul.f32 %v1797, %v1834
        %v1839 = vmul.f32 %v1799, %v1835
        %v1842 = vrot.slane %v1838, 6
        %v1843 = vrot.slane %v1839, 6
        %v1846 = vadd.f32 %v1828, %v1842
        %v1847 = vadd.f32 %v1829, %v1843
        %v1848 = vld [vmem:[#allocation12] sm:$0xf]
        %v1851 = vcombine.low %v1846, %v1847
        %v1853 = vunpack.c.l.s4 1983009808
        %v1854 = vunpack.c.0.s8 %v1853
        %v1855 = vlaneseq
        %v1856 = vshrl.u32 %v1855, 7
        %v1857 = vsub.s32 %v1854, %v1856
        %v1858 = vrot.slane %v1851, %v1857
        %v1859 = vcombine.high %v1858, %v1858
        %v1861 = vmul.f32 %v1848, %v1859
        %v1863 = vcombine.low %v1861, %v1861
        %v1865 = vunpack.c.l.s4 1983009808
        %v1866 = vunpack.c.0.s8 %v1865
        %v1867 = vlaneseq
        %v1868 = vshrl.u32 %v1867, 7
        %v1869 = vsub.s32 %v1866, %v1868
        %v1870 = vrot.slane %v1863, %v1869
        %v1871 = vcombine.low %v1870, %v1870
        %v1874 = vadd.f32 %v1771, %v1871
        %v1875 = vadd.f32 %v1772, %v1870
        %v1876 = vxor.u32 %v1874, 2147483648
        %v1877 = vxor.u32 %v1875, 2147483648
        %v1878 = vmul.f32 %v1876, 1.442695
        %v1879 = vpow.pop %v1878
        %v1880 = vmul.f32 %v1877, 1.442695
        %v1881 = vpow.pop %v1880
        %v1882 = vadd.f32 %v1879, 1.0
        %v1883 = vadd.f32 %v1881, 1.0
        %v1884 = vrcp.pop %v1882
        %v1885 = vmul.f32 1.0, %v1884
        %v1886 = vrcp.pop %v1883
        %v1887 = vmul.f32 1.0, %v1886
        %v1888 = vtanh.pop %v1846
        %v1889 = vtanh.pop %v1847
        %v1892 = vrot.slane %v1888, 4
        %v1893 = vrot.slane %v1889, 4
        %v1896 = vmul.f32 %v1885, %v1892
        %v1897 = vmul.f32 %v1887, %v1893
        %1898 = vst [vmem:[%s337] sm:$0xc0] %v1896
        %1899 = vst [vmem:[%s337 + $0x8] sm:$0xc0] %v1897
        %v1902 = vcombine.high %v1896, %v1897
        %v1904 = vunpack.c.l.s4 1983009808
        %v1905 = vunpack.c.0.s8 %v1904
        %v1906 = vlaneseq
        %v1907 = vshrl.u32 %v1906, 7
        %v1908 = vsub.s32 %v1905, %v1907
        %v1909 = vrot.slane %v1902, %v1908
        %v1910 = vcombine.high %v1909, %v1909
        %1912 = vst [vmem:[#allocation2] sm:$0xf] %v1910
        %1913 = vst [vmem:[#allocation3] sm:$0xf] %v1859
        %s1914 = sand.u32 %s180, 1
        %s1915 = scalar_lea.sflag [#allocation6], %s1914
        %s1916 = sand.u32 %s180, 1
        %s1917 = smul.addr %s1916, 16
        %s1918 = scalar_lea.vmem [#allocation13], %s1917
        // Predicated region
        $region69: #{tpu_custom_call.1} parent=43 // pred_check
          %p1919 = pneg %p190
        $region70: #{tpu_custom_call.1} parent=43 // pred_check_branch
          %1921 = sbr.rel (%p1919) target = $region72
        $region71: #{tpu_custom_call.1} parent=43 // pred_region
          %s1923 = ssub.s32 256, 256
          %1924 = vsyncadd %s1915, %s1923
          %s1925 = smul.addr %s30, 2
          %s1926 = smul.addr %s29, 4
          %s1927 = sadd.s32 %s1925, %s1926
          %s1928 = smul.addr %s1927, 128
          %s1929 = scalar_lea.hbm %s6, %s1928
          %s1931 = sshll.u32 %s1918, 4
          %s1932 = int_to_ptr.vmem [resolvable:$true] %s1931
          %1934 = dma.vmem_to_hbm [thread:$0]  %s1932, 256, %s1929, %s1915
        $region72: #{tpu_custom_call.1} parent=43 // pred_fallthru
          _
      $region44: #{tpu_custom_call.1} parent=5 // pred_fallthru
        _
      %p1935 = scmp.le.s32.totalorder 2, %s20
      // Predicated region
      $region73: #{tpu_custom_call.1} parent=5 // pred_check
        %p1936 = pneg %p1935
      $region74: #{tpu_custom_call.1} parent=5 // pred_check_branch
        %1938 = sbr.rel (%p1936) target = $region76
      $region75: #{tpu_custom_call.1} parent=5 // pred_region
        %s1939 = ssub.s32 %s20, 2
        // Predicated region
        $region77: #{tpu_custom_call.1} parent=75 // pred_check
          %p1940 = pneg %p196
        $region78: #{tpu_custom_call.1} parent=75 // pred_check_branch
          %1942 = sbr.rel (%p1940) target = $region80
        $region79: #{tpu_custom_call.1} parent=75 // pred_region
          %s1943 = sand.u32 %s181, 1
          %s1944 = scalar_lea.sflag [#allocation6], %s1943
          %s1945 = sand.u32 %s181, 1
          %s1946 = smul.addr %s1945, 16
          %s1947 = scalar_lea.vmem [#allocation13], %s1946
          %1948 = dma.done %s1944, 256
        $region80: #{tpu_custom_call.1} parent=75 // pred_fallthru
          _
      $region76: #{tpu_custom_call.1} parent=5 // pred_fallthru
        _
    $region6: #{tpu_custom_call.1} parent=1 // loop_footer
      %s24 = sadd.s32 1, %s20
    $region7: #{tpu_custom_call.1} parent=1 // loop_footer_branch
      %19 = sbr.rel target = $region3
    $region8: #{tpu_custom_call.1} parent=1 // loop_exit
      _
    %1949 = vsyncpa [#allocation5], 1
    %s1950 = scalar_lea.sflag [#allocation5], 1
    %1951 = vsyncpa %s1950, 1
    %1952 = vsyncpa [#allocation8], 1
    %1953 = vsyncpa [#allocation11], 1
    %1954 = vsyncpa [#allocation6], 1
    %s1955 = scalar_lea.sflag [#allocation6], 1
    %1956 = vsyncpa %s1955, 1

</llo_original>
